<compile_context>
chip_gen: v6e
topology: v6e:2x2x1
jax: 0.10.0
libtpu: 0.0.40
codegen_flags: <defaults>
</compile_context>

<pallas_src>
import functools

import jax
import jax.numpy as jnp
from jax import lax
from jax.experimental import pallas as pl
from jax.experimental.pallas import tpu as pltpu


# ----------------------------------------------------------------------------
# Fused kernel
# ----------------------------------------------------------------------------
def _fused_double_conv_kernel(
    x_main_ref, x_top_ref, x_bot_ref,          # input row band + 2-row halos
    w1_ref, s1_ref, b1_ref,                    # layer 1: (3, 3*Cin, Cmid), (1,Cmid)x2
    w2_ref, s2_ref, b2_ref,                    # layer 2: (3, 3*Cmid, Cout), (1,Cout)x2
    o_ref,                                     # (1, TH, W, Cout)
    xaug_ref, midaug_ref,                      # VMEM scratch
    *, tile_rows, width, cin, cmid, cout):
  TH, W = tile_rows, width
  R1 = TH + 2     # intermediate rows produced (1-row halo each side)
  RT = TH + 4     # input rows needed (2-row halo each side)

  band = pl.program_id(1)
  first = band == 0
  last = band == pl.num_programs(1) - 1

  # ---- assemble dx-expanded, zero-padded input slab in VMEM --------------
  # xaug[p, w, dx*cin + c] == x[r0 - 2 + p, w + dx - 1, c]  (zeros outside image)
  main = x_main_ref[0].astype(jnp.bfloat16)                        # (TH, W, Cin)
  top = jnp.where(first, 0.0, x_top_ref[0]).astype(jnp.bfloat16)   # (2, W, Cin)
  bot = jnp.where(last, 0.0, x_bot_ref[0]).astype(jnp.bfloat16)    # (2, W, Cin)
  xaug_ref[0:2, :, cin:2 * cin] = top
  xaug_ref[2:2 + TH, :, cin:2 * cin] = main
  xaug_ref[2 + TH:RT, :, cin:2 * cin] = bot
  center = xaug_ref[:, :, cin:2 * cin]                             # (RT, W, Cin)
  zcol = jnp.zeros((RT, 1, cin), jnp.bfloat16)
  xaug_ref[:, 1:, 0:cin] = center[:, :W - 1, :]                    # dx = -1 taps
  xaug_ref[:, 0:1, 0:cin] = zcol
  xaug_ref[:, :W - 1, 2 * cin:3 * cin] = center[:, 1:, :]          # dx = +1 taps
  xaug_ref[:, W - 1:W, 2 * cin:3 * cin] = zcol

  # ---- conv1: 3 matmuls with K = 3*Cin, f32 accumulate, fused BN+ReLU -----
  acc = jnp.zeros((R1 * W, cmid), jnp.float32)
  for dy in range(3):
    lhs = xaug_ref[dy:dy + R1, :, :].reshape(R1 * W, 3 * cin)
    acc = acc + jnp.dot(lhs, w1_ref[dy], preferred_element_type=jnp.float32)
  mid = jnp.maximum(acc * s1_ref[0] + b1_ref[0], 0.0)
  # Rows of the layer-1 halo that correspond to image-boundary padding are 0.
  fr = lax.broadcasted_iota(jnp.int32, (R1 * W, 1), 0)
  kill = jnp.logical_or(jnp.logical_and(first, fr < W),
                        jnp.logical_and(last, fr >= (R1 - 1) * W))
  mid = jnp.where(kill, 0.0, mid).astype(jnp.bfloat16).reshape(R1, W, cmid)

  # ---- dx-expand the layer-1 activation (stays in VMEM, never hits HBM) ---
  zcol1 = jnp.zeros((R1, 1, cmid), jnp.bfloat16)
  midaug_ref[:, :, cmid:2 * cmid] = mid
  midaug_ref[:, 1:, 0:cmid] = mid[:, :W - 1, :]
  midaug_ref[:, 0:1, 0:cmid] = zcol1
  midaug_ref[:, :W - 1, 2 * cmid:3 * cmid] = mid[:, 1:, :]
  midaug_ref[:, W - 1:W, 2 * cmid:3 * cmid] = zcol1

  # ---- conv2: 3 matmuls with K = 3*Cmid, fused BN+ReLU, single store ------
  acc2 = jnp.zeros((TH * W, cout), jnp.float32)
  for dy in range(3):
    lhs = midaug_ref[dy:dy + TH, :, :].reshape(TH * W, 3 * cmid)
    acc2 = acc2 + jnp.dot(lhs, w2_ref[dy], preferred_element_type=jnp.float32)
  y = jnp.maximum(acc2 * s2_ref[0] + b2_ref[0], 0.0)
  o_ref[...] = y.reshape(1, TH, W, cout).astype(o_ref.dtype)


# ----------------------------------------------------------------------------
# Tiling helpers
# ----------------------------------------------------------------------------
def _per_step_vmem_bytes(th, w, cin, cmid, cout):
  blocks = 2 * ((th + 4) * w * cin * 4 + th * w * cout * 4)   # double-buffered io
  scratch = (th + 4) * w * 3 * cin * 2 + (th + 2) * w * 3 * cmid * 2
  accs = (th + 2) * w * cmid * 4 + th * w * cout * 4
  weights = 9 * cin * cmid * 2 + 9 * cmid * cout * 2
  return blocks + scratch + accs + weights


def _choose_tile_rows(H, W, cin, cmid, cout, budget=16 * 2**20):
  # Largest even divisor of H whose per-step footprint fits a v7x-safe budget.
  cands = [d for d in range(H, 0, -1) if H % d == 0 and (d % 2 == 0 or d == H)]
  for d in cands:
    if _per_step_vmem_bytes(d, W, cin, cmid, cout) <= budget:
      return d
  return cands[-1]


# ----------------------------------------------------------------------------
# Wrapper
# ----------------------------------------------------------------------------
def double_conv_pallas(x_nhwc, params, *, tile_rows=None):
  """Fused (conv3x3 -> BN -> ReLU) * 2.  x_nhwc: (N, H, W, Cin) -> (N, H, W, Cout)."""
  (w1, s1, b1), (w2, s2, b2) = params
  N, H, W, Cin = x_nhwc.shape
  Cmid, Cout = w1.shape[-1], w2.shape[-1]
  assert H >= 2 and W >= 2

  if tile_rows is None:
    tile_rows = _choose_tile_rows(H, W, Cin, Cmid, Cout)
  TH = tile_rows
  assert H % TH == 0 and (TH % 2 == 0 or TH == H), (H, TH)
  nb = H // TH

  # Fold dx taps into the contraction dim: (3, 3, C, O) -> (3, 3*C, O), bf16.
  w1a = w1.reshape(3, 3 * Cin, Cmid).astype(jnp.bfloat16)
  w2a = w2.reshape(3, 3 * Cmid, Cout).astype(jnp.bfloat16)
  s1v = s1.reshape(1, Cmid).astype(jnp.float32)
  b1v = b1.reshape(1, Cmid).astype(jnp.float32)
  s2v = s2.reshape(1, Cout).astype(jnp.float32)
  b2v = b2.reshape(1, Cout).astype(jnp.float32)

  # 2-row halo bands above/below the main band (clamped; zeroed in-kernel at
  # image borders).
  halo_top = lambda n, b: (n, jnp.maximum(b * (TH // 2) - 1, 0), 0, 0)
  halo_bot = lambda n, b: (n, jnp.minimum((b + 1) * (TH // 2), H // 2 - 1), 0, 0)

  kern = functools.partial(
      _fused_double_conv_kernel,
      tile_rows=TH, width=W, cin=Cin, cmid=Cmid, cout=Cout)

  itemsize = x_nhwc.dtype.itemsize
  flops = 2 * N * H * W * 9 * (Cin * Cmid + Cmid * Cout)
  bytes_accessed = (N * H * W * Cin * itemsize + N * H * W * Cout * itemsize
                    + w1a.size * 2 + w2a.size * 2)
  step_bytes = _per_step_vmem_bytes(TH, W, Cin, Cmid, Cout)
  vmem_limit = int(min(48 * 2**20, max(16 * 2**20, 2 * step_bytes)))

  return pl.pallas_call(
      kern,
      out_shape=jax.ShapeDtypeStruct((N, H, W, Cout), x_nhwc.dtype),
      grid=(N, nb),
      in_specs=[
          pl.BlockSpec((1, TH, W, Cin), lambda n, b: (n, b, 0, 0)),
          pl.BlockSpec((1, 2, W, Cin), halo_top),
          pl.BlockSpec((1, 2, W, Cin), halo_bot),
          pl.BlockSpec((3, 3 * Cin, Cmid), lambda n, b: (0, 0, 0)),
          pl.BlockSpec((1, Cmid), lambda n, b: (0, 0)),
          pl.BlockSpec((1, Cmid), lambda n, b: (0, 0)),
          pl.BlockSpec((3, 3 * Cmid, Cout), lambda n, b: (0, 0, 0)),
          pl.BlockSpec((1, Cout), lambda n, b: (0, 0)),
          pl.BlockSpec((1, Cout), lambda n, b: (0, 0)),
      ],
      out_specs=pl.BlockSpec((1, TH, W, Cout), lambda n, b: (n, b, 0, 0)),
      scratch_shapes=[
          pltpu.VMEM((TH + 4, W, 3 * Cin), jnp.bfloat16),    # padded input slab
          pltpu.VMEM((TH + 2, W, 3 * Cmid), jnp.bfloat16),   # layer-1 activation
      ],
      compiler_params=pltpu.CompilerParams(
          dimension_semantics=("parallel", "parallel"),
          vmem_limit_bytes=vmem_limit),
      cost_estimate=pl.CostEstimate(
          flops=flops, transcendentals=0, bytes_accessed=bytes_accessed),
  )(x_nhwc, x_nhwc, x_nhwc, w1a, s1v, b1v, w2a, s2v, b2v)


def double_conv_forward(x_nchw, params, *, tile_rows=None):
  """Forward pass of double_conv. (N, C_in, H, W) -> (N, C_out, H, W)."""
  x = jnp.transpose(x_nchw, (0, 2, 3, 1))          # NCHW -> NHWC
  y = double_conv_pallas(x, params, tile_rows=tile_rows)
  return jnp.transpose(y, (0, 3, 1, 2))            # NHWC -> NCHW


# ----------------------------------------------------------------------------
# Parameters / reference
# ----------------------------------------------------------------------------
def init_double_conv_params(key, in_ch, out_ch):
  """Deterministic synthetic parameters matching nn.Conv2d/BatchNorm2d shapes."""
  k1, k2, k3, k4 = jax.random.split(key, 4)
  eps = 1e-5

  def make_layer(kw, kb, cin, cout):
    w = jax.random.normal(kw, (3, 3, cin, cout), jnp.float32) * 0.1   # HWIO
    b = jax.random.normal(kb, (cout,), jnp.float32) * 0.1
    gamma = jnp.ones((cout,), jnp.float32)
    beta = jnp.zeros((cout,), jnp.float32)
    running_mean = jnp.zeros((cout,), jnp.float32)
    running_var = jnp.ones((cout,), jnp.float32)
    scale = gamma / jnp.sqrt(running_var + eps)
    bias = beta + (b - running_mean) * scale      # conv bias folded in
    return w, scale, bias

  return make_layer(k1, k2, in_ch, out_ch), make_layer(k3, k4, out_ch, out_ch)


def _reference_forward(x_nchw, params):
  """Pure-JAX reference (lax conv, bf16 matmul inputs to mirror the kernel)."""
  (w1, s1, b1), (w2, s2, b2) = params

  def layer(x, w, s, b):
    y = jax.lax.conv_general_dilated(
        x.astype(jnp.bfloat16), w.astype(jnp.bfloat16),
        window_strides=(1, 1), padding="SAME",
        dimension_numbers=("NHWC", "HWIO", "NHWC"),
        preferred_element_type=jnp.float32)
    return jnp.maximum(y * s + b, 0.0)

  x = jnp.transpose(x_nchw, (0, 2, 3, 1))
  h = layer(x, w1, s1, b1).astype(jnp.bfloat16)    # kernel keeps mid in bf16
  y = layer(h, w2, s2, b2)
  return jnp.transpose(y, (0, 3, 1, 2)).astype(x_nchw.dtype)


if __name__ == "__main__":
  key = jax.random.PRNGKey(0)
  kx, kp = jax.random.split(key)

  N, C_in, H, W = 2, 4, 16, 16
  C_out = 8

  x = jax.random.normal(kx, (N, C_in, H, W), jnp.float32)
  params = init_double_conv_params(kp, C_in, C_out)

  fwd = jax.jit(double_conv_forward, static_argnames=("tile_rows",))
  ref = _reference_forward(x, params)

  # tile_rows=8 exercises the multi-band halo path; None = auto (single band).
  for tr in (8, None):
    out = jax.block_until_ready(fwd(x, params, tile_rows=tr))
    assert out.shape == (N, C_out, H, W)
    max_err = float(jnp.max(jnp.abs(out - ref)))
    assert jnp.allclose(out, ref, atol=1e-2, rtol=1e-2), (tr, max_err)

  print("KERNEL_OK")
</pallas_src>

<mosaic_0001>
module attributes {stable_mosaic.version = 11 : i64} {
  func.func @_fused_double_conv_kernel(%arg0: i32, %arg1: i32, %arg2: memref<1x8x16x4xf32, #tpu.memory_space<vmem>>, %arg3: memref<1x2x16x4xf32, #tpu.memory_space<vmem>>, %arg4: memref<1x2x16x4xf32, #tpu.memory_space<vmem>>, %arg5: memref<3x12x8xbf16, #tpu.memory_space<vmem>>, %arg6: memref<1x8xf32, #tpu.memory_space<vmem>>, %arg7: memref<1x8xf32, #tpu.memory_space<vmem>>, %arg8: memref<3x24x8xbf16, #tpu.memory_space<vmem>>, %arg9: memref<1x8xf32, #tpu.memory_space<vmem>>, %arg10: memref<1x8xf32, #tpu.memory_space<vmem>>, %arg11: memref<1x8x16x8xf32, #tpu.memory_space<vmem>>, %arg12: memref<12x16x12xbf16, #tpu.memory_space<vmem>>, %arg13: memref<10x16x24xbf16, #tpu.memory_space<vmem>>) attributes {dimension_semantics = [#tpu.dimension_semantics<parallel>, #tpu.dimension_semantics<parallel>], iteration_bounds = array<i64: 2, 2>, scalar_prefetch = 0 : i64, scratch_operands = 2 : i64, tpu.core_type = #tpu.core_type<tc>, window_params = [{transform_indices = @transform_0, window_bounds = array<i64: 1, 8, 16, 4>}, {transform_indices = @transform_1, window_bounds = array<i64: 1, 2, 16, 4>}, {transform_indices = @transform_2, window_bounds = array<i64: 1, 2, 16, 4>}, {pipeline_mode = #tpu.pipeline_mode<synchronous>, transform_indices = @transform_3, window_bounds = array<i64: 3, 12, 8>}, {pipeline_mode = #tpu.pipeline_mode<synchronous>, transform_indices = @transform_4, window_bounds = array<i64: 1, 8>}, {pipeline_mode = #tpu.pipeline_mode<synchronous>, transform_indices = @transform_5, window_bounds = array<i64: 1, 8>}, {pipeline_mode = #tpu.pipeline_mode<synchronous>, transform_indices = @transform_6, window_bounds = array<i64: 3, 24, 8>}, {pipeline_mode = #tpu.pipeline_mode<synchronous>, transform_indices = @transform_7, window_bounds = array<i64: 1, 8>}, {pipeline_mode = #tpu.pipeline_mode<synchronous>, transform_indices = @transform_8, window_bounds = array<i64: 1, 8>}, {transform_indices = @transform_9, window_bounds = array<i64: 1, 8, 16, 8>}]} {
    %c0_i32 = arith.constant 0 : i32
    %0 = arith.cmpi eq, %arg1, %c0_i32 : i32
    %c1_i32 = arith.constant 1 : i32
    %1 = arith.cmpi eq, %arg1, %c1_i32 : i32
    %c0 = arith.constant 0 : index
    %c0_0 = arith.constant 0 : index
    %c0_1 = arith.constant 0 : index
    %c0_2 = arith.constant 0 : index
    %2 = vector.load %arg2[%c0, %c0_0, %c0_1, %c0_2] : memref<1x8x16x4xf32, #tpu.memory_space<vmem>>, vector<1x8x16x4xf32>
    %3 = vector.shape_cast %2 : vector<1x8x16x4xf32> to vector<8x16x4xf32>
    %4 = arith.truncf %3 : vector<8x16x4xf32> to vector<8x16x4xbf16>
    %c0_3 = arith.constant 0 : index
    %c0_4 = arith.constant 0 : index
    %c0_5 = arith.constant 0 : index
    %c0_6 = arith.constant 0 : index
    %5 = vector.load %arg3[%c0_3, %c0_4, %c0_5, %c0_6] : memref<1x2x16x4xf32, #tpu.memory_space<vmem>>, vector<1x2x16x4xf32>
    %6 = vector.shape_cast %5 : vector<1x2x16x4xf32> to vector<2x16x4xf32>
    %cst = arith.constant 0.000000e+00 : f32
    %7 = vector.broadcast %cst : f32 to vector<2x16x4xf32>
    %8 = arith.select %0, %7, %6 : vector<2x16x4xf32>
    %9 = arith.truncf %8 : vector<2x16x4xf32> to vector<2x16x4xbf16>
    %c0_7 = arith.constant 0 : index
    %c0_8 = arith.constant 0 : index
    %c0_9 = arith.constant 0 : index
    %c0_10 = arith.constant 0 : index
    %10 = vector.load %arg4[%c0_7, %c0_8, %c0_9, %c0_10] : memref<1x2x16x4xf32, #tpu.memory_space<vmem>>, vector<1x2x16x4xf32>
    %11 = vector.shape_cast %10 : vector<1x2x16x4xf32> to vector<2x16x4xf32>
    %cst_11 = arith.constant 0.000000e+00 : f32
    %12 = vector.broadcast %cst_11 : f32 to vector<2x16x4xf32>
    %13 = arith.select %1, %12, %11 : vector<2x16x4xf32>
    %14 = arith.truncf %13 : vector<2x16x4xf32> to vector<2x16x4xbf16>
    %c0_12 = arith.constant 0 : index
    %c0_13 = arith.constant 0 : index
    %c4 = arith.constant 4 : index
    %15 = vector.load %arg12[%c0_12, %c0_13, %c4] : memref<12x16x12xbf16, #tpu.memory_space<vmem>>, vector<2x16x4xbf16>
    tpu.vector_store %arg12[%c0_12, %c0_13, %c4], %9 {strides = array<i32>} : memref<12x16x12xbf16, #tpu.memory_space<vmem>>, vector<2x16x4xbf16>,
    %c2 = arith.constant 2 : index
    %c0_14 = arith.constant 0 : index
    %c4_15 = arith.constant 4 : index
    %16 = vector.load %arg12[%c2, %c0_14, %c4_15] : memref<12x16x12xbf16, #tpu.memory_space<vmem>>, vector<8x16x4xbf16>
    tpu.vector_store %arg12[%c2, %c0_14, %c4_15], %4 {strides = array<i32>} : memref<12x16x12xbf16, #tpu.memory_space<vmem>>, vector<8x16x4xbf16>,
    %c10 = arith.constant 10 : index
    %c0_16 = arith.constant 0 : index
    %c4_17 = arith.constant 4 : index
    %17 = vector.load %arg12[%c10, %c0_16, %c4_17] : memref<12x16x12xbf16, #tpu.memory_space<vmem>>, vector<2x16x4xbf16>
    tpu.vector_store %arg12[%c10, %c0_16, %c4_17], %14 {strides = array<i32>} : memref<12x16x12xbf16, #tpu.memory_space<vmem>>, vector<2x16x4xbf16>,
    %c0_18 = arith.constant 0 : index
    %c0_19 = arith.constant 0 : index
    %c4_20 = arith.constant 4 : index
    %18 = vector.load %arg12[%c0_18, %c0_19, %c4_20] : memref<12x16x12xbf16, #tpu.memory_space<vmem>>, vector<12x16x4xbf16>
    %cst_21 = arith.constant 0.000000e+00 : bf16
    %19 = vector.broadcast %cst_21 : bf16 to vector<12x1x4xbf16>
    %20 = vector.extract_strided_slice %18 {offsets = [0, 0, 0], sizes = [12, 15, 4], strides = [1, 1, 1]} : vector<12x16x4xbf16> to vector<12x15x4xbf16>
    %c0_22 = arith.constant 0 : index
    %c1 = arith.constant 1 : index
    %c0_23 = arith.constant 0 : index
    %21 = vector.load %arg12[%c0_22, %c1, %c0_23] : memref<12x16x12xbf16, #tpu.memory_space<vmem>>, vector<12x15x4xbf16>
    tpu.vector_store %arg12[%c0_22, %c1, %c0_23], %20 {strides = array<i32>} : memref<12x16x12xbf16, #tpu.memory_space<vmem>>, vector<12x15x4xbf16>,
    %c0_24 = arith.constant 0 : index
    %c0_25 = arith.constant 0 : index
    %c0_26 = arith.constant 0 : index
    %22 = vector.load %arg12[%c0_24, %c0_25, %c0_26] : memref<12x16x12xbf16, #tpu.memory_space<vmem>>, vector<12x1x4xbf16>
    tpu.vector_store %arg12[%c0_24, %c0_25, %c0_26], %19 {strides = array<i32>} : memref<12x16x12xbf16, #tpu.memory_space<vmem>>, vector<12x1x4xbf16>,
    %23 = vector.extract_strided_slice %18 {offsets = [0, 1, 0], sizes = [12, 15, 4], strides = [1, 1, 1]} : vector<12x16x4xbf16> to vector<12x15x4xbf16>
    %c0_27 = arith.constant 0 : index
    %c0_28 = arith.constant 0 : index
    %c8 = arith.constant 8 : index
    %24 = vector.load %arg12[%c0_27, %c0_28, %c8] : memref<12x16x12xbf16, #tpu.memory_space<vmem>>, vector<12x15x4xbf16>
    tpu.vector_store %arg12[%c0_27, %c0_28, %c8], %23 {strides = array<i32>} : memref<12x16x12xbf16, #tpu.memory_space<vmem>>, vector<12x15x4xbf16>,
    %c0_29 = arith.constant 0 : index
    %c15 = arith.constant 15 : index
    %c8_30 = arith.constant 8 : index
    %25 = vector.load %arg12[%c0_29, %c15, %c8_30] : memref<12x16x12xbf16, #tpu.memory_space<vmem>>, vector<12x1x4xbf16>
    tpu.vector_store %arg12[%c0_29, %c15, %c8_30], %19 {strides = array<i32>} : memref<12x16x12xbf16, #tpu.memory_space<vmem>>, vector<12x1x4xbf16>,
    %cst_31 = arith.constant 0.000000e+00 : f32
    %26 = vector.broadcast %cst_31 : f32 to vector<160x8xf32>
    %c0_32 = arith.constant 0 : index
    %c0_33 = arith.constant 0 : index
    %c0_34 = arith.constant 0 : index
    %27 = vector.load %arg12[%c0_32, %c0_33, %c0_34] : memref<12x16x12xbf16, #tpu.memory_space<vmem>>, vector<10x16x12xbf16>
    %28 = vector.shape_cast %27 : vector<10x16x12xbf16> to vector<160x12xbf16>
    %c0_35 = arith.constant 0 : index
    %c0_36 = arith.constant 0 : index
    %c0_37 = arith.constant 0 : index
    %29 = vector.load %arg5[%c0_35, %c0_36, %c0_37] : memref<3x12x8xbf16, #tpu.memory_space<vmem>>, vector<1x12x8xbf16>
    %30 = vector.shape_cast %29 : vector<1x12x8xbf16> to vector<12x8xbf16>
    %cst_38 = arith.constant dense<0.000000e+00> : vector<160x8xf32>
    %31 = tpu.matmul %28, %30, %cst_38 {dimension_numbers = #tpu.dot_dimension_numbers<[1], [0], [0], [1], [0, 0, 1, 1], [], []>} : vector<160x12xbf16>, vector<12x8xbf16>, vector<160x8xf32> -> vector<160x8xf32>
    %32 = arith.addf %26, %31 : vector<160x8xf32>
    %c1_39 = arith.constant 1 : index
    %c0_40 = arith.constant 0 : index
    %c0_41 = arith.constant 0 : index
    %33 = vector.load %arg12[%c1_39, %c0_40, %c0_41] : memref<12x16x12xbf16, #tpu.memory_space<vmem>>, vector<10x16x12xbf16>
    %34 = vector.shape_cast %33 : vector<10x16x12xbf16> to vector<160x12xbf16>
    %c1_42 = arith.constant 1 : index
    %c0_43 = arith.constant 0 : index
    %c0_44 = arith.constant 0 : index
    %35 = vector.load %arg5[%c1_42, %c0_43, %c0_44] : memref<3x12x8xbf16, #tpu.memory_space<vmem>>, vector<1x12x8xbf16>
    %36 = vector.shape_cast %35 : vector<1x12x8xbf16> to vector<12x8xbf16>
    %cst_45 = arith.constant dense<0.000000e+00> : vector<160x8xf32>
    %37 = tpu.matmul %34, %36, %cst_45 {dimension_numbers = #tpu.dot_dimension_numbers<[1], [0], [0], [1], [0, 0, 1, 1], [], []>} : vector<160x12xbf16>, vector<12x8xbf16>, vector<160x8xf32> -> vector<160x8xf32>
    %38 = arith.addf %32, %37 : vector<160x8xf32>
    %c2_46 = arith.constant 2 : index
    %c0_47 = arith.constant 0 : index
    %c0_48 = arith.constant 0 : index
    %39 = vector.load %arg12[%c2_46, %c0_47, %c0_48] : memref<12x16x12xbf16, #tpu.memory_space<vmem>>, vector<10x16x12xbf16>
    %40 = vector.shape_cast %39 : vector<10x16x12xbf16> to vector<160x12xbf16>
    %c2_49 = arith.constant 2 : index
    %c0_50 = arith.constant 0 : index
    %c0_51 = arith.constant 0 : index
    %41 = vector.load %arg5[%c2_49, %c0_50, %c0_51] : memref<3x12x8xbf16, #tpu.memory_space<vmem>>, vector<1x12x8xbf16>
    %42 = vector.shape_cast %41 : vector<1x12x8xbf16> to vector<12x8xbf16>
    %cst_52 = arith.constant dense<0.000000e+00> : vector<160x8xf32>
    %43 = tpu.matmul %40, %42, %cst_52 {dimension_numbers = #tpu.dot_dimension_numbers<[1], [0], [0], [1], [0, 0, 1, 1], [], []>} : vector<160x12xbf16>, vector<12x8xbf16>, vector<160x8xf32> -> vector<160x8xf32>
    %44 = arith.addf %38, %43 : vector<160x8xf32>
    %c0_53 = arith.constant 0 : index
    %c0_54 = arith.constant 0 : index
    %45 = vector.load %arg6[%c0_53, %c0_54] : memref<1x8xf32, #tpu.memory_space<vmem>>, vector<1x8xf32>
    %46 = vector.shape_cast %45 : vector<1x8xf32> to vector<8xf32>
    %47 = vector.shape_cast %46 : vector<8xf32> to vector<1x8xf32>
    %48 = vector.broadcast %47 : vector<1x8xf32> to vector<160x8xf32>
    %49 = arith.mulf %44, %48 : vector<160x8xf32>
    %c0_55 = arith.constant 0 : index
    %c0_56 = arith.constant 0 : index
    %50 = vector.load %arg7[%c0_55, %c0_56] : memref<1x8xf32, #tpu.memory_space<vmem>>, vector<1x8xf32>
    %51 = vector.shape_cast %50 : vector<1x8xf32> to vector<8xf32>
    %52 = vector.shape_cast %51 : vector<8xf32> to vector<1x8xf32>
    %53 = vector.broadcast %52 : vector<1x8xf32> to vector<160x8xf32>
    %54 = arith.addf %49, %53 : vector<160x8xf32>
    %cst_57 = arith.constant 0.000000e+00 : f32
    %55 = vector.broadcast %cst_57 : f32 to vector<160x8xf32>
    %56 = arith.maximumf %54, %55 : vector<160x8xf32>
    %57 = tpu.iota {dimensions = array<i32: 0>} : vector<160x1xi32>
    %c16_i32 = arith.constant 16 : i32
    %58 = vector.broadcast %c16_i32 : i32 to vector<160x1xi32>
    %59 = arith.cmpi slt, %57, %58 : vector<160x1xi32>
    %60 = vector.broadcast %0 : i1 to vector<160x1xi1>
    %61 = arith.andi %60, %59 : vector<160x1xi1>
    %c144_i32 = arith.constant 144 : i32
    %62 = vector.broadcast %c144_i32 : i32 to vector<160x1xi32>
    %63 = arith.cmpi sge, %57, %62 : vector<160x1xi32>
    %64 = vector.broadcast %1 : i1 to vector<160x1xi1>
    %65 = arith.andi %64, %63 : vector<160x1xi1>
    %66 = arith.ori %61, %65 : vector<160x1xi1>
    %cst_58 = arith.constant 0.000000e+00 : f32
    %67 = vector.shape_cast %66 : vector<160x1xi1> to vector<160x1xi1>
    %68 = vector.broadcast %67 : vector<160x1xi1> to vector<160x8xi1>
    %69 = vector.broadcast %cst_58 : f32 to vector<160x8xf32>
    %70 = arith.select %68, %69, %56 : vector<160x8xi1>, vector<160x8xf32>
    %71 = arith.truncf %70 : vector<160x8xf32> to vector<160x8xbf16>
    %72 = vector.shape_cast %71 : vector<160x8xbf16> to vector<10x16x8xbf16>
    %cst_59 = arith.constant 0.000000e+00 : bf16
    %73 = vector.broadcast %cst_59 : bf16 to vector<10x1x8xbf16>
    %c0_60 = arith.constant 0 : index
    %c0_61 = arith.constant 0 : index
    %c8_62 = arith.constant 8 : index
    %74 = vector.load %arg13[%c0_60, %c0_61, %c8_62] : memref<10x16x24xbf16, #tpu.memory_space<vmem>>, vector<10x16x8xbf16>
    tpu.vector_store %arg13[%c0_60, %c0_61, %c8_62], %72 {strides = array<i32>} : memref<10x16x24xbf16, #tpu.memory_space<vmem>>, vector<10x16x8xbf16>,
    %75 = vector.extract_strided_slice %72 {offsets = [0, 0, 0], sizes = [10, 15, 8], strides = [1, 1, 1]} : vector<10x16x8xbf16> to vector<10x15x8xbf16>
    %c0_63 = arith.constant 0 : index
    %c1_64 = arith.constant 1 : index
    %c0_65 = arith.constant 0 : index
    %76 = vector.load %arg13[%c0_63, %c1_64, %c0_65] : memref<10x16x24xbf16, #tpu.memory_space<vmem>>, vector<10x15x8xbf16>
    tpu.vector_store %arg13[%c0_63, %c1_64, %c0_65], %75 {strides = array<i32>} : memref<10x16x24xbf16, #tpu.memory_space<vmem>>, vector<10x15x8xbf16>,
    %c0_66 = arith.constant 0 : index
    %c0_67 = arith.constant 0 : index
    %c0_68 = arith.constant 0 : index
    %77 = vector.load %arg13[%c0_66, %c0_67, %c0_68] : memref<10x16x24xbf16, #tpu.memory_space<vmem>>, vector<10x1x8xbf16>
    tpu.vector_store %arg13[%c0_66, %c0_67, %c0_68], %73 {strides = array<i32>} : memref<10x16x24xbf16, #tpu.memory_space<vmem>>, vector<10x1x8xbf16>,
    %78 = vector.extract_strided_slice %72 {offsets = [0, 1, 0], sizes = [10, 15, 8], strides = [1, 1, 1]} : vector<10x16x8xbf16> to vector<10x15x8xbf16>
    %c0_69 = arith.constant 0 : index
    %c0_70 = arith.constant 0 : index
    %c16 = arith.constant 16 : index
    %79 = vector.load %arg13[%c0_69, %c0_70, %c16] : memref<10x16x24xbf16, #tpu.memory_space<vmem>>, vector<10x15x8xbf16>
    tpu.vector_store %arg13[%c0_69, %c0_70, %c16], %78 {strides = array<i32>} : memref<10x16x24xbf16, #tpu.memory_space<vmem>>, vector<10x15x8xbf16>,
    %c0_71 = arith.constant 0 : index
    %c15_72 = arith.constant 15 : index
    %c16_73 = arith.constant 16 : index
    %80 = vector.load %arg13[%c0_71, %c15_72, %c16_73] : memref<10x16x24xbf16, #tpu.memory_space<vmem>>, vector<10x1x8xbf16>
    tpu.vector_store %arg13[%c0_71, %c15_72, %c16_73], %73 {strides = array<i32>} : memref<10x16x24xbf16, #tpu.memory_space<vmem>>, vector<10x1x8xbf16>,
    %cst_74 = arith.constant 0.000000e+00 : f32
    %81 = vector.broadcast %cst_74 : f32 to vector<128x8xf32>
    %c0_75 = arith.constant 0 : index
    %c0_76 = arith.constant 0 : index
    %c0_77 = arith.constant 0 : index
    %82 = vector.load %arg13[%c0_75, %c0_76, %c0_77] : memref<10x16x24xbf16, #tpu.memory_space<vmem>>, vector<8x16x24xbf16>
    %83 = vector.shape_cast %82 : vector<8x16x24xbf16> to vector<128x24xbf16>
    %c0_78 = arith.constant 0 : index
    %c0_79 = arith.constant 0 : index
    %c0_80 = arith.constant 0 : index
    %84 = vector.load %arg8[%c0_78, %c0_79, %c0_80] : memref<3x24x8xbf16, #tpu.memory_space<vmem>>, vector<1x24x8xbf16>
    %85 = vector.shape_cast %84 : vector<1x24x8xbf16> to vector<24x8xbf16>
    %cst_81 = arith.constant dense<0.000000e+00> : vector<128x8xf32>
    %86 = tpu.matmul %83, %85, %cst_81 {dimension_numbers = #tpu.dot_dimension_numbers<[1], [0], [0], [1], [0, 0, 1, 1], [], []>} : vector<128x24xbf16>, vector<24x8xbf16>, vector<128x8xf32> -> vector<128x8xf32>
    %87 = arith.addf %81, %86 : vector<128x8xf32>
    %c1_82 = arith.constant 1 : index
    %c0_83 = arith.constant 0 : index
    %c0_84 = arith.constant 0 : index
    %88 = vector.load %arg13[%c1_82, %c0_83, %c0_84] : memref<10x16x24xbf16, #tpu.memory_space<vmem>>, vector<8x16x24xbf16>
    %89 = vector.shape_cast %88 : vector<8x16x24xbf16> to vector<128x24xbf16>
    %c1_85 = arith.constant 1 : index
    %c0_86 = arith.constant 0 : index
    %c0_87 = arith.constant 0 : index
    %90 = vector.load %arg8[%c1_85, %c0_86, %c0_87] : memref<3x24x8xbf16, #tpu.memory_space<vmem>>, vector<1x24x8xbf16>
    %91 = vector.shape_cast %90 : vector<1x24x8xbf16> to vector<24x8xbf16>
    %cst_88 = arith.constant dense<0.000000e+00> : vector<128x8xf32>
    %92 = tpu.matmul %89, %91, %cst_88 {dimension_numbers = #tpu.dot_dimension_numbers<[1], [0], [0], [1], [0, 0, 1, 1], [], []>} : vector<128x24xbf16>, vector<24x8xbf16>, vector<128x8xf32> -> vector<128x8xf32>
    %93 = arith.addf %87, %92 : vector<128x8xf32>
    %c2_89 = arith.constant 2 : index
    %c0_90 = arith.constant 0 : index
    %c0_91 = arith.constant 0 : index
    %94 = vector.load %arg13[%c2_89, %c0_90, %c0_91] : memref<10x16x24xbf16, #tpu.memory_space<vmem>>, vector<8x16x24xbf16>
    %95 = vector.shape_cast %94 : vector<8x16x24xbf16> to vector<128x24xbf16>
    %c2_92 = arith.constant 2 : index
    %c0_93 = arith.constant 0 : index
    %c0_94 = arith.constant 0 : index
    %96 = vector.load %arg8[%c2_92, %c0_93, %c0_94] : memref<3x24x8xbf16, #tpu.memory_space<vmem>>, vector<1x24x8xbf16>
    %97 = vector.shape_cast %96 : vector<1x24x8xbf16> to vector<24x8xbf16>
    %cst_95 = arith.constant dense<0.000000e+00> : vector<128x8xf32>
    %98 = tpu.matmul %95, %97, %cst_95 {dimension_numbers = #tpu.dot_dimension_numbers<[1], [0], [0], [1], [0, 0, 1, 1], [], []>} : vector<128x24xbf16>, vector<24x8xbf16>, vector<128x8xf32> -> vector<128x8xf32>
    %99 = arith.addf %93, %98 : vector<128x8xf32>
    %c0_96 = arith.constant 0 : index
    %c0_97 = arith.constant 0 : index
    %100 = vector.load %arg9[%c0_96, %c0_97] : memref<1x8xf32, #tpu.memory_space<vmem>>, vector<1x8xf32>
    %101 = vector.shape_cast %100 : vector<1x8xf32> to vector<8xf32>
    %102 = vector.shape_cast %101 : vector<8xf32> to vector<1x8xf32>
    %103 = vector.broadcast %102 : vector<1x8xf32> to vector<128x8xf32>
    %104 = arith.mulf %99, %103 : vector<128x8xf32>
    %c0_98 = arith.constant 0 : index
    %c0_99 = arith.constant 0 : index
    %105 = vector.load %arg10[%c0_98, %c0_99] : memref<1x8xf32, #tpu.memory_space<vmem>>, vector<1x8xf32>
    %106 = vector.shape_cast %105 : vector<1x8xf32> to vector<8xf32>
    %107 = vector.shape_cast %106 : vector<8xf32> to vector<1x8xf32>
    %108 = vector.broadcast %107 : vector<1x8xf32> to vector<128x8xf32>
    %109 = arith.addf %104, %108 : vector<128x8xf32>
    %cst_100 = arith.constant 0.000000e+00 : f32
    %110 = vector.broadcast %cst_100 : f32 to vector<128x8xf32>
    %111 = arith.maximumf %109, %110 : vector<128x8xf32>
    %112 = vector.shape_cast %111 : vector<128x8xf32> to vector<1x8x16x8xf32>
    %c0_101 = arith.constant 0 : index
    %c0_102 = arith.constant 0 : index
    %c0_103 = arith.constant 0 : index
    %c0_104 = arith.constant 0 : index
    %113 = vector.load %arg11[%c0_101, %c0_102, %c0_103, %c0_104] : memref<1x8x16x8xf32, #tpu.memory_space<vmem>>, vector<1x8x16x8xf32>
    tpu.vector_store %arg11[%c0_101, %c0_102, %c0_103, %c0_104], %112 {strides = array<i32>} : memref<1x8x16x8xf32, #tpu.memory_space<vmem>>, vector<1x8x16x8xf32>,
    return
  }
  func.func @transform_0(%arg0: i32, %arg1: i32) -> (i32, i32, i32, i32) {
    %c0_i32 = arith.constant 0 : i32
    %c0_i32_0 = arith.constant 0 : i32
    %c0_i32_1 = arith.constant 0 : i32
    return %arg0, %arg1, %c0_i32, %c0_i32_0 : i32, i32, i32, i32
  }
  func.func @transform_1(%arg0: i32, %arg1: i32) -> (i32, i32, i32, i32) {
    %c4_i32 = arith.constant 4 : i32
    %0 = arith.muli %arg1, %c4_i32 : i32
    %c1_i32 = arith.constant 1 : i32
    %1 = arith.subi %0, %c1_i32 : i32
    %c0_i32 = arith.constant 0 : i32
    %2 = arith.maxsi %1, %c0_i32 : i32
    %c0_i32_0 = arith.constant 0 : i32
    %c0_i32_1 = arith.constant 0 : i32
    %c0_i32_2 = arith.constant 0 : i32
    return %arg0, %2, %c0_i32_0, %c0_i32_1 : i32, i32, i32, i32
  }
  func.func @transform_2(%arg0: i32, %arg1: i32) -> (i32, i32, i32, i32) {
    %c1_i32 = arith.constant 1 : i32
    %0 = arith.addi %arg1, %c1_i32 : i32
    %c4_i32 = arith.constant 4 : i32
    %1 = arith.muli %0, %c4_i32 : i32
    %c7_i32 = arith.constant 7 : i32
    %2 = arith.minsi %1, %c7_i32 : i32
    %c0_i32 = arith.constant 0 : i32
    %c0_i32_0 = arith.constant 0 : i32
    %c0_i32_1 = arith.constant 0 : i32
    return %arg0, %2, %c0_i32, %c0_i32_0 : i32, i32, i32, i32
  }
  func.func @transform_3(%arg0: i32, %arg1: i32) -> (i32, i32, i32) {
    %c0_i32 = arith.constant 0 : i32
    %c0_i32_0 = arith.constant 0 : i32
    %c0_i32_1 = arith.constant 0 : i32
    %c0_i32_2 = arith.constant 0 : i32
    return %c0_i32, %c0_i32_0, %c0_i32_1 : i32, i32, i32
  }
  func.func @transform_4(%arg0: i32, %arg1: i32) -> (i32, i32) {
    %c0_i32 = arith.constant 0 : i32
    %c0_i32_0 = arith.constant 0 : i32
    %c0_i32_1 = arith.constant 0 : i32
    return %c0_i32, %c0_i32_0 : i32, i32
  }
  func.func @transform_5(%arg0: i32, %arg1: i32) -> (i32, i32) {
    %c0_i32 = arith.constant 0 : i32
    %c0_i32_0 = arith.constant 0 : i32
    %c0_i32_1 = arith.constant 0 : i32
    return %c0_i32, %c0_i32_0 : i32, i32
  }
  func.func @transform_6(%arg0: i32, %arg1: i32) -> (i32, i32, i32) {
    %c0_i32 = arith.constant 0 : i32
    %c0_i32_0 = arith.constant 0 : i32
    %c0_i32_1 = arith.constant 0 : i32
    %c0_i32_2 = arith.constant 0 : i32
    return %c0_i32, %c0_i32_0, %c0_i32_1 : i32, i32, i32
  }
  func.func @transform_7(%arg0: i32, %arg1: i32) -> (i32, i32) {
    %c0_i32 = arith.constant 0 : i32
    %c0_i32_0 = arith.constant 0 : i32
    %c0_i32_1 = arith.constant 0 : i32
    return %c0_i32, %c0_i32_0 : i32, i32
  }
  func.func @transform_8(%arg0: i32, %arg1: i32) -> (i32, i32) {
    %c0_i32 = arith.constant 0 : i32
    %c0_i32_0 = arith.constant 0 : i32
    %c0_i32_1 = arith.constant 0 : i32
    return %c0_i32, %c0_i32_0 : i32, i32
  }
  func.func @transform_9(%arg0: i32, %arg1: i32) -> (i32, i32, i32, i32) {
    %c0_i32 = arith.constant 0 : i32
    %c0_i32_0 = arith.constant 0 : i32
    %c0_i32_1 = arith.constant 0 : i32
    return %arg0, %arg1, %c0_i32, %c0_i32_0 : i32, i32, i32, i32
  }
}

</mosaic_0001>

<llo_original>
// kernel: double_conv_forward.1
$region0: #{double_conv_forward.1}
  #allocation0 [shape = 'u32[]', space=smem, size = 0x4, offset = 0x4, fixed_abs, tag = 'smem constant byte address 0x4 - core index']
  #allocation1 [shape = 'u32[144,128]{1,0:T(1,128)}', space=vmem, size = 0x12000, scoped, tag = 'internal scratch']
  #allocation2 [shape = 'bf16[12,16,12]{2,1,0:T(8,128)(2,1)}', space=vmem, size = 0xc000, scoped, tag = 'scratch operand']
  #allocation3 [shape = 'bf16[10,16,24]{2,1,0:T(8,128)(2,1)}', space=vmem, size = 0xa000, scoped, tag = 'scratch operand']
  %s0 = inlined_call_operand.vmem [shape: f32[2,16,16,4], index: 0, kind: input, shape index: {}, may-alias: {0,1,2}]
  %s1 = inlined_call_operand.vmem [shape: f32[2,16,16,4], index: 1, kind: input, shape index: {}, may-alias: {0,1,2}]
  %s2 = inlined_call_operand.vmem [shape: f32[2,16,16,4], index: 2, kind: input, shape index: {}, may-alias: {0,1,2}]
  %s3 = inlined_call_operand.vmem [shape: bf16[3,12,8], index: 3, kind: input, shape index: {}]
  %s4 = inlined_call_operand.vmem [shape: f32[1,8], index: 4, kind: input, shape index: {}]
  %s5 = inlined_call_operand.vmem [shape: f32[1,8], index: 5, kind: input, shape index: {}]
  %s6 = inlined_call_operand.vmem [shape: bf16[3,24,8], index: 6, kind: input, shape index: {}]
  %s7 = inlined_call_operand.vmem [shape: f32[1,8], index: 7, kind: input, shape index: {}]
  %s8 = inlined_call_operand.vmem [shape: f32[1,8], index: 8, kind: input, shape index: {}]
  %s9 = inlined_call_operand.vmem [shape: f32[2,16,16,8], index: 9, kind: output, shape index: {}]
  %s10 = sld [smem:[#allocation0]]
  $region69: #{double_conv_forward.1} parent=0
    _
  %s12 = ssub.s32 1, %s10
  %s13 = scalar_select 0, %s12, %s10
  loop: start=0, step=1, limit=6
  $region2: #{double_conv_forward.1} parent=0 // loop_pre_header
    _
  $region3: #{double_conv_forward.1} parent=0 // loop_header
    %s15 = sphi 0, %s19
    %p16 = scmp.ge.s32.totalorder %s15, 6
    %s22 = sphi 0, %s34
    %s23 = sphi 0, %s30
    %s24 = sphi 0, %s22
    %s25 = sphi 0, %s23
    %s26 = sphi 0, %s24
    %s27 = sphi 0, %s25
    %s39 = sphi 0, %s41
    %s42 = sphi 0, %s39
    %s43 = sphi 0, %s42
    %s59 = sphi 0, %s43
    %s75 = sphi 0, %s77
    %s78 = sphi 0, %s75
    %s79 = sphi 0, %s78
    %s95 = sphi 0, %s79
    %s111 = sphi 0, %s113
    %s114 = sphi 0, %s111
    %s115 = sphi 0, %s114
    %s131 = sphi 0, %s115
    %s135 = sphi 0, %s135
    %s137 = sphi 0, %s135
    %s138 = sphi 0, %s137
    %s152 = sphi 0, %s138
    %s156 = sphi 0, %s156
    %s158 = sphi 0, %s156
    %s159 = sphi 0, %s158
    %s173 = sphi 0, %s159
    %s177 = sphi 0, %s177
    %s179 = sphi 0, %s177
    %s180 = sphi 0, %s179
    %s194 = sphi 0, %s180
    %s198 = sphi 0, %s198
    %s200 = sphi 0, %s198
    %s201 = sphi 0, %s200
    %s215 = sphi 0, %s201
    %s219 = sphi 0, %s219
    %s221 = sphi 0, %s219
    %s222 = sphi 0, %s221
    %s236 = sphi 0, %s222
    %s240 = sphi 0, %s240
    %s242 = sphi 0, %s240
    %s243 = sphi 0, %s242
    %s257 = sphi 0, %s243
    %s265 = sphi 0, %s267
    %s268 = sphi 0, %s265
    %s269 = sphi 0, %s268
    %s285 = sphi 0, %s269
  $region4: #{double_conv_forward.1} parent=0 // loop_header_branch
    %18 = sbr.rel (%p16) target = $region8
  $region5: #{double_conv_forward.1} parent=0 // loop_body
    %s20 = ssub.s32 %s15, 1
    %s21 = ssub.s32 %s15, 2
    %s28 = sadd.s32 1, %s23
    %p29 = scmp.ge.s32.totalorder %s28, 2
    %s30 = scalar_select %p29, 0, %s28
    %s31 = sadd.s32 1, %s22
    %s32 = scalar_select %p29, %s31, %s22
    %p33 = scmp.ge.s32.totalorder %s32, 2
    %s34 = scalar_select %p33, 0, %s32
    %s35 = ssub.s32 %s22, %s34
    %s36 = ssub.s32 %s23, %s30
    %s37 = sor.u32 %s35, %s36
    %p38 = scmp.eq.s32.totalorder %s37, 0
    %s40 = sadd.s32 %s39, 1
    %s41 = scalar_select %p38, %s39, %s40
    %p44 = pneg %p38
    %p45 = scmp.eq.s32.totalorder %s15, 3
    %p46 = por %p44, %p45
    %p47 = scmp.ne.s32.totalorder %s39, %s42
    %p48 = scmp.eq.s32.totalorder %s15, 0
    %p49 = por %p47, %p48
    %p50 = scmp.ne.s32.totalorder %s39, %s42
    %p51 = scmp.eq.s32.totalorder %s20, 3
    %p52 = por %p50, %p51
    %p53 = scmp.ne.s32.totalorder %s42, %s43
    %p54 = scmp.eq.s32.totalorder %s20, 0
    %p55 = por %p53, %p54
    %p56 = scmp.ne.s32.totalorder %s42, %s43
    %p57 = scmp.eq.s32.totalorder %s21, 3
    %p58 = por %p56, %p57
    %p60 = scmp.ne.s32.totalorder %s43, %s59
    %p61 = scmp.eq.s32.totalorder %s21, 0
    %p62 = por %p60, %p61
    %s63 = smul.u32 %s23, 4
    %s64 = ssub.s32 %s63, 1
    %p65 = scmp.gt.s32.totalorder %s64, 0
    %s66 = scalar_select %p65, %s64, 0
    %s67 = smul.u32 %s30, 4
    %s68 = ssub.s32 %s67, 1
    %p69 = scmp.gt.s32.totalorder %s68, 0
    %s70 = scalar_select %p69, %s68, 0
    %s71 = ssub.s32 %s22, %s34
    %s72 = ssub.s32 %s66, %s70
    %s73 = sor.u32 %s71, %s72
    %p74 = scmp.eq.s32.totalorder %s73, 0
    %s76 = sadd.s32 %s75, 1
    %s77 = scalar_select %p74, %s75, %s76
    %p80 = pneg %p74
    %p81 = scmp.eq.s32.totalorder %s15, 3
    %p82 = por %p80, %p81
    %p83 = scmp.ne.s32.totalorder %s75, %s78
    %p84 = scmp.eq.s32.totalorder %s15, 0
    %p85 = por %p83, %p84
    %p86 = scmp.ne.s32.totalorder %s75, %s78
    %p87 = scmp.eq.s32.totalorder %s20, 3
    %p88 = por %p86, %p87
    %p89 = scmp.ne.s32.totalorder %s78, %s79
    %p90 = scmp.eq.s32.totalorder %s20, 0
    %p91 = por %p89, %p90
    %p92 = scmp.ne.s32.totalorder %s78, %s79
    %p93 = scmp.eq.s32.totalorder %s21, 3
    %p94 = por %p92, %p93
    %p96 = scmp.ne.s32.totalorder %s79, %s95
    %p97 = scmp.eq.s32.totalorder %s21, 0
    %p98 = por %p96, %p97
    %s99 = sadd.s32 %s23, 1
    %s100 = smul.u32 %s99, 4
    %p101 = scmp.lt.s32.totalorder %s100, 7
    %s102 = scalar_select %p101, %s100, 7
    %s103 = sadd.s32 %s30, 1
    %s104 = smul.u32 %s103, 4
    %p105 = scmp.lt.s32.totalorder %s104, 7
    %s106 = scalar_select %p105, %s104, 7
    %s107 = ssub.s32 %s22, %s34
    %s108 = ssub.s32 %s102, %s106
    %s109 = sor.u32 %s107, %s108
    %p110 = scmp.eq.s32.totalorder %s109, 0
    %s112 = sadd.s32 %s111, 1
    %s113 = scalar_select %p110, %s111, %s112
    %p116 = pneg %p110
    %p117 = scmp.eq.s32.totalorder %s15, 3
    %p118 = por %p116, %p117
    %p119 = scmp.ne.s32.totalorder %s111, %s114
    %p120 = scmp.eq.s32.totalorder %s15, 0
    %p121 = por %p119, %p120
    %p122 = scmp.ne.s32.totalorder %s111, %s114
    %p123 = scmp.eq.s32.totalorder %s20, 3
    %p124 = por %p122, %p123
    %p125 = scmp.ne.s32.totalorder %s114, %s115
    %p126 = scmp.eq.s32.totalorder %s20, 0
    %p127 = por %p125, %p126
    %p128 = scmp.ne.s32.totalorder %s114, %s115
    %p129 = scmp.eq.s32.totalorder %s21, 3
    %p130 = por %p128, %p129
    %p132 = scmp.ne.s32.totalorder %s115, %s131
    %p133 = scmp.eq.s32.totalorder %s21, 0
    %p134 = por %p132, %p133
    %s136 = sadd.s32 %s135, 1
    %p139 = scmp.eq.s32.totalorder %s15, 3
    %p140 = scmp.ne.s32.totalorder %s135, %s137
    %p141 = scmp.eq.s32.totalorder %s15, 0
    %p142 = por %p140, %p141
    %p143 = scmp.ne.s32.totalorder %s135, %s137
    %p144 = scmp.eq.s32.totalorder %s20, 3
    %p145 = por %p143, %p144
    %p146 = scmp.ne.s32.totalorder %s137, %s138
    %p147 = scmp.eq.s32.totalorder %s20, 0
    %p148 = por %p146, %p147
    %p149 = scmp.ne.s32.totalorder %s137, %s138
    %p150 = scmp.eq.s32.totalorder %s21, 3
    %p151 = por %p149, %p150
    %p153 = scmp.ne.s32.totalorder %s138, %s152
    %p154 = scmp.eq.s32.totalorder %s21, 0
    %p155 = por %p153, %p154
    %s157 = sadd.s32 %s156, 1
    %p160 = scmp.eq.s32.totalorder %s15, 3
    %p161 = scmp.ne.s32.totalorder %s156, %s158
    %p162 = scmp.eq.s32.totalorder %s15, 0
    %p163 = por %p161, %p162
    %p164 = scmp.ne.s32.totalorder %s156, %s158
    %p165 = scmp.eq.s32.totalorder %s20, 3
    %p166 = por %p164, %p165
    %p167 = scmp.ne.s32.totalorder %s158, %s159
    %p168 = scmp.eq.s32.totalorder %s20, 0
    %p169 = por %p167, %p168
    %p170 = scmp.ne.s32.totalorder %s158, %s159
    %p171 = scmp.eq.s32.totalorder %s21, 3
    %p172 = por %p170, %p171
    %p174 = scmp.ne.s32.totalorder %s159, %s173
    %p175 = scmp.eq.s32.totalorder %s21, 0
    %p176 = por %p174, %p175
    %s178 = sadd.s32 %s177, 1
    %p181 = scmp.eq.s32.totalorder %s15, 3
    %p182 = scmp.ne.s32.totalorder %s177, %s179
    %p183 = scmp.eq.s32.totalorder %s15, 0
    %p184 = por %p182, %p183
    %p185 = scmp.ne.s32.totalorder %s177, %s179
    %p186 = scmp.eq.s32.totalorder %s20, 3
    %p187 = por %p185, %p186
    %p188 = scmp.ne.s32.totalorder %s179, %s180
    %p189 = scmp.eq.s32.totalorder %s20, 0
    %p190 = por %p188, %p189
    %p191 = scmp.ne.s32.totalorder %s179, %s180
    %p192 = scmp.eq.s32.totalorder %s21, 3
    %p193 = por %p191, %p192
    %p195 = scmp.ne.s32.totalorder %s180, %s194
    %p196 = scmp.eq.s32.totalorder %s21, 0
    %p197 = por %p195, %p196
    %s199 = sadd.s32 %s198, 1
    %p202 = scmp.eq.s32.totalorder %s15, 3
    %p203 = scmp.ne.s32.totalorder %s198, %s200
    %p204 = scmp.eq.s32.totalorder %s15, 0
    %p205 = por %p203, %p204
    %p206 = scmp.ne.s32.totalorder %s198, %s200
    %p207 = scmp.eq.s32.totalorder %s20, 3
    %p208 = por %p206, %p207
    %p209 = scmp.ne.s32.totalorder %s200, %s201
    %p210 = scmp.eq.s32.totalorder %s20, 0
    %p211 = por %p209, %p210
    %p212 = scmp.ne.s32.totalorder %s200, %s201
    %p213 = scmp.eq.s32.totalorder %s21, 3
    %p214 = por %p212, %p213
    %p216 = scmp.ne.s32.totalorder %s201, %s215
    %p217 = scmp.eq.s32.totalorder %s21, 0
    %p218 = por %p216, %p217
    %s220 = sadd.s32 %s219, 1
    %p223 = scmp.eq.s32.totalorder %s15, 3
    %p224 = scmp.ne.s32.totalorder %s219, %s221
    %p225 = scmp.eq.s32.totalorder %s15, 0
    %p226 = por %p224, %p225
    %p227 = scmp.ne.s32.totalorder %s219, %s221
    %p228 = scmp.eq.s32.totalorder %s20, 3
    %p229 = por %p227, %p228
    %p230 = scmp.ne.s32.totalorder %s221, %s222
    %p231 = scmp.eq.s32.totalorder %s20, 0
    %p232 = por %p230, %p231
    %p233 = scmp.ne.s32.totalorder %s221, %s222
    %p234 = scmp.eq.s32.totalorder %s21, 3
    %p235 = por %p233, %p234
    %p237 = scmp.ne.s32.totalorder %s222, %s236
    %p238 = scmp.eq.s32.totalorder %s21, 0
    %p239 = por %p237, %p238
    %s241 = sadd.s32 %s240, 1
    %p244 = scmp.eq.s32.totalorder %s15, 3
    %p245 = scmp.ne.s32.totalorder %s240, %s242
    %p246 = scmp.eq.s32.totalorder %s15, 0
    %p247 = por %p245, %p246
    %p248 = scmp.ne.s32.totalorder %s240, %s242
    %p249 = scmp.eq.s32.totalorder %s20, 3
    %p250 = por %p248, %p249
    %p251 = scmp.ne.s32.totalorder %s242, %s243
    %p252 = scmp.eq.s32.totalorder %s20, 0
    %p253 = por %p251, %p252
    %p254 = scmp.ne.s32.totalorder %s242, %s243
    %p255 = scmp.eq.s32.totalorder %s21, 3
    %p256 = por %p254, %p255
    %p258 = scmp.ne.s32.totalorder %s243, %s257
    %p259 = scmp.eq.s32.totalorder %s21, 0
    %p260 = por %p258, %p259
    %s261 = ssub.s32 %s22, %s34
    %s262 = ssub.s32 %s23, %s30
    %s263 = sor.u32 %s261, %s262
    %p264 = scmp.eq.s32.totalorder %s263, 0
    %s266 = sadd.s32 %s265, 1
    %s267 = scalar_select %p264, %s265, %s266
    %p270 = pneg %p264
    %p271 = scmp.eq.s32.totalorder %s15, 3
    %p272 = por %p270, %p271
    %p273 = scmp.ne.s32.totalorder %s265, %s268
    %p274 = scmp.eq.s32.totalorder %s15, 0
    %p275 = por %p273, %p274
    %p276 = scmp.ne.s32.totalorder %s265, %s268
    %p277 = scmp.eq.s32.totalorder %s20, 3
    %p278 = por %p276, %p277
    %p279 = scmp.ne.s32.totalorder %s268, %s269
    %p280 = scmp.eq.s32.totalorder %s20, 0
    %p281 = por %p279, %p280
    %p282 = scmp.ne.s32.totalorder %s268, %s269
    %p283 = scmp.eq.s32.totalorder %s21, 3
    %p284 = por %p282, %p283
    %p286 = scmp.ne.s32.totalorder %s269, %s285
    %p287 = scmp.eq.s32.totalorder %s21, 0
    %p288 = por %p286, %p287
    %p289 = scmp.le.s32.totalorder 1, %s15
    %p290 = scmp.lt.s32.totalorder %s15, 5
    %p291 = pnand %p289, %p290
    %p292 = pneg %p291
    // Predicated region
    $region9: #{double_conv_forward.1} parent=5 // pred_check
      _
    $region10: #{double_conv_forward.1} parent=5 // pred_check_branch
      %294 = sbr.rel (%p291) target = $region12
    $region11: #{double_conv_forward.1} parent=5 // pred_region
      %s295 = ssub.s32 %s15, 1
      // Predicated region
      $region13: #{double_conv_forward.1} parent=11 // pred_check
        %p296 = pneg %p148
      $region14: #{double_conv_forward.1} parent=11 // pred_check_branch
        %298 = sbr.rel (%p296) target = $region16
      $region15: #{double_conv_forward.1} parent=11 // pred_region
        _
      $region16: #{double_conv_forward.1} parent=11 // pred_fallthru
        _
      // Predicated region
      $region17: #{double_conv_forward.1} parent=11 // pred_check
        %p299 = pneg %p169
      $region18: #{double_conv_forward.1} parent=11 // pred_check_branch
        %301 = sbr.rel (%p299) target = $region20
      $region19: #{double_conv_forward.1} parent=11 // pred_region
        _
      $region20: #{double_conv_forward.1} parent=11 // pred_fallthru
        _
      // Predicated region
      $region21: #{double_conv_forward.1} parent=11 // pred_check
        %p302 = pneg %p190
      $region22: #{double_conv_forward.1} parent=11 // pred_check_branch
        %304 = sbr.rel (%p302) target = $region24
      $region23: #{double_conv_forward.1} parent=11 // pred_region
        _
      $region24: #{double_conv_forward.1} parent=11 // pred_fallthru
        _
      // Predicated region
      $region25: #{double_conv_forward.1} parent=11 // pred_check
        %p305 = pneg %p211
      $region26: #{double_conv_forward.1} parent=11 // pred_check_branch
        %307 = sbr.rel (%p305) target = $region28
      $region27: #{double_conv_forward.1} parent=11 // pred_region
        _
      $region28: #{double_conv_forward.1} parent=11 // pred_fallthru
        _
      // Predicated region
      $region29: #{double_conv_forward.1} parent=11 // pred_check
        %p308 = pneg %p232
      $region30: #{double_conv_forward.1} parent=11 // pred_check_branch
        %310 = sbr.rel (%p308) target = $region32
      $region31: #{double_conv_forward.1} parent=11 // pred_region
        _
      $region32: #{double_conv_forward.1} parent=11 // pred_fallthru
        _
      // Predicated region
      $region33: #{double_conv_forward.1} parent=11 // pred_check
        %p311 = pneg %p253
      $region34: #{double_conv_forward.1} parent=11 // pred_check_branch
        %313 = sbr.rel (%p311) target = $region36
      $region35: #{double_conv_forward.1} parent=11 // pred_region
        _
      $region36: #{double_conv_forward.1} parent=11 // pred_fallthru
        _
    $region12: #{double_conv_forward.1} parent=5 // pred_fallthru
      _
    %p314 = scmp.lt.s32.totalorder %s15, 4
    // Predicated region
    $region37: #{double_conv_forward.1} parent=5 // pred_check
      %p315 = pneg %p314
    $region38: #{double_conv_forward.1} parent=5 // pred_check_branch
      %317 = sbr.rel (%p315) target = $region40
    $region39: #{double_conv_forward.1} parent=5 // pred_region
      // Predicated region
      $region41: #{double_conv_forward.1} parent=39 // pred_check
        %p318 = pneg %p49
      $region42: #{double_conv_forward.1} parent=39 // pred_check_branch
        %320 = sbr.rel (%p318) target = $region44
      $region43: #{double_conv_forward.1} parent=39 // pred_region
        %s321 = smul.u32 8, %s23
        %p322 = scmp.lt.s32.totalorder %s22, 1
        %s323 = scalar_select %p322, %s22, 1
        %p324 = scmp.lt.s32.totalorder %s321, 15
        %s325 = scalar_select %p324, %s321, 15
        %s326 = smul.addr %s325, 2
        %s327 = smul.addr %s323, 32
        %s328 = sadd.s32 %s326, %s327
        %s329 = smul.addr %s328, 8
        %s330 = scalar_lea.vmem %s0, %s329
        %s331 = smul.u32 8, %s23
      $region44: #{double_conv_forward.1} parent=39 // pred_fallthru
        _
      // Predicated region
      $region45: #{double_conv_forward.1} parent=39 // pred_check
        %p332 = pneg %p85
      $region46: #{double_conv_forward.1} parent=39 // pred_check_branch
        %334 = sbr.rel (%p332) target = $region48
      $region47: #{double_conv_forward.1} parent=39 // pred_region
        %s335 = smul.u32 %s23, 4
        %s336 = ssub.s32 %s335, 1
        %p337 = scmp.gt.s32.totalorder %s336, 0
        %s338 = scalar_select %p337, %s336, 0
        %s339 = smul.u32 2, %s338
        %p340 = scmp.lt.s32.totalorder %s22, 1
        %s341 = scalar_select %p340, %s22, 1
        %p342 = scmp.lt.s32.totalorder %s339, 15
        %s343 = scalar_select %p342, %s339, 15
        %s344 = smul.addr %s343, 2
        %s345 = smul.addr %s341, 32
        %s346 = sadd.s32 %s344, %s345
        %s347 = smul.addr %s346, 8
        %s348 = scalar_lea.vmem %s1, %s347
        %s349 = smul.u32 %s23, 4
        %s350 = ssub.s32 %s349, 1
        %p351 = scmp.gt.s32.totalorder %s350, 0
        %s352 = scalar_select %p351, %s350, 0
        %s353 = smul.u32 2, %s352
      $region48: #{double_conv_forward.1} parent=39 // pred_fallthru
        _
      // Predicated region
      $region49: #{double_conv_forward.1} parent=39 // pred_check
        %p354 = pneg %p121
      $region50: #{double_conv_forward.1} parent=39 // pred_check_branch
        %356 = sbr.rel (%p354) target = $region52
      $region51: #{double_conv_forward.1} parent=39 // pred_region
        %s357 = sadd.s32 %s23, 1
        %s358 = smul.u32 %s357, 4
        %p359 = scmp.lt.s32.totalorder %s358, 7
        %s360 = scalar_select %p359, %s358, 7
        %s361 = smul.u32 2, %s360
        %p362 = scmp.lt.s32.totalorder %s22, 1
        %s363 = scalar_select %p362, %s22, 1
        %p364 = scmp.lt.s32.totalorder %s361, 15
        %s365 = scalar_select %p364, %s361, 15
        %s366 = smul.addr %s365, 2
        %s367 = smul.addr %s363, 32
        %s368 = sadd.s32 %s366, %s367
        %s369 = smul.addr %s368, 8
        %s370 = scalar_lea.vmem %s2, %s369
        %s371 = sadd.s32 %s23, 1
        %s372 = smul.u32 %s371, 4
        %p373 = scmp.lt.s32.totalorder %s372, 7
        %s374 = scalar_select %p373, %s372, 7
        %s375 = smul.u32 2, %s374
      $region52: #{double_conv_forward.1} parent=39 // pred_fallthru
        _
    $region40: #{double_conv_forward.1} parent=5 // pred_fallthru
      _
    %p376 = scmp.le.s32.totalorder 1, %s15
    %p377 = scmp.lt.s32.totalorder %s15, 5
    %p378 = pnand %p376, %p377
    %p379 = pneg %p378
    // Predicated region
    $region53: #{double_conv_forward.1} parent=5 // pred_check
      _
    $region54: #{double_conv_forward.1} parent=5 // pred_check_branch
      %381 = sbr.rel (%p378) target = $region56
    $region55: #{double_conv_forward.1} parent=5 // pred_region
      %s382 = ssub.s32 %s15, 1
      %s383 = smul.u32 8, %s25
      %p384 = scmp.lt.s32.totalorder %s24, 1
      %s385 = scalar_select %p384, %s24, 1
      %p386 = scmp.lt.s32.totalorder %s383, 15
      %s387 = scalar_select %p386, %s383, 15
      %s388 = smul.addr %s387, 2
      %s389 = smul.addr %s385, 32
      %s390 = sadd.s32 %s388, %s389
      %s391 = smul.addr %s390, 8
      %s392 = scalar_lea.vmem %s0, %s391
      %p393 = pneg %p55
      %p394 = pneg %p52
      %s395 = smul.u32 %s25, 4
      %s396 = ssub.s32 %s395, 1
      %p397 = scmp.gt.s32.totalorder %s396, 0
      %s398 = scalar_select %p397, %s396, 0
      %s399 = smul.u32 2, %s398
      %p400 = scmp.lt.s32.totalorder %s24, 1
      %s401 = scalar_select %p400, %s24, 1
      %p402 = scmp.lt.s32.totalorder %s399, 15
      %s403 = scalar_select %p402, %s399, 15
      %s404 = smul.addr %s403, 2
      %s405 = smul.addr %s401, 32
      %s406 = sadd.s32 %s404, %s405
      %s407 = smul.addr %s406, 8
      %s408 = scalar_lea.vmem %s1, %s407
      %p409 = pneg %p91
      %p410 = pneg %p88
      %s411 = sadd.s32 %s25, 1
      %s412 = smul.u32 %s411, 4
      %p413 = scmp.lt.s32.totalorder %s412, 7
      %s414 = scalar_select %p413, %s412, 7
      %s415 = smul.u32 2, %s414
      %p416 = scmp.lt.s32.totalorder %s24, 1
      %s417 = scalar_select %p416, %s24, 1
      %p418 = scmp.lt.s32.totalorder %s415, 15
      %s419 = scalar_select %p418, %s415, 15
      %s420 = smul.addr %s419, 2
      %s421 = smul.addr %s417, 32
      %s422 = sadd.s32 %s420, %s421
      %s423 = smul.addr %s422, 8
      %s424 = scalar_lea.vmem %s2, %s423
      %p425 = pneg %p127
      %p426 = pneg %p124
      %p427 = pneg %p148
      %p428 = pneg %p145
      %p429 = pneg %p169
      %p430 = pneg %p166
      %p431 = pneg %p190
      %p432 = pneg %p187
      %p433 = pneg %p211
      %p434 = pneg %p208
      %p435 = pneg %p232
      %p436 = pneg %p229
      %p437 = pneg %p253
      %p438 = pneg %p250
      %p439 = pneg %p281
      %p440 = pneg %p278
      %s441 = smul.u32 8, %s25
      %p442 = scmp.lt.s32.totalorder %s24, 1
      %s443 = scalar_select %p442, %s24, 1
      %p444 = scmp.lt.s32.totalorder %s441, 15
      %s445 = scalar_select %p444, %s441, 15
      %s446 = smul.addr %s445, 2
      %s447 = smul.addr %s443, 32
      %s448 = sadd.s32 %s446, %s447
      %s449 = smul.addr %s448, 8
      %s450 = scalar_lea.vmem %s9, %s449
      %s451 = smul.u32 8, %s25
      %p452 = scmp.lt.s32.totalorder %s24, 1
      %s453 = scalar_select %p452, %s24, 1
      %p454 = scmp.lt.s32.totalorder %s451, 15
      %s455 = scalar_select %p454, %s451, 15
      %s456 = smul.addr %s455, 2
      %s457 = smul.addr %s453, 32
      %s458 = sadd.s32 %s456, %s457
      %s459 = smul.addr %s458, 8
      %s460 = scalar_lea.vmem %s0, %s459
      %s461 = smul.u32 8, %s25
      %s462 = smul.u32 %s25, 4
      %s463 = ssub.s32 %s462, 1
      %p464 = scmp.gt.s32.totalorder %s463, 0
      %s465 = scalar_select %p464, %s463, 0
      %s466 = smul.u32 2, %s465
      %p467 = scmp.lt.s32.totalorder %s24, 1
      %s468 = scalar_select %p467, %s24, 1
      %p469 = scmp.lt.s32.totalorder %s466, 15
      %s470 = scalar_select %p469, %s466, 15
      %s471 = smul.addr %s470, 2
      %s472 = smul.addr %s468, 32
      %s473 = sadd.s32 %s471, %s472
      %s474 = smul.addr %s473, 8
      %s475 = scalar_lea.vmem %s1, %s474
      %s476 = smul.u32 %s25, 4
      %s477 = ssub.s32 %s476, 1
      %p478 = scmp.gt.s32.totalorder %s477, 0
      %s479 = scalar_select %p478, %s477, 0
      %s480 = smul.u32 2, %s479
      %s481 = sadd.s32 %s25, 1
      %s482 = smul.u32 %s481, 4
      %p483 = scmp.lt.s32.totalorder %s482, 7
      %s484 = scalar_select %p483, %s482, 7
      %s485 = smul.u32 2, %s484
      %p486 = scmp.lt.s32.totalorder %s24, 1
      %s487 = scalar_select %p486, %s24, 1
      %p488 = scmp.lt.s32.totalorder %s485, 15
      %s489 = scalar_select %p488, %s485, 15
      %s490 = smul.addr %s489, 2
      %s491 = smul.addr %s487, 32
      %s492 = sadd.s32 %s490, %s491
      %s493 = smul.addr %s492, 8
      %s494 = scalar_lea.vmem %s2, %s493
      %s495 = sadd.s32 %s25, 1
      %s496 = smul.u32 %s495, 4
      %p497 = scmp.lt.s32.totalorder %s496, 7
      %s498 = scalar_select %p497, %s496, 7
      %s499 = smul.u32 2, %s498
      %s500 = smul.u32 8, %s25
      %p501 = scmp.lt.s32.totalorder %s24, 1
      %s502 = scalar_select %p501, %s24, 1
      %p503 = scmp.lt.s32.totalorder %s500, 15
      %s504 = scalar_select %p503, %s500, 15
      %s505 = smul.addr %s504, 2
      %s506 = smul.addr %s502, 32
      %s507 = sadd.s32 %s505, %s506
      %s508 = smul.addr %s507, 8
      %s509 = scalar_lea.vmem %s9, %s508
      %s510 = smul.u32 8, %s25
      %p512 = scmp.eq.s32.totalorder %s25, 0
      %p513 = scmp.eq.s32.totalorder %s25, 1
      %v514 = vld [vmem:[%s460] sm:$0xff]
      %v515 = vld [vmem:[%s460 + $0x8] sm:$0xff]
      %v516 = vld [vmem:[%s460 + $0x10] sm:$0xff]
      %v517 = vld [vmem:[%s460 + $0x18] sm:$0xff]
      %v518 = vld [vmem:[%s460 + $0x20] sm:$0xff]
      %v519 = vld [vmem:[%s460 + $0x28] sm:$0xff]
      %v520 = vld [vmem:[%s460 + $0x30] sm:$0xff]
      %v521 = vld [vmem:[%s460 + $0x38] sm:$0xff]
      %v522 = vld [vmem:[%s460 + $0x40] sm:$0xff]
      %v523 = vld [vmem:[%s460 + $0x48] sm:$0xff]
      %v524 = vld [vmem:[%s460 + $0x50] sm:$0xff]
      %v525 = vld [vmem:[%s460 + $0x58] sm:$0xff]
      %v526 = vld [vmem:[%s460 + $0x60] sm:$0xff]
      %v527 = vld [vmem:[%s460 + $0x68] sm:$0xff]
      %v528 = vld [vmem:[%s460 + $0x70] sm:$0xff]
      %v529 = vld [vmem:[%s460 + $0x78] sm:$0xff]
      %v530 = vpack.c.bf16 %v515, %v514
      %v531 = vpack.c.bf16 %v517, %v516
      %v532 = vpack.c.bf16 %v519, %v518
      %v533 = vpack.c.bf16 %v521, %v520
      %v534 = vpack.c.bf16 %v523, %v522
      %v535 = vpack.c.bf16 %v525, %v524
      %v536 = vpack.c.bf16 %v527, %v526
      %v537 = vpack.c.bf16 %v529, %v528
      %v538 = vld [vmem:[%s475] sm:$0xff]
      %v539 = vld [vmem:[%s475 + $0x8] sm:$0xff]
      %v540 = vld [vmem:[%s475 + $0x10] sm:$0xff]
      %v541 = vld [vmem:[%s475 + $0x18] sm:$0xff]
      %s542 = scalar_select %p512, 1, 0
      %v543 = vstv %s542
      %vm544 = vcmp.eq.s32.totalorder %v543, 1
      %v545 = vsel %vm544, 0.0, %v538
      %v546 = vsel %vm544, 0.0, %v539
      %v547 = vsel %vm544, 0.0, %v540
      %v548 = vsel %vm544, 0.0, %v541
      %v549 = vpack.c.bf16 %v546, %v545
      %v550 = vpack.c.bf16 %v548, %v547
      %v551 = vld [vmem:[%s494] sm:$0xff]
      %v552 = vld [vmem:[%s494 + $0x8] sm:$0xff]
      %v553 = vld [vmem:[%s494 + $0x10] sm:$0xff]
      %v554 = vld [vmem:[%s494 + $0x18] sm:$0xff]
      %s555 = scalar_select %p513, 1, 0
      %v556 = vstv %s555
      %vm557 = vcmp.eq.s32.totalorder %v556, 1
      %v558 = vsel %vm557, 0.0, %v551
      %v559 = vsel %vm557, 0.0, %v552
      %v560 = vsel %vm557, 0.0, %v553
      %v561 = vsel %vm557, 0.0, %v554
      %v562 = vpack.c.bf16 %v559, %v558
      %v563 = vpack.c.bf16 %v561, %v560
      %v566 = vunpack.c.l.b16 %v549
      %v567 = vunpack.c.h.b16 %v549
      %v568 = vunpack.c.l.b16 %v550
      %v569 = vunpack.c.h.b16 %v550
      %v570 = vpack.c.b16 %v566, %v566
      %v571 = vpack.c.b16 %v567, %v567
      %v572 = vpack.c.b16 %v568, %v568
      %v573 = vpack.c.b16 %v569, %v569
      %574 = vrot.lane.b32.xlu0 %v570, 4
      %v575 = vpop.permute.xlu0 %574
      %576 = vrot.lane.b32.xlu0 %v571, 4
      %v577 = vpop.permute.xlu0 %576
      %578 = vrot.lane.b32.xlu0 %v572, 4
      %v579 = vpop.permute.xlu0 %578
      %580 = vrot.lane.b32.xlu0 %v573, 4
      %v581 = vpop.permute.xlu0 %580
      %vm586 = vcmask 60448
      %587 = vst.msk [vmem:[#allocation2] sm:$0xf] %vm586, %v575
      %588 = vst.msk [vmem:[#allocation2 + $0x4] sm:$0xf] %vm586, %v577
      %589 = vst.msk [vmem:[#allocation2 + $0x8] sm:$0xf] %vm586, %v579
      %590 = vst.msk [vmem:[#allocation2 + $0xc] sm:$0xf] %vm586, %v581
      %v599 = vunpack.c.l.b16 %v530
      %v600 = vunpack.c.h.b16 %v530
      %v601 = vunpack.c.l.b16 %v531
      %v602 = vunpack.c.h.b16 %v531
      %v603 = vunpack.c.l.b16 %v532
      %v604 = vunpack.c.h.b16 %v532
      %v605 = vunpack.c.l.b16 %v533
      %v606 = vunpack.c.h.b16 %v533
      %v607 = vunpack.c.l.b16 %v534
      %v608 = vunpack.c.h.b16 %v534
      %v609 = vunpack.c.l.b16 %v535
      %v610 = vunpack.c.h.b16 %v535
      %v611 = vunpack.c.l.b16 %v536
      %v612 = vunpack.c.h.b16 %v536
      %v613 = vunpack.c.l.b16 %v537
      %v614 = vunpack.c.h.b16 %v537
      %v615 = vpack.c.b16 %v599, %v599
      %v616 = vpack.c.b16 %v600, %v600
      %v617 = vpack.c.b16 %v601, %v601
      %v618 = vpack.c.b16 %v602, %v602
      %v619 = vpack.c.b16 %v603, %v603
      %v620 = vpack.c.b16 %v604, %v604
      %v621 = vpack.c.b16 %v605, %v605
      %v622 = vpack.c.b16 %v606, %v606
      %v623 = vpack.c.b16 %v607, %v607
      %v624 = vpack.c.b16 %v608, %v608
      %v625 = vpack.c.b16 %v609, %v609
      %v626 = vpack.c.b16 %v610, %v610
      %v627 = vpack.c.b16 %v611, %v611
      %v628 = vpack.c.b16 %v612, %v612
      %v629 = vpack.c.b16 %v613, %v613
      %v630 = vpack.c.b16 %v614, %v614
      %631 = vrot.lane.b32.xlu0 %v615, 4
      %v632 = vpop.permute.xlu0 %631
      %633 = vrot.lane.b32.xlu0 %v616, 4
      %v634 = vpop.permute.xlu0 %633
      %635 = vrot.lane.b32.xlu0 %v617, 4
      %v636 = vpop.permute.xlu0 %635
      %637 = vrot.lane.b32.xlu0 %v618, 4
      %v638 = vpop.permute.xlu0 %637
      %639 = vrot.lane.b32.xlu0 %v619, 4
      %v640 = vpop.permute.xlu0 %639
      %641 = vrot.lane.b32.xlu0 %v620, 4
      %v642 = vpop.permute.xlu0 %641
      %643 = vrot.lane.b32.xlu0 %v621, 4
      %v644 = vpop.permute.xlu0 %643
      %645 = vrot.lane.b32.xlu0 %v622, 4
      %v646 = vpop.permute.xlu0 %645
      %647 = vrot.lane.b32.xlu0 %v623, 4
      %v648 = vpop.permute.xlu0 %647
      %649 = vrot.lane.b32.xlu0 %v624, 4
      %v650 = vpop.permute.xlu0 %649
      %651 = vrot.lane.b32.xlu0 %v625, 4
      %v652 = vpop.permute.xlu0 %651
      %653 = vrot.lane.b32.xlu0 %v626, 4
      %v654 = vpop.permute.xlu0 %653
      %655 = vrot.lane.b32.xlu0 %v627, 4
      %v656 = vpop.permute.xlu0 %655
      %657 = vrot.lane.b32.xlu0 %v628, 4
      %v658 = vpop.permute.xlu0 %657
      %659 = vrot.lane.b32.xlu0 %v629, 4
      %v660 = vpop.permute.xlu0 %659
      %661 = vrot.lane.b32.xlu0 %v630, 4
      %v662 = vpop.permute.xlu0 %661
      %s679 = scalar_lea.vmem [#allocation2], 16
      %680 = vst.msk [vmem:[%s679] sm:$0xf] %vm586, %v632
      %681 = vst.msk [vmem:[%s679 + $0x4] sm:$0xf] %vm586, %v634
      %682 = vst.msk [vmem:[%s679 + $0x8] sm:$0xf] %vm586, %v636
      %683 = vst.msk [vmem:[%s679 + $0xc] sm:$0xf] %vm586, %v638
      %684 = vst.msk [vmem:[%s679 + $0x10] sm:$0xf] %vm586, %v640
      %685 = vst.msk [vmem:[%s679 + $0x14] sm:$0xf] %vm586, %v642
      %686 = vst.msk [vmem:[%s679 + $0x18] sm:$0xf] %vm586, %v644
      %687 = vst.msk [vmem:[%s679 + $0x1c] sm:$0xf] %vm586, %v646
      %688 = vst.msk [vmem:[%s679 + $0x20] sm:$0xf] %vm586, %v648
      %689 = vst.msk [vmem:[%s679 + $0x24] sm:$0xf] %vm586, %v650
      %690 = vst.msk [vmem:[%s679 + $0x28] sm:$0xf] %vm586, %v652
      %691 = vst.msk [vmem:[%s679 + $0x2c] sm:$0xf] %vm586, %v654
      %692 = vst.msk [vmem:[%s679 + $0x30] sm:$0xf] %vm586, %v656
      %693 = vst.msk [vmem:[%s679 + $0x34] sm:$0xf] %vm586, %v658
      %694 = vst.msk [vmem:[%s679 + $0x38] sm:$0xf] %vm586, %v660
      %695 = vst.msk [vmem:[%s679 + $0x3c] sm:$0xf] %vm586, %v662
      %v698 = vunpack.c.l.b16 %v562
      %v699 = vunpack.c.h.b16 %v562
      %v700 = vunpack.c.l.b16 %v563
      %v701 = vunpack.c.h.b16 %v563
      %v702 = vpack.c.b16 %v698, %v698
      %v703 = vpack.c.b16 %v699, %v699
      %v704 = vpack.c.b16 %v700, %v700
      %v705 = vpack.c.b16 %v701, %v701
      %706 = vrot.lane.b32.xlu0 %v702, 4
      %v707 = vpop.permute.xlu0 %706
      %708 = vrot.lane.b32.xlu0 %v703, 4
      %v709 = vpop.permute.xlu0 %708
      %710 = vrot.lane.b32.xlu0 %v704, 4
      %v711 = vpop.permute.xlu0 %710
      %712 = vrot.lane.b32.xlu0 %v705, 4
      %v713 = vpop.permute.xlu0 %712
      %s718 = scalar_lea.vmem [#allocation2], 80
      %719 = vst.msk [vmem:[%s718] sm:$0xf] %vm586, %v707
      %720 = vst.msk [vmem:[%s718 + $0x4] sm:$0xf] %vm586, %v709
      %721 = vst.msk [vmem:[%s718 + $0x8] sm:$0xf] %vm586, %v711
      %722 = vst.msk [vmem:[%s718 + $0xc] sm:$0xf] %vm586, %v713
      %v723 = vld [vmem:[#allocation2] sm:$0xf]
      %v724 = vld [vmem:[#allocation2 + $0x4] sm:$0xf]
      %v725 = vld [vmem:[#allocation2 + $0x8] sm:$0xf]
      %v726 = vld [vmem:[#allocation2 + $0xc] sm:$0xf]
      %v727 = vld [vmem:[#allocation2 + $0x10] sm:$0xf]
      %v728 = vld [vmem:[#allocation2 + $0x14] sm:$0xf]
      %v729 = vld [vmem:[#allocation2 + $0x18] sm:$0xf]
      %v730 = vld [vmem:[#allocation2 + $0x1c] sm:$0xf]
      %v731 = vld [vmem:[#allocation2 + $0x20] sm:$0xf]
      %v732 = vld [vmem:[#allocation2 + $0x24] sm:$0xf]
      %v733 = vld [vmem:[#allocation2 + $0x28] sm:$0xf]
      %v734 = vld [vmem:[#allocation2 + $0x2c] sm:$0xf]
      %v735 = vld [vmem:[#allocation2 + $0x30] sm:$0xf]
      %v736 = vld [vmem:[#allocation2 + $0x34] sm:$0xf]
      %v737 = vld [vmem:[#allocation2 + $0x38] sm:$0xf]
      %v738 = vld [vmem:[#allocation2 + $0x3c] sm:$0xf]
      %v739 = vld [vmem:[#allocation2 + $0x40] sm:$0xf]
      %v740 = vld [vmem:[#allocation2 + $0x44] sm:$0xf]
      %v741 = vld [vmem:[#allocation2 + $0x48] sm:$0xf]
      %v742 = vld [vmem:[#allocation2 + $0x4c] sm:$0xf]
      %v743 = vld [vmem:[#allocation2 + $0x50] sm:$0xf]
      %v744 = vld [vmem:[#allocation2 + $0x54] sm:$0xf]
      %v745 = vld [vmem:[#allocation2 + $0x58] sm:$0xf]
      %v746 = vld [vmem:[#allocation2 + $0x5c] sm:$0xf]
      %vm747 = vsmask.f32 256
      %vm748 = vsmask.f32 4368
      %vm749 = vmor %vm747, %vm748
      %v751 = vshrl.u32 %v723, 16
      %v753 = vrot.slane %v751, 7
      %v754 = vshll.u32 %v723, 16
      %v756 = vor.u32 %v753, %v754
      %v757 = vrot.slane %v753, 4
      %v759 = vshrl.u32 %v724, 16
      %v761 = vrot.slane %v759, 7
      %v762 = vshll.u32 %v724, 16
      %v764 = vor.u32 %v761, %v762
      %v765 = vsel %vm749, %v757, %v764
      %v767 = vshrl.u32 %v725, 16
      %v769 = vrot.slane %v767, 7
      %v770 = vshll.u32 %v725, 16
      %v772 = vor.u32 %v769, %v770
      %v773 = vrot.slane %v769, 4
      %v775 = vshrl.u32 %v726, 16
      %v777 = vrot.slane %v775, 7
      %v778 = vshll.u32 %v726, 16
      %v780 = vor.u32 %v777, %v778
      %v781 = vsel %vm749, %v773, %v780
      %v783 = vshrl.u32 %v727, 16
      %v785 = vrot.slane %v783, 7
      %v786 = vshll.u32 %v727, 16
      %v788 = vor.u32 %v785, %v786
      %v789 = vrot.slane %v785, 4
      %v791 = vshrl.u32 %v728, 16
      %v793 = vrot.slane %v791, 7
      %v794 = vshll.u32 %v728, 16
      %v796 = vor.u32 %v793, %v794
      %v797 = vsel %vm749, %v789, %v796
      %v799 = vshrl.u32 %v729, 16
      %v801 = vrot.slane %v799, 7
      %v802 = vshll.u32 %v729, 16
      %v804 = vor.u32 %v801, %v802
      %v805 = vrot.slane %v801, 4
      %v807 = vshrl.u32 %v730, 16
      %v809 = vrot.slane %v807, 7
      %v810 = vshll.u32 %v730, 16
      %v812 = vor.u32 %v809, %v810
      %v813 = vsel %vm749, %v805, %v812
      %v815 = vshrl.u32 %v731, 16
      %v817 = vrot.slane %v815, 7
      %v818 = vshll.u32 %v731, 16
      %v820 = vor.u32 %v817, %v818
      %v821 = vrot.slane %v817, 4
      %v823 = vshrl.u32 %v732, 16
      %v825 = vrot.slane %v823, 7
      %v826 = vshll.u32 %v732, 16
      %v828 = vor.u32 %v825, %v826
      %v829 = vsel %vm749, %v821, %v828
      %v831 = vshrl.u32 %v733, 16
      %v833 = vrot.slane %v831, 7
      %v834 = vshll.u32 %v733, 16
      %v836 = vor.u32 %v833, %v834
      %v837 = vrot.slane %v833, 4
      %v839 = vshrl.u32 %v734, 16
      %v841 = vrot.slane %v839, 7
      %v842 = vshll.u32 %v734, 16
      %v844 = vor.u32 %v841, %v842
      %v845 = vsel %vm749, %v837, %v844
      %v847 = vshrl.u32 %v735, 16
      %v849 = vrot.slane %v847, 7
      %v850 = vshll.u32 %v735, 16
      %v852 = vor.u32 %v849, %v850
      %v853 = vrot.slane %v849, 4
      %v855 = vshrl.u32 %v736, 16
      %v857 = vrot.slane %v855, 7
      %v858 = vshll.u32 %v736, 16
      %v860 = vor.u32 %v857, %v858
      %v861 = vsel %vm749, %v853, %v860
      %v863 = vshrl.u32 %v737, 16
      %v865 = vrot.slane %v863, 7
      %v866 = vshll.u32 %v737, 16
      %v868 = vor.u32 %v865, %v866
      %v869 = vrot.slane %v865, 4
      %v871 = vshrl.u32 %v738, 16
      %v873 = vrot.slane %v871, 7
      %v874 = vshll.u32 %v738, 16
      %v876 = vor.u32 %v873, %v874
      %v877 = vsel %vm749, %v869, %v876
      %v879 = vshrl.u32 %v739, 16
      %v881 = vrot.slane %v879, 7
      %v882 = vshll.u32 %v739, 16
      %v884 = vor.u32 %v881, %v882
      %v885 = vrot.slane %v881, 4
      %v887 = vshrl.u32 %v740, 16
      %v889 = vrot.slane %v887, 7
      %v890 = vshll.u32 %v740, 16
      %v892 = vor.u32 %v889, %v890
      %v893 = vsel %vm749, %v885, %v892
      %v895 = vshrl.u32 %v741, 16
      %v897 = vrot.slane %v895, 7
      %v898 = vshll.u32 %v741, 16
      %v900 = vor.u32 %v897, %v898
      %v901 = vrot.slane %v897, 4
      %v903 = vshrl.u32 %v742, 16
      %v905 = vrot.slane %v903, 7
      %v906 = vshll.u32 %v742, 16
      %v908 = vor.u32 %v905, %v906
      %v909 = vsel %vm749, %v901, %v908
      %v911 = vshrl.u32 %v743, 16
      %v913 = vrot.slane %v911, 7
      %v914 = vshll.u32 %v743, 16
      %v916 = vor.u32 %v913, %v914
      %v917 = vrot.slane %v913, 4
      %v919 = vshrl.u32 %v744, 16
      %v921 = vrot.slane %v919, 7
      %v922 = vshll.u32 %v744, 16
      %v924 = vor.u32 %v921, %v922
      %v925 = vsel %vm749, %v917, %v924
      %v927 = vshrl.u32 %v745, 16
      %v929 = vrot.slane %v927, 7
      %v930 = vshll.u32 %v745, 16
      %v932 = vor.u32 %v929, %v930
      %v933 = vrot.slane %v929, 4
      %v935 = vshrl.u32 %v746, 16
      %v937 = vrot.slane %v935, 7
      %v938 = vshll.u32 %v746, 16
      %v940 = vor.u32 %v937, %v938
      %v941 = vsel %vm749, %v933, %v940
      %942 = vrot.lane.b32.xlu0 %v756, 124
      %v943 = vpop.permute.xlu0 %942
      %944 = vrot.lane.b32.xlu0 %v765, 124
      %v945 = vpop.permute.xlu0 %944
      %946 = vrot.lane.b32.xlu0 %v772, 124
      %v947 = vpop.permute.xlu0 %946
      %948 = vrot.lane.b32.xlu0 %v781, 124
      %v949 = vpop.permute.xlu0 %948
      %950 = vrot.lane.b32.xlu0 %v788, 124
      %v951 = vpop.permute.xlu0 %950
      %952 = vrot.lane.b32.xlu0 %v797, 124
      %v953 = vpop.permute.xlu0 %952
      %954 = vrot.lane.b32.xlu0 %v804, 124
      %v955 = vpop.permute.xlu0 %954
      %956 = vrot.lane.b32.xlu0 %v813, 124
      %v957 = vpop.permute.xlu0 %956
      %958 = vrot.lane.b32.xlu0 %v820, 124
      %v959 = vpop.permute.xlu0 %958
      %960 = vrot.lane.b32.xlu0 %v829, 124
      %v961 = vpop.permute.xlu0 %960
      %962 = vrot.lane.b32.xlu0 %v836, 124
      %v963 = vpop.permute.xlu0 %962
      %964 = vrot.lane.b32.xlu0 %v845, 124
      %v965 = vpop.permute.xlu0 %964
      %966 = vrot.lane.b32.xlu0 %v852, 124
      %v967 = vpop.permute.xlu0 %966
      %968 = vrot.lane.b32.xlu0 %v861, 124
      %v969 = vpop.permute.xlu0 %968
      %970 = vrot.lane.b32.xlu0 %v868, 124
      %v971 = vpop.permute.xlu0 %970
      %972 = vrot.lane.b32.xlu0 %v877, 124
      %v973 = vpop.permute.xlu0 %972
      %974 = vrot.lane.b32.xlu0 %v884, 124
      %v975 = vpop.permute.xlu0 %974
      %976 = vrot.lane.b32.xlu0 %v893, 124
      %v977 = vpop.permute.xlu0 %976
      %978 = vrot.lane.b32.xlu0 %v900, 124
      %v979 = vpop.permute.xlu0 %978
      %980 = vrot.lane.b32.xlu0 %v909, 124
      %v981 = vpop.permute.xlu0 %980
      %982 = vrot.lane.b32.xlu0 %v916, 124
      %v983 = vpop.permute.xlu0 %982
      %984 = vrot.lane.b32.xlu0 %v925, 124
      %v985 = vpop.permute.xlu0 %984
      %986 = vrot.lane.b32.xlu0 %v932, 124
      %v987 = vpop.permute.xlu0 %986
      %988 = vrot.lane.b32.xlu0 %v941, 124
      %v989 = vpop.permute.xlu0 %988
      %vm1014 = vcmask 27648
      %vm1015 = vsmask.f32 7938
      %vm1016 = vmand %vm1014, %vm1015
      %v1017 = vsel %vm1016, %v943, %v723
      %1018 = vst [vmem:[#allocation2] sm:$0xf] %v1017
      %vm1019 = vcmask 27648
      %1020 = vst.msk [vmem:[#allocation2 + $0x4] sm:$0xf] %vm1019, %v945
      %v1021 = vld [vmem:[#allocation2 + $0x8] sm:$0xf]
      %v1022 = vsel %vm1016, %v947, %v1021
      %1023 = vst [vmem:[#allocation2 + $0x8] sm:$0xf] %v1022
      %1024 = vst.msk [vmem:[#allocation2 + $0xc] sm:$0xf] %vm1019, %v949
      %v1025 = vld [vmem:[#allocation2 + $0x10] sm:$0xf]
      %v1026 = vsel %vm1016, %v951, %v1025
      %1027 = vst [vmem:[#allocation2 + $0x10] sm:$0xf] %v1026
      %1028 = vst.msk [vmem:[#allocation2 + $0x14] sm:$0xf] %vm1019, %v953
      %v1029 = vld [vmem:[#allocation2 + $0x18] sm:$0xf]
      %v1030 = vsel %vm1016, %v955, %v1029
      %1031 = vst [vmem:[#allocation2 + $0x18] sm:$0xf] %v1030
      %1032 = vst.msk [vmem:[#allocation2 + $0x1c] sm:$0xf] %vm1019, %v957
      %v1033 = vld [vmem:[#allocation2 + $0x20] sm:$0xf]
      %v1034 = vsel %vm1016, %v959, %v1033
      %1035 = vst [vmem:[#allocation2 + $0x20] sm:$0xf] %v1034
      %1036 = vst.msk [vmem:[#allocation2 + $0x24] sm:$0xf] %vm1019, %v961
      %v1037 = vld [vmem:[#allocation2 + $0x28] sm:$0xf]
      %v1038 = vsel %vm1016, %v963, %v1037
      %1039 = vst [vmem:[#allocation2 + $0x28] sm:$0xf] %v1038
      %1040 = vst.msk [vmem:[#allocation2 + $0x2c] sm:$0xf] %vm1019, %v965
      %v1041 = vld [vmem:[#allocation2 + $0x30] sm:$0xf]
      %v1042 = vsel %vm1016, %v967, %v1041
      %1043 = vst [vmem:[#allocation2 + $0x30] sm:$0xf] %v1042
      %1044 = vst.msk [vmem:[#allocation2 + $0x34] sm:$0xf] %vm1019, %v969
      %v1045 = vld [vmem:[#allocation2 + $0x38] sm:$0xf]
      %v1046 = vsel %vm1016, %v971, %v1045
      %1047 = vst [vmem:[#allocation2 + $0x38] sm:$0xf] %v1046
      %1048 = vst.msk [vmem:[#allocation2 + $0x3c] sm:$0xf] %vm1019, %v973
      %v1049 = vld [vmem:[#allocation2 + $0x40] sm:$0xf]
      %v1050 = vsel %vm1016, %v975, %v1049
      %1051 = vst [vmem:[#allocation2 + $0x40] sm:$0xf] %v1050
      %1052 = vst.msk [vmem:[#allocation2 + $0x44] sm:$0xf] %vm1019, %v977
      %v1053 = vld [vmem:[#allocation2 + $0x48] sm:$0xf]
      %v1054 = vsel %vm1016, %v979, %v1053
      %1055 = vst [vmem:[#allocation2 + $0x48] sm:$0xf] %v1054
      %1056 = vst.msk [vmem:[#allocation2 + $0x4c] sm:$0xf] %vm1019, %v981
      %v1057 = vld [vmem:[#allocation2 + $0x50] sm:$0xf]
      %v1058 = vsel %vm1016, %v983, %v1057
      %1059 = vst [vmem:[#allocation2 + $0x50] sm:$0xf] %v1058
      %1060 = vst.msk [vmem:[#allocation2 + $0x54] sm:$0xf] %vm1019, %v985
      %v1061 = vld [vmem:[#allocation2 + $0x58] sm:$0xf]
      %v1062 = vsel %vm1016, %v987, %v1061
      %1063 = vst [vmem:[#allocation2 + $0x58] sm:$0xf] %v1062
      %1064 = vst.msk [vmem:[#allocation2 + $0x5c] sm:$0xf] %vm1019, %v989
      %vm1065 = vcmask 24576
      %vm1066 = vmand %vm1065, %vm747
      %v1067 = vld [vmem:[#allocation2] sm:$0x1]
      %v1068 = vsel %vm1066, 0, %v1067
      %1069 = vst [vmem:[#allocation2] sm:$0x1] %v1068
      %v1070 = vld [vmem:[#allocation2 + $0x8] sm:$0x1]
      %v1071 = vsel %vm1066, 0, %v1070
      %1072 = vst [vmem:[#allocation2 + $0x8] sm:$0x1] %v1071
      %v1073 = vld [vmem:[#allocation2 + $0x10] sm:$0x1]
      %v1074 = vsel %vm1066, 0, %v1073
      %1075 = vst [vmem:[#allocation2 + $0x10] sm:$0x1] %v1074
      %v1076 = vld [vmem:[#allocation2 + $0x18] sm:$0x1]
      %v1077 = vsel %vm1066, 0, %v1076
      %1078 = vst [vmem:[#allocation2 + $0x18] sm:$0x1] %v1077
      %v1079 = vld [vmem:[#allocation2 + $0x20] sm:$0x1]
      %v1080 = vsel %vm1066, 0, %v1079
      %1081 = vst [vmem:[#allocation2 + $0x20] sm:$0x1] %v1080
      %v1082 = vld [vmem:[#allocation2 + $0x28] sm:$0x1]
      %v1083 = vsel %vm1066, 0, %v1082
      %1084 = vst [vmem:[#allocation2 + $0x28] sm:$0x1] %v1083
      %v1085 = vld [vmem:[#allocation2 + $0x30] sm:$0x1]
      %v1086 = vsel %vm1066, 0, %v1085
      %1087 = vst [vmem:[#allocation2 + $0x30] sm:$0x1] %v1086
      %v1088 = vld [vmem:[#allocation2 + $0x38] sm:$0x1]
      %v1089 = vsel %vm1066, 0, %v1088
      %1090 = vst [vmem:[#allocation2 + $0x38] sm:$0x1] %v1089
      %v1091 = vld [vmem:[#allocation2 + $0x40] sm:$0x1]
      %v1092 = vsel %vm1066, 0, %v1091
      %1093 = vst [vmem:[#allocation2 + $0x40] sm:$0x1] %v1092
      %v1094 = vld [vmem:[#allocation2 + $0x48] sm:$0x1]
      %v1095 = vsel %vm1066, 0, %v1094
      %1096 = vst [vmem:[#allocation2 + $0x48] sm:$0x1] %v1095
      %v1097 = vld [vmem:[#allocation2 + $0x50] sm:$0x1]
      %v1098 = vsel %vm1066, 0, %v1097
      %1099 = vst [vmem:[#allocation2 + $0x50] sm:$0x1] %v1098
      %v1100 = vld [vmem:[#allocation2 + $0x58] sm:$0x1]
      %v1101 = vsel %vm1066, 0, %v1100
      %1102 = vst [vmem:[#allocation2 + $0x58] sm:$0x1] %v1101
      %vm1103 = vsmask.f32 3328
      %vm1104 = vsmask.f32 7440
      %vm1105 = vmor %vm1103, %vm1104
      %v1106 = vrot.slane %v751, 4
      %v1107 = vrot.slane %v754, 5
      %v1108 = vor.u32 %v1106, %v1107
      %v1109 = vrot.slane %v1108, 4
      %v1110 = vrot.slane %v762, 5
      %v1111 = vsel %vm1105, %v1109, %v1110
      %v1112 = vrot.slane %v759, 4
      %v1113 = vor.u32 %v1112, %v1110
      %v1114 = vrot.slane %v1113, 4
      %v1115 = vrot.slane %v767, 4
      %v1116 = vrot.slane %v770, 5
      %v1117 = vor.u32 %v1115, %v1116
      %v1118 = vrot.slane %v1117, 4
      %v1119 = vrot.slane %v778, 5
      %v1120 = vsel %vm1105, %v1118, %v1119
      %v1121 = vrot.slane %v775, 4
      %v1122 = vor.u32 %v1121, %v1119
      %v1123 = vrot.slane %v1122, 4
      %v1124 = vrot.slane %v783, 4
      %v1125 = vrot.slane %v786, 5
      %v1126 = vor.u32 %v1124, %v1125
      %v1127 = vrot.slane %v1126, 4
      %v1128 = vrot.slane %v794, 5
      %v1129 = vsel %vm1105, %v1127, %v1128
      %v1130 = vrot.slane %v791, 4
      %v1131 = vor.u32 %v1130, %v1128
      %v1132 = vrot.slane %v1131, 4
      %v1133 = vrot.slane %v799, 4
      %v1134 = vrot.slane %v802, 5
      %v1135 = vor.u32 %v1133, %v1134
      %v1136 = vrot.slane %v1135, 4
      %v1137 = vrot.slane %v810, 5
      %v1138 = vsel %vm1105, %v1136, %v1137
      %v1139 = vrot.slane %v807, 4
      %v1140 = vor.u32 %v1139, %v1137
      %v1141 = vrot.slane %v1140, 4
      %v1142 = vrot.slane %v815, 4
      %v1143 = vrot.slane %v818, 5
      %v1144 = vor.u32 %v1142, %v1143
      %v1145 = vrot.slane %v1144, 4
      %v1146 = vrot.slane %v826, 5
      %v1147 = vsel %vm1105, %v1145, %v1146
      %v1148 = vrot.slane %v823, 4
      %v1149 = vor.u32 %v1148, %v1146
      %v1150 = vrot.slane %v1149, 4
      %v1151 = vrot.slane %v831, 4
      %v1152 = vrot.slane %v834, 5
      %v1153 = vor.u32 %v1151, %v1152
      %v1154 = vrot.slane %v1153, 4
      %v1155 = vrot.slane %v842, 5
      %v1156 = vsel %vm1105, %v1154, %v1155
      %v1157 = vrot.slane %v839, 4
      %v1158 = vor.u32 %v1157, %v1155
      %v1159 = vrot.slane %v1158, 4
      %v1160 = vrot.slane %v847, 4
      %v1161 = vrot.slane %v850, 5
      %v1162 = vor.u32 %v1160, %v1161
      %v1163 = vrot.slane %v1162, 4
      %v1164 = vrot.slane %v858, 5
      %v1165 = vsel %vm1105, %v1163, %v1164
      %v1166 = vrot.slane %v855, 4
      %v1167 = vor.u32 %v1166, %v1164
      %v1168 = vrot.slane %v1167, 4
      %v1169 = vrot.slane %v863, 4
      %v1170 = vrot.slane %v866, 5
      %v1171 = vor.u32 %v1169, %v1170
      %v1172 = vrot.slane %v1171, 4
      %v1173 = vrot.slane %v874, 5
      %v1174 = vsel %vm1105, %v1172, %v1173
      %v1175 = vrot.slane %v871, 4
      %v1176 = vor.u32 %v1175, %v1173
      %v1177 = vrot.slane %v1176, 4
      %v1178 = vrot.slane %v879, 4
      %v1179 = vrot.slane %v882, 5
      %v1180 = vor.u32 %v1178, %v1179
      %v1181 = vrot.slane %v1180, 4
      %v1182 = vrot.slane %v890, 5
      %v1183 = vsel %vm1105, %v1181, %v1182
      %v1184 = vrot.slane %v887, 4
      %v1185 = vor.u32 %v1184, %v1182
      %v1186 = vrot.slane %v1185, 4
      %v1187 = vrot.slane %v895, 4
      %v1188 = vrot.slane %v898, 5
      %v1189 = vor.u32 %v1187, %v1188
      %v1190 = vrot.slane %v1189, 4
      %v1191 = vrot.slane %v906, 5
      %v1192 = vsel %vm1105, %v1190, %v1191
      %v1193 = vrot.slane %v903, 4
      %v1194 = vor.u32 %v1193, %v1191
      %v1195 = vrot.slane %v1194, 4
      %v1196 = vrot.slane %v911, 4
      %v1197 = vrot.slane %v914, 5
      %v1198 = vor.u32 %v1196, %v1197
      %v1199 = vrot.slane %v1198, 4
      %v1200 = vrot.slane %v922, 5
      %v1201 = vsel %vm1105, %v1199, %v1200
      %v1202 = vrot.slane %v919, 4
      %v1203 = vor.u32 %v1202, %v1200
      %v1204 = vrot.slane %v1203, 4
      %v1205 = vrot.slane %v927, 4
      %v1206 = vrot.slane %v930, 5
      %v1207 = vor.u32 %v1205, %v1206
      %v1208 = vrot.slane %v1207, 4
      %v1209 = vrot.slane %v938, 5
      %v1210 = vsel %vm1105, %v1208, %v1209
      %v1211 = vrot.slane %v935, 4
      %v1212 = vor.u32 %v1211, %v1209
      %v1213 = vrot.slane %v1212, 4
      %1214 = vrot.lane.b32.xlu0 %v1111, 4
      %v1215 = vpop.permute.xlu0 %1214
      %1216 = vrot.lane.b32.xlu0 %v1114, 4
      %v1217 = vpop.permute.xlu0 %1216
      %1218 = vrot.lane.b32.xlu0 %v1120, 4
      %v1219 = vpop.permute.xlu0 %1218
      %1220 = vrot.lane.b32.xlu0 %v1123, 4
      %v1221 = vpop.permute.xlu0 %1220
      %1222 = vrot.lane.b32.xlu0 %v1129, 4
      %v1223 = vpop.permute.xlu0 %1222
      %1224 = vrot.lane.b32.xlu0 %v1132, 4
      %v1225 = vpop.permute.xlu0 %1224
      %1226 = vrot.lane.b32.xlu0 %v1138, 4
      %v1227 = vpop.permute.xlu0 %1226
      %1228 = vrot.lane.b32.xlu0 %v1141, 4
      %v1229 = vpop.permute.xlu0 %1228
      %1230 = vrot.lane.b32.xlu0 %v1147, 4
      %v1231 = vpop.permute.xlu0 %1230
      %1232 = vrot.lane.b32.xlu0 %v1150, 4
      %v1233 = vpop.permute.xlu0 %1232
      %1234 = vrot.lane.b32.xlu0 %v1156, 4
      %v1235 = vpop.permute.xlu0 %1234
      %1236 = vrot.lane.b32.xlu0 %v1159, 4
      %v1237 = vpop.permute.xlu0 %1236
      %1238 = vrot.lane.b32.xlu0 %v1165, 4
      %v1239 = vpop.permute.xlu0 %1238
      %1240 = vrot.lane.b32.xlu0 %v1168, 4
      %v1241 = vpop.permute.xlu0 %1240
      %1242 = vrot.lane.b32.xlu0 %v1174, 4
      %v1243 = vpop.permute.xlu0 %1242
      %1244 = vrot.lane.b32.xlu0 %v1177, 4
      %v1245 = vpop.permute.xlu0 %1244
      %1246 = vrot.lane.b32.xlu0 %v1183, 4
      %v1247 = vpop.permute.xlu0 %1246
      %1248 = vrot.lane.b32.xlu0 %v1186, 4
      %v1249 = vpop.permute.xlu0 %1248
      %1250 = vrot.lane.b32.xlu0 %v1192, 4
      %v1251 = vpop.permute.xlu0 %1250
      %1252 = vrot.lane.b32.xlu0 %v1195, 4
      %v1253 = vpop.permute.xlu0 %1252
      %1254 = vrot.lane.b32.xlu0 %v1201, 4
      %v1255 = vpop.permute.xlu0 %1254
      %1256 = vrot.lane.b32.xlu0 %v1204, 4
      %v1257 = vpop.permute.xlu0 %1256
      %1258 = vrot.lane.b32.xlu0 %v1210, 4
      %v1259 = vpop.permute.xlu0 %1258
      %1260 = vrot.lane.b32.xlu0 %v1213, 4
      %v1261 = vpop.permute.xlu0 %1260
      %vm1286 = vcmask 93248
      %1287 = vst.msk [vmem:[#allocation2] sm:$0xf] %vm1286, %v1215
      %vm1288 = vcmask 93248
      %vm1289 = vmand %vm1288, %vm1103
      %v1290 = vld [vmem:[#allocation2 + $0x4] sm:$0xf]
      %v1291 = vsel %vm1289, %v1217, %v1290
      %1292 = vst [vmem:[#allocation2 + $0x4] sm:$0xf] %v1291
      %1293 = vst.msk [vmem:[#allocation2 + $0x8] sm:$0xf] %vm1286, %v1219
      %v1294 = vld [vmem:[#allocation2 + $0xc] sm:$0xf]
      %v1295 = vsel %vm1289, %v1221, %v1294
      %1296 = vst [vmem:[#allocation2 + $0xc] sm:$0xf] %v1295
      %1297 = vst.msk [vmem:[#allocation2 + $0x10] sm:$0xf] %vm1286, %v1223
      %v1298 = vld [vmem:[#allocation2 + $0x14] sm:$0xf]
      %v1299 = vsel %vm1289, %v1225, %v1298
      %1300 = vst [vmem:[#allocation2 + $0x14] sm:$0xf] %v1299
      %1301 = vst.msk [vmem:[#allocation2 + $0x18] sm:$0xf] %vm1286, %v1227
      %v1302 = vld [vmem:[#allocation2 + $0x1c] sm:$0xf]
      %v1303 = vsel %vm1289, %v1229, %v1302
      %1304 = vst [vmem:[#allocation2 + $0x1c] sm:$0xf] %v1303
      %1305 = vst.msk [vmem:[#allocation2 + $0x20] sm:$0xf] %vm1286, %v1231
      %v1306 = vld [vmem:[#allocation2 + $0x24] sm:$0xf]
      %v1307 = vsel %vm1289, %v1233, %v1306
      %1308 = vst [vmem:[#allocation2 + $0x24] sm:$0xf] %v1307
      %1309 = vst.msk [vmem:[#allocation2 + $0x28] sm:$0xf] %vm1286, %v1235
      %v1310 = vld [vmem:[#allocation2 + $0x2c] sm:$0xf]
      %v1311 = vsel %vm1289, %v1237, %v1310
      %1312 = vst [vmem:[#allocation2 + $0x2c] sm:$0xf] %v1311
      %1313 = vst.msk [vmem:[#allocation2 + $0x30] sm:$0xf] %vm1286, %v1239
      %v1314 = vld [vmem:[#allocation2 + $0x34] sm:$0xf]
      %v1315 = vsel %vm1289, %v1241, %v1314
      %1316 = vst [vmem:[#allocation2 + $0x34] sm:$0xf] %v1315
      %1317 = vst.msk [vmem:[#allocation2 + $0x38] sm:$0xf] %vm1286, %v1243
      %v1318 = vld [vmem:[#allocation2 + $0x3c] sm:$0xf]
      %v1319 = vsel %vm1289, %v1245, %v1318
      %1320 = vst [vmem:[#allocation2 + $0x3c] sm:$0xf] %v1319
      %1321 = vst.msk [vmem:[#allocation2 + $0x40] sm:$0xf] %vm1286, %v1247
      %v1322 = vld [vmem:[#allocation2 + $0x44] sm:$0xf]
      %v1323 = vsel %vm1289, %v1249, %v1322
      %1324 = vst [vmem:[#allocation2 + $0x44] sm:$0xf] %v1323
      %1325 = vst.msk [vmem:[#allocation2 + $0x48] sm:$0xf] %vm1286, %v1251
      %v1326 = vld [vmem:[#allocation2 + $0x4c] sm:$0xf]
      %v1327 = vsel %vm1289, %v1253, %v1326
      %1328 = vst [vmem:[#allocation2 + $0x4c] sm:$0xf] %v1327
      %1329 = vst.msk [vmem:[#allocation2 + $0x50] sm:$0xf] %vm1286, %v1255
      %v1330 = vld [vmem:[#allocation2 + $0x54] sm:$0xf]
      %v1331 = vsel %vm1289, %v1257, %v1330
      %1332 = vst [vmem:[#allocation2 + $0x54] sm:$0xf] %v1331
      %1333 = vst.msk [vmem:[#allocation2 + $0x58] sm:$0xf] %vm1286, %v1259
      %v1334 = vld [vmem:[#allocation2 + $0x5c] sm:$0xf]
      %v1335 = vsel %vm1289, %v1261, %v1334
      %1336 = vst [vmem:[#allocation2 + $0x5c] sm:$0xf] %v1335
      %vm1337 = vcmask 93251
      %vm1338 = vsmask.f32 7950
      %vm1339 = vmand %vm1337, %vm1338
      %v1340 = vld [vmem:[#allocation2 + $0x4] sm:$0x8]
      %v1341 = vsel %vm1339, 0, %v1340
      %1342 = vst [vmem:[#allocation2 + $0x4] sm:$0x8] %v1341
      %v1343 = vld [vmem:[#allocation2 + $0xc] sm:$0x8]
      %v1344 = vsel %vm1339, 0, %v1343
      %1345 = vst [vmem:[#allocation2 + $0xc] sm:$0x8] %v1344
      %v1346 = vld [vmem:[#allocation2 + $0x14] sm:$0x8]
      %v1347 = vsel %vm1339, 0, %v1346
      %1348 = vst [vmem:[#allocation2 + $0x14] sm:$0x8] %v1347
      %v1349 = vld [vmem:[#allocation2 + $0x1c] sm:$0x8]
      %v1350 = vsel %vm1339, 0, %v1349
      %1351 = vst [vmem:[#allocation2 + $0x1c] sm:$0x8] %v1350
      %v1352 = vld [vmem:[#allocation2 + $0x24] sm:$0x8]
      %v1353 = vsel %vm1339, 0, %v1352
      %1354 = vst [vmem:[#allocation2 + $0x24] sm:$0x8] %v1353
      %v1355 = vld [vmem:[#allocation2 + $0x2c] sm:$0x8]
      %v1356 = vsel %vm1339, 0, %v1355
      %1357 = vst [vmem:[#allocation2 + $0x2c] sm:$0x8] %v1356
      %v1358 = vld [vmem:[#allocation2 + $0x34] sm:$0x8]
      %v1359 = vsel %vm1339, 0, %v1358
      %1360 = vst [vmem:[#allocation2 + $0x34] sm:$0x8] %v1359
      %v1361 = vld [vmem:[#allocation2 + $0x3c] sm:$0x8]
      %v1362 = vsel %vm1339, 0, %v1361
      %1363 = vst [vmem:[#allocation2 + $0x3c] sm:$0x8] %v1362
      %v1364 = vld [vmem:[#allocation2 + $0x44] sm:$0x8]
      %v1365 = vsel %vm1339, 0, %v1364
      %1366 = vst [vmem:[#allocation2 + $0x44] sm:$0x8] %v1365
      %v1367 = vld [vmem:[#allocation2 + $0x4c] sm:$0x8]
      %v1368 = vsel %vm1339, 0, %v1367
      %1369 = vst [vmem:[#allocation2 + $0x4c] sm:$0x8] %v1368
      %v1370 = vld [vmem:[#allocation2 + $0x54] sm:$0x8]
      %v1371 = vsel %vm1339, 0, %v1370
      %1372 = vst [vmem:[#allocation2 + $0x54] sm:$0x8] %v1371
      %v1373 = vld [vmem:[#allocation2 + $0x5c] sm:$0x8]
      %v1374 = vsel %vm1339, 0, %v1373
      %1375 = vst [vmem:[#allocation2 + $0x5c] sm:$0x8] %v1374
      %v1376 = vld [vmem:[#allocation2] sm:$0xf]
      %v1377 = vld [vmem:[#allocation2 + $0x4] sm:$0xf]
      %v1378 = vld [vmem:[#allocation2 + $0x8] sm:$0xf]
      %v1379 = vld [vmem:[#allocation2 + $0xc] sm:$0xf]
      %v1380 = vld [vmem:[#allocation2 + $0x10] sm:$0xf]
      %v1381 = vld [vmem:[#allocation2 + $0x14] sm:$0xf]
      %v1382 = vld [vmem:[#allocation2 + $0x18] sm:$0xf]
      %v1383 = vld [vmem:[#allocation2 + $0x1c] sm:$0xf]
      %v1384 = vld [vmem:[#allocation2 + $0x20] sm:$0xf]
      %v1385 = vld [vmem:[#allocation2 + $0x24] sm:$0xf]
      %v1386 = vld [vmem:[#allocation2 + $0x28] sm:$0xf]
      %v1387 = vld [vmem:[#allocation2 + $0x2c] sm:$0xf]
      %v1388 = vld [vmem:[#allocation2 + $0x30] sm:$0xf]
      %v1389 = vld [vmem:[#allocation2 + $0x34] sm:$0xf]
      %v1390 = vld [vmem:[#allocation2 + $0x38] sm:$0xf]
      %v1391 = vld [vmem:[#allocation2 + $0x3c] sm:$0xf]
      %v1392 = vld [vmem:[#allocation2 + $0x40] sm:$0xf]
      %v1393 = vld [vmem:[#allocation2 + $0x44] sm:$0xf]
      %v1394 = vld [vmem:[#allocation2 + $0x48] sm:$0xf]
      %v1395 = vld [vmem:[#allocation2 + $0x4c] sm:$0xf]
      %v1396 = vld [vmem:[%s3] sm:$0xf]
      %v1397 = vld [vmem:[%s3 + $0x4] sm:$0x3]
      %s1398 = scalar_lea.vmem [#allocation2], 8
      %v1399 = vld [vmem:[%s1398] sm:$0xf]
      %v1400 = vld [vmem:[%s1398 + $0x4] sm:$0xf]
      %v1401 = vld [vmem:[%s1398 + $0x8] sm:$0xf]
      %v1402 = vld [vmem:[%s1398 + $0xc] sm:$0xf]
      %v1403 = vld [vmem:[%s1398 + $0x10] sm:$0xf]
      %v1404 = vld [vmem:[%s1398 + $0x14] sm:$0xf]
      %v1405 = vld [vmem:[%s1398 + $0x18] sm:$0xf]
      %v1406 = vld [vmem:[%s1398 + $0x1c] sm:$0xf]
      %v1407 = vld [vmem:[%s1398 + $0x20] sm:$0xf]
      %v1408 = vld [vmem:[%s1398 + $0x24] sm:$0xf]
      %v1409 = vld [vmem:[%s1398 + $0x28] sm:$0xf]
      %v1410 = vld [vmem:[%s1398 + $0x2c] sm:$0xf]
      %v1411 = vld [vmem:[%s1398 + $0x30] sm:$0xf]
      %v1412 = vld [vmem:[%s1398 + $0x34] sm:$0xf]
      %v1413 = vld [vmem:[%s1398 + $0x38] sm:$0xf]
      %v1414 = vld [vmem:[%s1398 + $0x3c] sm:$0xf]
      %v1415 = vld [vmem:[%s1398 + $0x40] sm:$0xf]
      %v1416 = vld [vmem:[%s1398 + $0x44] sm:$0xf]
      %v1417 = vld [vmem:[%s1398 + $0x48] sm:$0xf]
      %v1418 = vld [vmem:[%s1398 + $0x4c] sm:$0xf]
      %s1419 = scalar_lea.vmem %s3, 8
      %v1420 = vld [vmem:[%s1419] sm:$0xf]
      %v1421 = vld [vmem:[%s1419 + $0x4] sm:$0x3]
      %v1442 = vunpack.c.l.b16 %v1399
      %v1443 = vunpack.c.l.b16 %v1400
      %v1444 = vunpack.c.l.b16 %v1401
      %v1445 = vunpack.c.l.b16 %v1402
      %v1446 = vunpack.c.l.b16 %v1403
      %v1447 = vunpack.c.l.b16 %v1404
      %v1448 = vunpack.c.l.b16 %v1405
      %v1449 = vunpack.c.l.b16 %v1406
      %v1450 = vunpack.c.l.b16 %v1407
      %v1451 = vunpack.c.l.b16 %v1408
      %v1452 = vunpack.c.l.b16 %v1409
      %v1453 = vunpack.c.l.b16 %v1410
      %v1454 = vunpack.c.l.b16 %v1411
      %v1455 = vunpack.c.l.b16 %v1412
      %v1456 = vunpack.c.l.b16 %v1413
      %v1457 = vunpack.c.l.b16 %v1414
      %v1458 = vunpack.c.l.b16 %v1415
      %v1459 = vunpack.c.l.b16 %v1416
      %v1460 = vunpack.c.l.b16 %v1417
      %v1461 = vunpack.c.l.b16 %v1418
      %v1462 = vpack.c.b16 %v1443, %v1442
      %v1463 = vpack.c.b16 %v1445, %v1444
      %v1464 = vpack.c.b16 %v1447, %v1446
      %v1465 = vpack.c.b16 %v1449, %v1448
      %v1466 = vpack.c.b16 %v1451, %v1450
      %v1467 = vpack.c.b16 %v1453, %v1452
      %v1468 = vpack.c.b16 %v1455, %v1454
      %v1469 = vpack.c.b16 %v1457, %v1456
      %v1470 = vpack.c.b16 %v1459, %v1458
      %v1471 = vpack.c.b16 %v1461, %v1460
      %v1474 = vunpack.c.l.b16 %v1420
      %v1475 = vunpack.c.l.b16 %v1421
      %v1476 = vpack.c.b16 %v1475, %v1474
      %vm1477 = vcmask 97280
      %v1479 = vsel %vm1477, %v1462, 0
      %v1482 = vsel %vm1477, %v1463, 0
      %v1485 = vsel %vm1477, %v1464, 0
      %v1488 = vsel %vm1477, %v1465, 0
      %v1491 = vsel %vm1477, %v1466, 0
      %v1494 = vsel %vm1477, %v1467, 0
      %v1497 = vsel %vm1477, %v1468, 0
      %v1500 = vsel %vm1477, %v1469, 0
      %v1503 = vsel %vm1477, %v1470, 0
      %v1506 = vsel %vm1477, %v1471, 0
      %vm1508 = vcmask 1045504
      %v1510 = vsel %vm1508, %v1476, 0
      %1512 = vmatprep.subr.bf16.mxu0 0
      %1513 = vmatpush1.bf16.msra.mxu0 0
      %1514 = vmatprep.subr.bf16.mxu0 0
      %1515 = vmatpush1.bf16.msra.mxu0 0
      %1516 = vmatprep.subr.bf16.mxu0 0
      %1517 = vmatpush1.bf16.msra.mxu0 0
      %1518 = vmatprep.subr.bf16.mxu0 0
      %1519 = vmatpush1.bf16.msra.mxu0 0
      %1520 = vmatprep.subr.bf16.mxu0 0
      %1521 = vmatpush1.bf16.msra.mxu0 0
      %1522 = vmatprep.subr.bf16.mxu0 0
      %1523 = vmatpush1.bf16.msra.mxu0 0
      %1524 = vmatprep.subr.bf16.mxu0 0
      %1525 = vmatpush1.bf16.msra.mxu0 0
      %1526 = vmatprep.subr.bf16.mxu0 0
      %1527 = vmatpush1.bf16.msra.mxu0 %v1510
      %1528 = vmatprep.subr.bf16.mxu0 0
      %1529 = vmatpush2.bf16.msra.mxu0 0
      %1530 = vmatprep.subr.bf16.mxu0 0
      %1531 = vmatpush2.bf16.msra.mxu0 0
      %1532 = vmatprep.subr.bf16.mxu0 0
      %1533 = vmatpush2.bf16.msra.mxu0 0
      %1534 = vmatprep.subr.bf16.mxu0 0
      %1535 = vmatpush2.bf16.msra.mxu0 0
      %1536 = vmatprep.subr.bf16.mxu0 0
      %1537 = vmatpush2.bf16.msra.mxu0 0
      %1538 = vmatprep.subr.bf16.mxu0 0
      %1539 = vmatpush2.bf16.msra.mxu0 0
      %1540 = vmatprep.subr.bf16.mxu0 0
      %1541 = vmatpush2.bf16.msra.mxu0 0
      %1542 = vmatprep.subr.bf16.mxu0 0
      %1543 = vmatpush2.bf16.msra.mxu0 0
      %1544 = vmatprep.mubr.bf16.mxu0 0
      %1545 = vmatmul.mubr.bf16.gmra.mxu0 %v1479
      %v1546 = vpop.f32.mrf.mxu0
      %v1547 = vadd.f32 0.0, %v1546
      %v1548 = vpop.f32.mrf.mxu0
      %v1549 = vpop.f32.mrf.mxu0
      %v1550 = vadd.f32 0.0, %v1549
      %v1551 = vpop.f32.mrf.mxu0
      %1552 = vmatprep.mubr.bf16.mxu0 0
      %1553 = vmatmul.mubr.bf16.gmra.mxu0 %v1482
      %v1554 = vpop.f32.mrf.mxu0
      %v1555 = vadd.f32 0.0, %v1554
      %v1556 = vpop.f32.mrf.mxu0
      %v1557 = vpop.f32.mrf.mxu0
      %v1558 = vadd.f32 0.0, %v1557
      %v1559 = vpop.f32.mrf.mxu0
      %1560 = vmatprep.mubr.bf16.mxu0 0
      %1561 = vmatmul.mubr.bf16.gmra.mxu0 %v1485
      %v1562 = vpop.f32.mrf.mxu0
      %v1563 = vadd.f32 0.0, %v1562
      %v1564 = vpop.f32.mrf.mxu0
      %v1565 = vpop.f32.mrf.mxu0
      %v1566 = vadd.f32 0.0, %v1565
      %v1567 = vpop.f32.mrf.mxu0
      %1568 = vmatprep.mubr.bf16.mxu0 0
      %1569 = vmatmul.mubr.bf16.gmra.mxu0 %v1488
      %v1570 = vpop.f32.mrf.mxu0
      %v1571 = vadd.f32 0.0, %v1570
      %v1572 = vpop.f32.mrf.mxu0
      %v1573 = vpop.f32.mrf.mxu0
      %v1574 = vadd.f32 0.0, %v1573
      %v1575 = vpop.f32.mrf.mxu0
      %1576 = vmatprep.mubr.bf16.mxu0 0
      %1577 = vmatmul.mubr.bf16.gmra.mxu0 %v1491
      %v1578 = vpop.f32.mrf.mxu0
      %v1579 = vadd.f32 0.0, %v1578
      %v1580 = vpop.f32.mrf.mxu0
      %v1581 = vpop.f32.mrf.mxu0
      %v1582 = vadd.f32 0.0, %v1581
      %v1583 = vpop.f32.mrf.mxu0
      %1584 = vmatprep.mubr.bf16.mxu0 0
      %1585 = vmatmul.mubr.bf16.gmra.mxu0 %v1494
      %v1586 = vpop.f32.mrf.mxu0
      %v1587 = vadd.f32 0.0, %v1586
      %v1588 = vpop.f32.mrf.mxu0
      %v1589 = vpop.f32.mrf.mxu0
      %v1590 = vadd.f32 0.0, %v1589
      %v1591 = vpop.f32.mrf.mxu0
      %1592 = vmatprep.mubr.bf16.mxu0 0
      %1593 = vmatmul.mubr.bf16.gmra.mxu0 %v1497
      %v1594 = vpop.f32.mrf.mxu0
      %v1595 = vadd.f32 0.0, %v1594
      %v1596 = vpop.f32.mrf.mxu0
      %v1597 = vpop.f32.mrf.mxu0
      %v1598 = vadd.f32 0.0, %v1597
      %v1599 = vpop.f32.mrf.mxu0
      %1600 = vmatprep.mubr.bf16.mxu0 0
      %1601 = vmatmul.mubr.bf16.gmra.mxu0 %v1500
      %v1602 = vpop.f32.mrf.mxu0
      %v1603 = vadd.f32 0.0, %v1602
      %v1604 = vpop.f32.mrf.mxu0
      %v1605 = vpop.f32.mrf.mxu0
      %v1606 = vadd.f32 0.0, %v1605
      %v1607 = vpop.f32.mrf.mxu0
      %1608 = vmatprep.mubr.bf16.mxu0 0
      %1609 = vmatmul.mubr.bf16.gmra.mxu0 %v1503
      %v1610 = vpop.f32.mrf.mxu0
      %v1611 = vadd.f32 0.0, %v1610
      %v1612 = vpop.f32.mrf.mxu0
      %v1613 = vpop.f32.mrf.mxu0
      %v1614 = vadd.f32 0.0, %v1613
      %v1615 = vpop.f32.mrf.mxu0
      %1616 = vmatprep.mubr.bf16.mxu0 0
      %1617 = vmatmul.mubr.bf16.gmra.mxu0 %v1506
      %v1618 = vpop.f32.mrf.mxu0
      %v1619 = vadd.f32 0.0, %v1618
      %v1620 = vpop.f32.mrf.mxu0
      %v1621 = vpop.f32.mrf.mxu0
      %v1622 = vadd.f32 0.0, %v1621
      %v1623 = vpop.f32.mrf.mxu0
      %1624 = vdwg.mxu0
      %v1645 = vunpack.c.l.b16 %v1376
      %v1646 = vunpack.c.l.b16 %v1377
      %v1647 = vunpack.c.l.b16 %v1378
      %v1648 = vunpack.c.l.b16 %v1379
      %v1649 = vunpack.c.l.b16 %v1380
      %v1650 = vunpack.c.l.b16 %v1381
      %v1651 = vunpack.c.l.b16 %v1382
      %v1652 = vunpack.c.l.b16 %v1383
      %v1653 = vunpack.c.l.b16 %v1384
      %v1654 = vunpack.c.l.b16 %v1385
      %v1655 = vunpack.c.l.b16 %v1386
      %v1656 = vunpack.c.l.b16 %v1387
      %v1657 = vunpack.c.l.b16 %v1388
      %v1658 = vunpack.c.l.b16 %v1389
      %v1659 = vunpack.c.l.b16 %v1390
      %v1660 = vunpack.c.l.b16 %v1391
      %v1661 = vunpack.c.l.b16 %v1392
      %v1662 = vunpack.c.l.b16 %v1393
      %v1663 = vunpack.c.l.b16 %v1394
      %v1664 = vunpack.c.l.b16 %v1395
      %v1665 = vpack.c.b16 %v1646, %v1645
      %v1666 = vpack.c.b16 %v1648, %v1647
      %v1667 = vpack.c.b16 %v1650, %v1649
      %v1668 = vpack.c.b16 %v1652, %v1651
      %v1669 = vpack.c.b16 %v1654, %v1653
      %v1670 = vpack.c.b16 %v1656, %v1655
      %v1671 = vpack.c.b16 %v1658, %v1657
      %v1672 = vpack.c.b16 %v1660, %v1659
      %v1673 = vpack.c.b16 %v1662, %v1661
      %v1674 = vpack.c.b16 %v1664, %v1663
      %v1677 = vunpack.c.l.b16 %v1396
      %v1678 = vunpack.c.l.b16 %v1397
      %v1679 = vpack.c.b16 %v1678, %v1677
      %v1681 = vsel %vm1477, %v1665, 0
      %v1684 = vsel %vm1477, %v1666, 0
      %v1687 = vsel %vm1477, %v1667, 0
      %v1690 = vsel %vm1477, %v1668, 0
      %v1693 = vsel %vm1477, %v1669, 0
      %v1696 = vsel %vm1477, %v1670, 0
      %v1699 = vsel %vm1477, %v1671, 0
      %v1702 = vsel %vm1477, %v1672, 0
      %v1705 = vsel %vm1477, %v1673, 0
      %v1708 = vsel %vm1477, %v1674, 0
      %v1711 = vsel %vm1508, %v1679, 0
      %1713 = vmatprep.subr.bf16.mxu0 0
      %1714 = vmatpush1.bf16.msra.mxu0 0
      %1715 = vmatprep.subr.bf16.mxu0 0
      %1716 = vmatpush1.bf16.msra.mxu0 0
      %1717 = vmatprep.subr.bf16.mxu0 0
      %1718 = vmatpush1.bf16.msra.mxu0 0
      %1719 = vmatprep.subr.bf16.mxu0 0
      %1720 = vmatpush1.bf16.msra.mxu0 0
      %1721 = vmatprep.subr.bf16.mxu0 0
      %1722 = vmatpush1.bf16.msra.mxu0 0
      %1723 = vmatprep.subr.bf16.mxu0 0
      %1724 = vmatpush1.bf16.msra.mxu0 0
      %1725 = vmatprep.subr.bf16.mxu0 0
      %1726 = vmatpush1.bf16.msra.mxu0 0
      %1727 = vmatprep.subr.bf16.mxu0 0
      %1728 = vmatpush1.bf16.msra.mxu0 %v1711
      %1729 = vmatprep.subr.bf16.mxu0 0
      %1730 = vmatpush2.bf16.msra.mxu0 0
      %1731 = vmatprep.subr.bf16.mxu0 0
      %1732 = vmatpush2.bf16.msra.mxu0 0
      %1733 = vmatprep.subr.bf16.mxu0 0
      %1734 = vmatpush2.bf16.msra.mxu0 0
      %1735 = vmatprep.subr.bf16.mxu0 0
      %1736 = vmatpush2.bf16.msra.mxu0 0
      %1737 = vmatprep.subr.bf16.mxu0 0
      %1738 = vmatpush2.bf16.msra.mxu0 0
      %1739 = vmatprep.subr.bf16.mxu0 0
      %1740 = vmatpush2.bf16.msra.mxu0 0
      %1741 = vmatprep.subr.bf16.mxu0 0
      %1742 = vmatpush2.bf16.msra.mxu0 0
      %1743 = vmatprep.subr.bf16.mxu0 0
      %1744 = vmatpush2.bf16.msra.mxu0 0
      %1745 = vmatprep.mubr.bf16.mxu0 0
      %1746 = vmatmul.mubr.bf16.gmra.mxu0 %v1681
      %v1747 = vpop.f32.mrf.mxu0
      %v1748 = vadd.f32 %v1547, %v1747
      %v1749 = vpop.f32.mrf.mxu0
      %v1750 = vpop.f32.mrf.mxu0
      %v1751 = vadd.f32 %v1550, %v1750
      %v1752 = vpop.f32.mrf.mxu0
      %1753 = vmatprep.mubr.bf16.mxu0 0
      %1754 = vmatmul.mubr.bf16.gmra.mxu0 %v1684
      %v1755 = vpop.f32.mrf.mxu0
      %v1756 = vadd.f32 %v1555, %v1755
      %v1757 = vpop.f32.mrf.mxu0
      %v1758 = vpop.f32.mrf.mxu0
      %v1759 = vadd.f32 %v1558, %v1758
      %v1760 = vpop.f32.mrf.mxu0
      %1761 = vmatprep.mubr.bf16.mxu0 0
      %1762 = vmatmul.mubr.bf16.gmra.mxu0 %v1687
      %v1763 = vpop.f32.mrf.mxu0
      %v1764 = vadd.f32 %v1563, %v1763
      %v1765 = vpop.f32.mrf.mxu0
      %v1766 = vpop.f32.mrf.mxu0
      %v1767 = vadd.f32 %v1566, %v1766
      %v1768 = vpop.f32.mrf.mxu0
      %1769 = vmatprep.mubr.bf16.mxu0 0
      %1770 = vmatmul.mubr.bf16.gmra.mxu0 %v1690
      %v1771 = vpop.f32.mrf.mxu0
      %v1772 = vadd.f32 %v1571, %v1771
      %v1773 = vpop.f32.mrf.mxu0
      %v1774 = vpop.f32.mrf.mxu0
      %v1775 = vadd.f32 %v1574, %v1774
      %v1776 = vpop.f32.mrf.mxu0
      %1777 = vmatprep.mubr.bf16.mxu0 0
      %1778 = vmatmul.mubr.bf16.gmra.mxu0 %v1693
      %v1779 = vpop.f32.mrf.mxu0
      %v1780 = vadd.f32 %v1579, %v1779
      %v1781 = vpop.f32.mrf.mxu0
      %v1782 = vpop.f32.mrf.mxu0
      %v1783 = vadd.f32 %v1582, %v1782
      %v1784 = vpop.f32.mrf.mxu0
      %1785 = vmatprep.mubr.bf16.mxu0 0
      %1786 = vmatmul.mubr.bf16.gmra.mxu0 %v1696
      %v1787 = vpop.f32.mrf.mxu0
      %v1788 = vadd.f32 %v1587, %v1787
      %v1789 = vpop.f32.mrf.mxu0
      %v1790 = vpop.f32.mrf.mxu0
      %v1791 = vadd.f32 %v1590, %v1790
      %v1792 = vpop.f32.mrf.mxu0
      %1793 = vmatprep.mubr.bf16.mxu0 0
      %1794 = vmatmul.mubr.bf16.gmra.mxu0 %v1699
      %v1795 = vpop.f32.mrf.mxu0
      %v1796 = vadd.f32 %v1595, %v1795
      %v1797 = vpop.f32.mrf.mxu0
      %v1798 = vpop.f32.mrf.mxu0
      %v1799 = vadd.f32 %v1598, %v1798
      %v1800 = vpop.f32.mrf.mxu0
      %1801 = vmatprep.mubr.bf16.mxu0 0
      %1802 = vmatmul.mubr.bf16.gmra.mxu0 %v1702
      %v1803 = vpop.f32.mrf.mxu0
      %v1804 = vadd.f32 %v1603, %v1803
      %v1805 = vpop.f32.mrf.mxu0
      %v1806 = vpop.f32.mrf.mxu0
      %v1807 = vadd.f32 %v1606, %v1806
      %v1808 = vpop.f32.mrf.mxu0
      %1809 = vmatprep.mubr.bf16.mxu0 0
      %1810 = vmatmul.mubr.bf16.gmra.mxu0 %v1705
      %v1811 = vpop.f32.mrf.mxu0
      %v1812 = vadd.f32 %v1611, %v1811
      %v1813 = vpop.f32.mrf.mxu0
      %v1814 = vpop.f32.mrf.mxu0
      %v1815 = vadd.f32 %v1614, %v1814
      %v1816 = vpop.f32.mrf.mxu0
      %1817 = vmatprep.mubr.bf16.mxu0 0
      %1818 = vmatmul.mubr.bf16.gmra.mxu0 %v1708
      %v1819 = vpop.f32.mrf.mxu0
      %v1820 = vadd.f32 %v1619, %v1819
      %v1821 = vpop.f32.mrf.mxu0
      %v1822 = vpop.f32.mrf.mxu0
      %v1823 = vadd.f32 %v1622, %v1822
      %v1824 = vpop.f32.mrf.mxu0
      %1825 = vdwg.mxu0
      %v1826 = vld [vmem:[%s679] sm:$0xf]
      %v1827 = vld [vmem:[%s679 + $0x4] sm:$0xf]
      %v1828 = vld [vmem:[%s679 + $0x8] sm:$0xf]
      %v1829 = vld [vmem:[%s679 + $0xc] sm:$0xf]
      %v1830 = vld [vmem:[%s679 + $0x10] sm:$0xf]
      %v1831 = vld [vmem:[%s679 + $0x14] sm:$0xf]
      %v1832 = vld [vmem:[%s679 + $0x18] sm:$0xf]
      %v1833 = vld [vmem:[%s679 + $0x1c] sm:$0xf]
      %v1834 = vld [vmem:[%s679 + $0x20] sm:$0xf]
      %v1835 = vld [vmem:[%s679 + $0x24] sm:$0xf]
      %v1836 = vld [vmem:[%s679 + $0x28] sm:$0xf]
      %v1837 = vld [vmem:[%s679 + $0x2c] sm:$0xf]
      %v1838 = vld [vmem:[%s679 + $0x30] sm:$0xf]
      %v1839 = vld [vmem:[%s679 + $0x34] sm:$0xf]
      %v1840 = vld [vmem:[%s679 + $0x38] sm:$0xf]
      %v1841 = vld [vmem:[%s679 + $0x3c] sm:$0xf]
      %v1842 = vld [vmem:[%s679 + $0x40] sm:$0xf]
      %v1843 = vld [vmem:[%s679 + $0x44] sm:$0xf]
      %v1844 = vld [vmem:[%s679 + $0x48] sm:$0xf]
      %v1845 = vld [vmem:[%s679 + $0x4c] sm:$0xf]
      %s1846 = scalar_lea.vmem %s3, 16
      %v1847 = vld [vmem:[%s1846] sm:$0xf]
      %v1848 = vld [vmem:[%s1846 + $0x4] sm:$0x3]
      %v1869 = vunpack.c.l.b16 %v1826
      %v1870 = vunpack.c.l.b16 %v1827
      %v1871 = vunpack.c.l.b16 %v1828
      %v1872 = vunpack.c.l.b16 %v1829
      %v1873 = vunpack.c.l.b16 %v1830
      %v1874 = vunpack.c.l.b16 %v1831
      %v1875 = vunpack.c.l.b16 %v1832
      %v1876 = vunpack.c.l.b16 %v1833
      %v1877 = vunpack.c.l.b16 %v1834
      %v1878 = vunpack.c.l.b16 %v1835
      %v1879 = vunpack.c.l.b16 %v1836
      %v1880 = vunpack.c.l.b16 %v1837
      %v1881 = vunpack.c.l.b16 %v1838
      %v1882 = vunpack.c.l.b16 %v1839
      %v1883 = vunpack.c.l.b16 %v1840
      %v1884 = vunpack.c.l.b16 %v1841
      %v1885 = vunpack.c.l.b16 %v1842
      %v1886 = vunpack.c.l.b16 %v1843
      %v1887 = vunpack.c.l.b16 %v1844
      %v1888 = vunpack.c.l.b16 %v1845
      %v1889 = vpack.c.b16 %v1870, %v1869
      %v1890 = vpack.c.b16 %v1872, %v1871
      %v1891 = vpack.c.b16 %v1874, %v1873
      %v1892 = vpack.c.b16 %v1876, %v1875
      %v1893 = vpack.c.b16 %v1878, %v1877
      %v1894 = vpack.c.b16 %v1880, %v1879
      %v1895 = vpack.c.b16 %v1882, %v1881
      %v1896 = vpack.c.b16 %v1884, %v1883
      %v1897 = vpack.c.b16 %v1886, %v1885
      %v1898 = vpack.c.b16 %v1888, %v1887
      %v1901 = vunpack.c.l.b16 %v1847
      %v1902 = vunpack.c.l.b16 %v1848
      %v1903 = vpack.c.b16 %v1902, %v1901
      %v1905 = vsel %vm1477, %v1889, 0
      %v1908 = vsel %vm1477, %v1890, 0
      %v1911 = vsel %vm1477, %v1891, 0
      %v1914 = vsel %vm1477, %v1892, 0
      %v1917 = vsel %vm1477, %v1893, 0
      %v1920 = vsel %vm1477, %v1894, 0
      %v1923 = vsel %vm1477, %v1895, 0
      %v1926 = vsel %vm1477, %v1896, 0
      %v1929 = vsel %vm1477, %v1897, 0
      %v1932 = vsel %vm1477, %v1898, 0
      %v1935 = vsel %vm1508, %v1903, 0
      %1937 = vmatprep.subr.bf16.mxu0 0
      %1938 = vmatpush1.bf16.msra.mxu0 0
      %1939 = vmatprep.subr.bf16.mxu0 0
      %1940 = vmatpush1.bf16.msra.mxu0 0
      %1941 = vmatprep.subr.bf16.mxu0 0
      %1942 = vmatpush1.bf16.msra.mxu0 0
      %1943 = vmatprep.subr.bf16.mxu0 0
      %1944 = vmatpush1.bf16.msra.mxu0 0
      %1945 = vmatprep.subr.bf16.mxu0 0
      %1946 = vmatpush1.bf16.msra.mxu0 0
      %1947 = vmatprep.subr.bf16.mxu0 0
      %1948 = vmatpush1.bf16.msra.mxu0 0
      %1949 = vmatprep.subr.bf16.mxu0 0
      %1950 = vmatpush1.bf16.msra.mxu0 0
      %1951 = vmatprep.subr.bf16.mxu0 0
      %1952 = vmatpush1.bf16.msra.mxu0 %v1935
      %1953 = vmatprep.subr.bf16.mxu0 0
      %1954 = vmatpush2.bf16.msra.mxu0 0
      %1955 = vmatprep.subr.bf16.mxu0 0
      %1956 = vmatpush2.bf16.msra.mxu0 0
      %1957 = vmatprep.subr.bf16.mxu0 0
      %1958 = vmatpush2.bf16.msra.mxu0 0
      %1959 = vmatprep.subr.bf16.mxu0 0
      %1960 = vmatpush2.bf16.msra.mxu0 0
      %1961 = vmatprep.subr.bf16.mxu0 0
      %1962 = vmatpush2.bf16.msra.mxu0 0
      %1963 = vmatprep.subr.bf16.mxu0 0
      %1964 = vmatpush2.bf16.msra.mxu0 0
      %1965 = vmatprep.subr.bf16.mxu0 0
      %1966 = vmatpush2.bf16.msra.mxu0 0
      %1967 = vmatprep.subr.bf16.mxu0 0
      %1968 = vmatpush2.bf16.msra.mxu0 0
      %1969 = vmatprep.mubr.bf16.mxu0 0
      %1970 = vmatmul.mubr.bf16.gmra.mxu0 %v1905
      %v1971 = vpop.f32.mrf.mxu0
      %v1972 = vadd.f32 0.0, %v1971
      %v1973 = vpop.f32.mrf.mxu0
      %v1974 = vpop.f32.mrf.mxu0
      %v1975 = vadd.f32 0.0, %v1974
      %v1976 = vpop.f32.mrf.mxu0
      %1977 = vmatprep.mubr.bf16.mxu0 0
      %1978 = vmatmul.mubr.bf16.gmra.mxu0 %v1908
      %v1979 = vpop.f32.mrf.mxu0
      %v1980 = vadd.f32 0.0, %v1979
      %v1981 = vpop.f32.mrf.mxu0
      %v1982 = vpop.f32.mrf.mxu0
      %v1983 = vadd.f32 0.0, %v1982
      %v1984 = vpop.f32.mrf.mxu0
      %1985 = vmatprep.mubr.bf16.mxu0 0
      %1986 = vmatmul.mubr.bf16.gmra.mxu0 %v1911
      %v1987 = vpop.f32.mrf.mxu0
      %v1988 = vadd.f32 0.0, %v1987
      %v1989 = vpop.f32.mrf.mxu0
      %v1990 = vpop.f32.mrf.mxu0
      %v1991 = vadd.f32 0.0, %v1990
      %v1992 = vpop.f32.mrf.mxu0
      %1993 = vmatprep.mubr.bf16.mxu0 0
      %1994 = vmatmul.mubr.bf16.gmra.mxu0 %v1914
      %v1995 = vpop.f32.mrf.mxu0
      %v1996 = vadd.f32 0.0, %v1995
      %v1997 = vpop.f32.mrf.mxu0
      %v1998 = vpop.f32.mrf.mxu0
      %v1999 = vadd.f32 0.0, %v1998
      %v2000 = vpop.f32.mrf.mxu0
      %2001 = vmatprep.mubr.bf16.mxu0 0
      %2002 = vmatmul.mubr.bf16.gmra.mxu0 %v1917
      %v2003 = vpop.f32.mrf.mxu0
      %v2004 = vadd.f32 0.0, %v2003
      %v2005 = vpop.f32.mrf.mxu0
      %v2006 = vpop.f32.mrf.mxu0
      %v2007 = vadd.f32 0.0, %v2006
      %v2008 = vpop.f32.mrf.mxu0
      %2009 = vmatprep.mubr.bf16.mxu0 0
      %2010 = vmatmul.mubr.bf16.gmra.mxu0 %v1920
      %v2011 = vpop.f32.mrf.mxu0
      %v2012 = vadd.f32 0.0, %v2011
      %v2013 = vpop.f32.mrf.mxu0
      %v2014 = vpop.f32.mrf.mxu0
      %v2015 = vadd.f32 0.0, %v2014
      %v2016 = vpop.f32.mrf.mxu0
      %2017 = vmatprep.mubr.bf16.mxu0 0
      %2018 = vmatmul.mubr.bf16.gmra.mxu0 %v1923
      %v2019 = vpop.f32.mrf.mxu0
      %v2020 = vadd.f32 0.0, %v2019
      %v2021 = vpop.f32.mrf.mxu0
      %v2022 = vpop.f32.mrf.mxu0
      %v2023 = vadd.f32 0.0, %v2022
      %v2024 = vpop.f32.mrf.mxu0
      %2025 = vmatprep.mubr.bf16.mxu0 0
      %2026 = vmatmul.mubr.bf16.gmra.mxu0 %v1926
      %v2027 = vpop.f32.mrf.mxu0
      %v2028 = vadd.f32 0.0, %v2027
      %v2029 = vpop.f32.mrf.mxu0
      %v2030 = vpop.f32.mrf.mxu0
      %v2031 = vadd.f32 0.0, %v2030
      %v2032 = vpop.f32.mrf.mxu0
      %2033 = vmatprep.mubr.bf16.mxu0 0
      %2034 = vmatmul.mubr.bf16.gmra.mxu0 %v1929
      %v2035 = vpop.f32.mrf.mxu0
      %v2036 = vadd.f32 0.0, %v2035
      %v2037 = vpop.f32.mrf.mxu0
      %v2038 = vpop.f32.mrf.mxu0
      %v2039 = vadd.f32 0.0, %v2038
      %v2040 = vpop.f32.mrf.mxu0
      %2041 = vmatprep.mubr.bf16.mxu0 0
      %2042 = vmatmul.mubr.bf16.gmra.mxu0 %v1932
      %v2043 = vpop.f32.mrf.mxu0
      %v2044 = vadd.f32 0.0, %v2043
      %v2045 = vpop.f32.mrf.mxu0
      %v2046 = vpop.f32.mrf.mxu0
      %v2047 = vadd.f32 0.0, %v2046
      %v2048 = vpop.f32.mrf.mxu0
      %2049 = vdwg.mxu0
      %v2050 = vadd.f32 %v1748, %v1972
      %v2051 = vadd.f32 %v1751, %v1975
      %v2052 = vadd.f32 %v1756, %v1980
      %v2053 = vadd.f32 %v1759, %v1983
      %v2054 = vadd.f32 %v1764, %v1988
      %v2055 = vadd.f32 %v1767, %v1991
      %v2056 = vadd.f32 %v1772, %v1996
      %v2057 = vadd.f32 %v1775, %v1999
      %v2058 = vadd.f32 %v1780, %v2004
      %v2059 = vadd.f32 %v1783, %v2007
      %v2060 = vadd.f32 %v1788, %v2012
      %v2061 = vadd.f32 %v1791, %v2015
      %v2062 = vadd.f32 %v1796, %v2020
      %v2063 = vadd.f32 %v1799, %v2023
      %v2064 = vadd.f32 %v1804, %v2028
      %v2065 = vadd.f32 %v1807, %v2031
      %v2066 = vadd.f32 %v1812, %v2036
      %v2067 = vadd.f32 %v1815, %v2039
      %v2068 = vadd.f32 %v1820, %v2044
      %v2069 = vadd.f32 %v1823, %v2047
      %v2070 = vld [vmem:[%s4] sm:$0x1]
      %v2072 = vlaneseq
      %v2073 = vshrl.u32 %v2072, 7
      %v2074 = vsub.s32 0, %v2073
      %v2075 = vrot.slane %v2070, %v2074
      %v2077 = vmul.f32 %v2050, %v2075
      %v2078 = vmul.f32 %v2051, %v2075
      %v2079 = vmul.f32 %v2052, %v2075
      %v2080 = vmul.f32 %v2053, %v2075
      %v2081 = vmul.f32 %v2054, %v2075
      %v2082 = vmul.f32 %v2055, %v2075
      %v2083 = vmul.f32 %v2056, %v2075
      %v2084 = vmul.f32 %v2057, %v2075
      %v2085 = vmul.f32 %v2058, %v2075
      %v2086 = vmul.f32 %v2059, %v2075
      %v2087 = vmul.f32 %v2060, %v2075
      %v2088 = vmul.f32 %v2061, %v2075
      %v2089 = vmul.f32 %v2062, %v2075
      %v2090 = vmul.f32 %v2063, %v2075
      %v2091 = vmul.f32 %v2064, %v2075
      %v2092 = vmul.f32 %v2065, %v2075
      %v2093 = vmul.f32 %v2066, %v2075
      %v2094 = vmul.f32 %v2067, %v2075
      %v2095 = vmul.f32 %v2068, %v2075
      %v2096 = vmul.f32 %v2069, %v2075
      %v2097 = vld [vmem:[%s5] sm:$0x1]
      %v2099 = vlaneseq
      %v2100 = vshrl.u32 %v2099, 7
      %v2101 = vsub.s32 0, %v2100
      %v2102 = vrot.slane %v2097, %v2101
      %v2104 = vadd.f32 %v2077, %v2102
      %v2105 = vadd.f32 %v2078, %v2102
      %v2106 = vadd.f32 %v2079, %v2102
      %v2107 = vadd.f32 %v2080, %v2102
      %v2108 = vadd.f32 %v2081, %v2102
      %v2109 = vadd.f32 %v2082, %v2102
      %v2110 = vadd.f32 %v2083, %v2102
      %v2111 = vadd.f32 %v2084, %v2102
      %v2112 = vadd.f32 %v2085, %v2102
      %v2113 = vadd.f32 %v2086, %v2102
      %v2114 = vadd.f32 %v2087, %v2102
      %v2115 = vadd.f32 %v2088, %v2102
      %v2116 = vadd.f32 %v2089, %v2102
      %v2117 = vadd.f32 %v2090, %v2102
      %v2118 = vadd.f32 %v2091, %v2102
      %v2119 = vadd.f32 %v2092, %v2102
      %v2120 = vadd.f32 %v2093, %v2102
      %v2121 = vadd.f32 %v2094, %v2102
      %v2122 = vadd.f32 %v2095, %v2102
      %v2123 = vadd.f32 %v2096, %v2102
      %v2124 = vmax.f32 %v2104, 0.0
      %v2125 = vmax.f32 %v2105, 0.0
      %v2126 = vmax.f32 %v2106, 0.0
      %v2127 = vmax.f32 %v2107, 0.0
      %v2128 = vmax.f32 %v2108, 0.0
      %v2129 = vmax.f32 %v2109, 0.0
      %v2130 = vmax.f32 %v2110, 0.0
      %v2131 = vmax.f32 %v2111, 0.0
      %v2132 = vmax.f32 %v2112, 0.0
      %v2133 = vmax.f32 %v2113, 0.0
      %v2134 = vmax.f32 %v2114, 0.0
      %v2135 = vmax.f32 %v2115, 0.0
      %v2136 = vmax.f32 %v2116, 0.0
      %v2137 = vmax.f32 %v2117, 0.0
      %v2138 = vmax.f32 %v2118, 0.0
      %v2139 = vmax.f32 %v2119, 0.0
      %v2140 = vmax.f32 %v2120, 0.0
      %v2141 = vmax.f32 %v2121, 0.0
      %v2142 = vmax.f32 %v2122, 0.0
      %v2143 = vmax.f32 %v2123, 0.0
      %v2144 = vlaneseq
      %v2145 = vshrl.u32 %v2144, 7
      %v2146 = vadd.s32 %v2145, 8
      %v2147 = vadd.s32 %v2145, 16
      %v2148 = vadd.s32 %v2145, 24
      %v2149 = vadd.s32 %v2145, 32
      %v2150 = vadd.s32 %v2145, 40
      %v2151 = vadd.s32 %v2145, 48
      %v2152 = vadd.s32 %v2145, 56
      %v2153 = vadd.s32 %v2145, 64
      %v2154 = vadd.s32 %v2145, 72
      %v2155 = vadd.s32 %v2145, 80
      %v2156 = vadd.s32 %v2145, 88
      %v2157 = vadd.s32 %v2145, 96
      %v2158 = vadd.s32 %v2145, 104
      %v2159 = vadd.s32 %v2145, 112
      %v2160 = vadd.s32 %v2145, 120
      %v2161 = vadd.s32 %v2145, 128
      %v2162 = vadd.s32 %v2145, 136
      %v2163 = vadd.s32 %v2145, 144
      %v2164 = vadd.s32 %v2145, 152
      %vm2165 = vcmp.lt.s32.totalorder %v2145, 16
      %vm2166 = vcmp.lt.s32.totalorder %v2146, 16
      %vm2167 = vcmp.lt.s32.totalorder %v2147, 16
      %vm2168 = vcmp.lt.s32.totalorder %v2148, 16
      %vm2169 = vcmp.lt.s32.totalorder %v2149, 16
      %vm2170 = vcmp.lt.s32.totalorder %v2150, 16
      %vm2171 = vcmp.lt.s32.totalorder %v2151, 16
      %vm2172 = vcmp.lt.s32.totalorder %v2152, 16
      %vm2173 = vcmp.lt.s32.totalorder %v2153, 16
      %vm2174 = vcmp.lt.s32.totalorder %v2154, 16
      %vm2175 = vcmp.lt.s32.totalorder %v2155, 16
      %vm2176 = vcmp.lt.s32.totalorder %v2156, 16
      %vm2177 = vcmp.lt.s32.totalorder %v2157, 16
      %vm2178 = vcmp.lt.s32.totalorder %v2158, 16
      %vm2179 = vcmp.lt.s32.totalorder %v2159, 16
      %vm2180 = vcmp.lt.s32.totalorder %v2160, 16
      %vm2181 = vcmp.lt.s32.totalorder %v2161, 16
      %vm2182 = vcmp.lt.s32.totalorder %v2162, 16
      %vm2183 = vcmp.lt.s32.totalorder %v2163, 16
      %vm2184 = vcmp.lt.s32.totalorder %v2164, 16
      %vm2185 = vmand %vm544, %vm2165
      %vm2186 = vmand %vm544, %vm2166
      %vm2187 = vmand %vm544, %vm2167
      %vm2188 = vmand %vm544, %vm2168
      %vm2189 = vmand %vm544, %vm2169
      %vm2190 = vmand %vm544, %vm2170
      %vm2191 = vmand %vm544, %vm2171
      %vm2192 = vmand %vm544, %vm2172
      %vm2193 = vmand %vm544, %vm2173
      %vm2194 = vmand %vm544, %vm2174
      %vm2195 = vmand %vm544, %vm2175
      %vm2196 = vmand %vm544, %vm2176
      %vm2197 = vmand %vm544, %vm2177
      %vm2198 = vmand %vm544, %vm2178
      %vm2199 = vmand %vm544, %vm2179
      %vm2200 = vmand %vm544, %vm2180
      %vm2201 = vmand %vm544, %vm2181
      %vm2202 = vmand %vm544, %vm2182
      %vm2203 = vmand %vm544, %vm2183
      %vm2204 = vmand %vm544, %vm2184
      %vm2205 = vcmp.ge.s32.totalorder %v2145, 144
      %vm2206 = vcmp.ge.s32.totalorder %v2146, 144
      %vm2207 = vcmp.ge.s32.totalorder %v2147, 144
      %vm2208 = vcmp.ge.s32.totalorder %v2148, 144
      %vm2209 = vcmp.ge.s32.totalorder %v2149, 144
      %vm2210 = vcmp.ge.s32.totalorder %v2150, 144
      %vm2211 = vcmp.ge.s32.totalorder %v2151, 144
      %vm2212 = vcmp.ge.s32.totalorder %v2152, 144
      %vm2213 = vcmp.ge.s32.totalorder %v2153, 144
      %vm2214 = vcmp.ge.s32.totalorder %v2154, 144
      %vm2215 = vcmp.ge.s32.totalorder %v2155, 144
      %vm2216 = vcmp.ge.s32.totalorder %v2156, 144
      %vm2217 = vcmp.ge.s32.totalorder %v2157, 144
      %vm2218 = vcmp.ge.s32.totalorder %v2158, 144
      %vm2219 = vcmp.ge.s32.totalorder %v2159, 144
      %vm2220 = vcmp.ge.s32.totalorder %v2160, 144
      %vm2221 = vcmp.ge.s32.totalorder %v2161, 144
      %vm2222 = vcmp.ge.s32.totalorder %v2162, 144
      %vm2223 = vcmp.ge.s32.totalorder %v2163, 144
      %vm2224 = vcmp.ge.s32.totalorder %v2164, 144
      %vm2225 = vmand %vm557, %vm2205
      %vm2226 = vmand %vm557, %vm2206
      %vm2227 = vmand %vm557, %vm2207
      %vm2228 = vmand %vm557, %vm2208
      %vm2229 = vmand %vm557, %vm2209
      %vm2230 = vmand %vm557, %vm2210
      %vm2231 = vmand %vm557, %vm2211
      %vm2232 = vmand %vm557, %vm2212
      %vm2233 = vmand %vm557, %vm2213
      %vm2234 = vmand %vm557, %vm2214
      %vm2235 = vmand %vm557, %vm2215
      %vm2236 = vmand %vm557, %vm2216
      %vm2237 = vmand %vm557, %vm2217
      %vm2238 = vmand %vm557, %vm2218
      %vm2239 = vmand %vm557, %vm2219
      %vm2240 = vmand %vm557, %vm2220
      %vm2241 = vmand %vm557, %vm2221
      %vm2242 = vmand %vm557, %vm2222
      %vm2243 = vmand %vm557, %vm2223
      %vm2244 = vmand %vm557, %vm2224
      %vm2245 = vmor %vm2185, %vm2225
      %vm2246 = vmor %vm2186, %vm2226
      %vm2247 = vmor %vm2187, %vm2227
      %vm2248 = vmor %vm2188, %vm2228
      %vm2249 = vmor %vm2189, %vm2229
      %vm2250 = vmor %vm2190, %vm2230
      %vm2251 = vmor %vm2191, %vm2231
      %vm2252 = vmor %vm2192, %vm2232
      %vm2253 = vmor %vm2193, %vm2233
      %vm2254 = vmor %vm2194, %vm2234
      %vm2255 = vmor %vm2195, %vm2235
      %vm2256 = vmor %vm2196, %vm2236
      %vm2257 = vmor %vm2197, %vm2237
      %vm2258 = vmor %vm2198, %vm2238
      %vm2259 = vmor %vm2199, %vm2239
      %vm2260 = vmor %vm2200, %vm2240
      %vm2261 = vmor %vm2201, %vm2241
      %vm2262 = vmor %vm2202, %vm2242
      %vm2263 = vmor %vm2203, %vm2243
      %vm2264 = vmor %vm2204, %vm2244
      %v2265 = vsel %vm2245, 1, 0
      %v2266 = vsel %vm2246, 1, 0
      %v2267 = vsel %vm2247, 1, 0
      %v2268 = vsel %vm2248, 1, 0
      %v2269 = vsel %vm2249, 1, 0
      %v2270 = vsel %vm2250, 1, 0
      %v2271 = vsel %vm2251, 1, 0
      %v2272 = vsel %vm2252, 1, 0
      %v2273 = vsel %vm2253, 1, 0
      %v2274 = vsel %vm2254, 1, 0
      %v2275 = vsel %vm2255, 1, 0
      %v2276 = vsel %vm2256, 1, 0
      %v2277 = vsel %vm2257, 1, 0
      %v2278 = vsel %vm2258, 1, 0
      %v2279 = vsel %vm2259, 1, 0
      %v2280 = vsel %vm2260, 1, 0
      %v2281 = vsel %vm2261, 1, 0
      %v2282 = vsel %vm2262, 1, 0
      %v2283 = vsel %vm2263, 1, 0
      %v2284 = vsel %vm2264, 1, 0
      %vm2285 = vcmp.eq.s32.totalorder %v2265, 1
      %vm2286 = vcmp.eq.s32.totalorder %v2266, 1
      %vm2287 = vcmp.eq.s32.totalorder %v2267, 1
      %vm2288 = vcmp.eq.s32.totalorder %v2268, 1
      %vm2289 = vcmp.eq.s32.totalorder %v2269, 1
      %vm2290 = vcmp.eq.s32.totalorder %v2270, 1
      %vm2291 = vcmp.eq.s32.totalorder %v2271, 1
      %vm2292 = vcmp.eq.s32.totalorder %v2272, 1
      %vm2293 = vcmp.eq.s32.totalorder %v2273, 1
      %vm2294 = vcmp.eq.s32.totalorder %v2274, 1
      %vm2295 = vcmp.eq.s32.totalorder %v2275, 1
      %vm2296 = vcmp.eq.s32.totalorder %v2276, 1
      %vm2297 = vcmp.eq.s32.totalorder %v2277, 1
      %vm2298 = vcmp.eq.s32.totalorder %v2278, 1
      %vm2299 = vcmp.eq.s32.totalorder %v2279, 1
      %vm2300 = vcmp.eq.s32.totalorder %v2280, 1
      %vm2301 = vcmp.eq.s32.totalorder %v2281, 1
      %vm2302 = vcmp.eq.s32.totalorder %v2282, 1
      %vm2303 = vcmp.eq.s32.totalorder %v2283, 1
      %vm2304 = vcmp.eq.s32.totalorder %v2284, 1
      %v2305 = vsel %vm2285, 0.0, %v2124
      %v2306 = vsel %vm2286, 0.0, %v2125
      %v2307 = vsel %vm2287, 0.0, %v2126
      %v2308 = vsel %vm2288, 0.0, %v2127
      %v2309 = vsel %vm2289, 0.0, %v2128
      %v2310 = vsel %vm2290, 0.0, %v2129
      %v2311 = vsel %vm2291, 0.0, %v2130
      %v2312 = vsel %vm2292, 0.0, %v2131
      %v2313 = vsel %vm2293, 0.0, %v2132
      %v2314 = vsel %vm2294, 0.0, %v2133
      %v2315 = vsel %vm2295, 0.0, %v2134
      %v2316 = vsel %vm2296, 0.0, %v2135
      %v2317 = vsel %vm2297, 0.0, %v2136
      %v2318 = vsel %vm2298, 0.0, %v2137
      %v2319 = vsel %vm2299, 0.0, %v2138
      %v2320 = vsel %vm2300, 0.0, %v2139
      %v2321 = vsel %vm2301, 0.0, %v2140
      %v2322 = vsel %vm2302, 0.0, %v2141
      %v2323 = vsel %vm2303, 0.0, %v2142
      %v2324 = vsel %vm2304, 0.0, %v2143
      %v2325 = vpack.c.bf16 %v2306, %v2305
      %v2326 = vpack.c.bf16 %v2308, %v2307
      %v2327 = vpack.c.bf16 %v2310, %v2309
      %v2328 = vpack.c.bf16 %v2312, %v2311
      %v2329 = vpack.c.bf16 %v2314, %v2313
      %v2330 = vpack.c.bf16 %v2316, %v2315
      %v2331 = vpack.c.bf16 %v2318, %v2317
      %v2332 = vpack.c.bf16 %v2320, %v2319
      %v2333 = vpack.c.bf16 %v2322, %v2321
      %v2334 = vpack.c.bf16 %v2324, %v2323
      %v2345 = vunpack.c.l.b16 %v2325
      %v2346 = vunpack.c.h.b16 %v2325
      %v2347 = vunpack.c.l.b16 %v2326
      %v2348 = vunpack.c.h.b16 %v2326
      %v2349 = vunpack.c.l.b16 %v2327
      %v2350 = vunpack.c.h.b16 %v2327
      %v2351 = vunpack.c.l.b16 %v2328
      %v2352 = vunpack.c.h.b16 %v2328
      %v2353 = vunpack.c.l.b16 %v2329
      %v2354 = vunpack.c.h.b16 %v2329
      %v2355 = vunpack.c.l.b16 %v2330
      %v2356 = vunpack.c.h.b16 %v2330
      %v2357 = vunpack.c.l.b16 %v2331
      %v2358 = vunpack.c.h.b16 %v2331
      %v2359 = vunpack.c.l.b16 %v2332
      %v2360 = vunpack.c.h.b16 %v2332
      %v2361 = vunpack.c.l.b16 %v2333
      %v2362 = vunpack.c.h.b16 %v2333
      %v2363 = vunpack.c.l.b16 %v2334
      %v2364 = vunpack.c.h.b16 %v2334
      %v2365 = vpack.c.b16 %v2345, %v2345
      %v2366 = vpack.c.b16 %v2346, %v2346
      %v2367 = vpack.c.b16 %v2347, %v2347
      %v2368 = vpack.c.b16 %v2348, %v2348
      %v2369 = vpack.c.b16 %v2349, %v2349
      %v2370 = vpack.c.b16 %v2350, %v2350
      %v2371 = vpack.c.b16 %v2351, %v2351
      %v2372 = vpack.c.b16 %v2352, %v2352
      %v2373 = vpack.c.b16 %v2353, %v2353
      %v2374 = vpack.c.b16 %v2354, %v2354
      %v2375 = vpack.c.b16 %v2355, %v2355
      %v2376 = vpack.c.b16 %v2356, %v2356
      %v2377 = vpack.c.b16 %v2357, %v2357
      %v2378 = vpack.c.b16 %v2358, %v2358
      %v2379 = vpack.c.b16 %v2359, %v2359
      %v2380 = vpack.c.b16 %v2360, %v2360
      %v2381 = vpack.c.b16 %v2361, %v2361
      %v2382 = vpack.c.b16 %v2362, %v2362
      %v2383 = vpack.c.b16 %v2363, %v2363
      %v2384 = vpack.c.b16 %v2364, %v2364
      %2385 = vrot.lane.b32.xlu0 %v2365, 8
      %v2386 = vpop.permute.xlu0 %2385
      %2387 = vrot.lane.b32.xlu0 %v2366, 8
      %v2388 = vpop.permute.xlu0 %2387
      %2389 = vrot.lane.b32.xlu0 %v2367, 8
      %v2390 = vpop.permute.xlu0 %2389
      %2391 = vrot.lane.b32.xlu0 %v2368, 8
      %v2392 = vpop.permute.xlu0 %2391
      %2393 = vrot.lane.b32.xlu0 %v2369, 8
      %v2394 = vpop.permute.xlu0 %2393
      %2395 = vrot.lane.b32.xlu0 %v2370, 8
      %v2396 = vpop.permute.xlu0 %2395
      %2397 = vrot.lane.b32.xlu0 %v2371, 8
      %v2398 = vpop.permute.xlu0 %2397
      %2399 = vrot.lane.b32.xlu0 %v2372, 8
      %v2400 = vpop.permute.xlu0 %2399
      %2401 = vrot.lane.b32.xlu0 %v2373, 8
      %v2402 = vpop.permute.xlu0 %2401
      %2403 = vrot.lane.b32.xlu0 %v2374, 8
      %v2404 = vpop.permute.xlu0 %2403
      %2405 = vrot.lane.b32.xlu0 %v2375, 8
      %v2406 = vpop.permute.xlu0 %2405
      %2407 = vrot.lane.b32.xlu0 %v2376, 8
      %v2408 = vpop.permute.xlu0 %2407
      %2409 = vrot.lane.b32.xlu0 %v2377, 8
      %v2410 = vpop.permute.xlu0 %2409
      %2411 = vrot.lane.b32.xlu0 %v2378, 8
      %v2412 = vpop.permute.xlu0 %2411
      %2413 = vrot.lane.b32.xlu0 %v2379, 8
      %v2414 = vpop.permute.xlu0 %2413
      %2415 = vrot.lane.b32.xlu0 %v2380, 8
      %v2416 = vpop.permute.xlu0 %2415
      %2417 = vrot.lane.b32.xlu0 %v2381, 8
      %v2418 = vpop.permute.xlu0 %2417
      %2419 = vrot.lane.b32.xlu0 %v2382, 8
      %v2420 = vpop.permute.xlu0 %2419
      %2421 = vrot.lane.b32.xlu0 %v2383, 8
      %v2422 = vpop.permute.xlu0 %2421
      %2423 = vrot.lane.b32.xlu0 %v2384, 8
      %v2424 = vpop.permute.xlu0 %2423
      %vm2445 = vcmask 126016
      %2446 = vst.msk [vmem:[#allocation3] sm:$0xf] %vm2445, %v2386
      %2447 = vst.msk [vmem:[#allocation3 + $0x4] sm:$0xf] %vm2445, %v2388
      %2448 = vst.msk [vmem:[#allocation3 + $0x8] sm:$0xf] %vm2445, %v2390
      %2449 = vst.msk [vmem:[#allocation3 + $0xc] sm:$0xf] %vm2445, %v2392
      %2450 = vst.msk [vmem:[#allocation3 + $0x10] sm:$0xf] %vm2445, %v2394
      %2451 = vst.msk [vmem:[#allocation3 + $0x14] sm:$0xf] %vm2445, %v2396
      %2452 = vst.msk [vmem:[#allocation3 + $0x18] sm:$0xf] %vm2445, %v2398
      %2453 = vst.msk [vmem:[#allocation3 + $0x1c] sm:$0xf] %vm2445, %v2400
      %2454 = vst.msk [vmem:[#allocation3 + $0x20] sm:$0xf] %vm2445, %v2402
      %2455 = vst.msk [vmem:[#allocation3 + $0x24] sm:$0xf] %vm2445, %v2404
      %2456 = vst.msk [vmem:[#allocation3 + $0x28] sm:$0xf] %vm2445, %v2406
      %2457 = vst.msk [vmem:[#allocation3 + $0x2c] sm:$0xf] %vm2445, %v2408
      %2458 = vst.msk [vmem:[#allocation3 + $0x30] sm:$0xf] %vm2445, %v2410
      %2459 = vst.msk [vmem:[#allocation3 + $0x34] sm:$0xf] %vm2445, %v2412
      %2460 = vst.msk [vmem:[#allocation3 + $0x38] sm:$0xf] %vm2445, %v2414
      %2461 = vst.msk [vmem:[#allocation3 + $0x3c] sm:$0xf] %vm2445, %v2416
      %2462 = vst.msk [vmem:[#allocation3 + $0x40] sm:$0xf] %vm2445, %v2418
      %2463 = vst.msk [vmem:[#allocation3 + $0x44] sm:$0xf] %vm2445, %v2420
      %2464 = vst.msk [vmem:[#allocation3 + $0x48] sm:$0xf] %vm2445, %v2422
      %2465 = vst.msk [vmem:[#allocation3 + $0x4c] sm:$0xf] %vm2445, %v2424
      %v2467 = vshrl.u32 %v2365, 16
      %v2469 = vrot.slane %v2467, 7
      %v2470 = vshll.u32 %v2365, 16
      %v2472 = vor.u32 %v2469, %v2470
      %v2473 = vrot.slane %v2469, 4
      %v2475 = vshrl.u32 %v2366, 16
      %v2477 = vrot.slane %v2475, 7
      %v2478 = vshll.u32 %v2366, 16
      %v2480 = vor.u32 %v2477, %v2478
      %v2481 = vsel %vm749, %v2473, %v2480
      %v2483 = vshrl.u32 %v2367, 16
      %v2485 = vrot.slane %v2483, 7
      %v2486 = vshll.u32 %v2367, 16
      %v2488 = vor.u32 %v2485, %v2486
      %v2489 = vrot.slane %v2485, 4
      %v2491 = vshrl.u32 %v2368, 16
      %v2493 = vrot.slane %v2491, 7
      %v2494 = vshll.u32 %v2368, 16
      %v2496 = vor.u32 %v2493, %v2494
      %v2497 = vsel %vm749, %v2489, %v2496
      %v2499 = vshrl.u32 %v2369, 16
      %v2501 = vrot.slane %v2499, 7
      %v2502 = vshll.u32 %v2369, 16
      %v2504 = vor.u32 %v2501, %v2502
      %v2505 = vrot.slane %v2501, 4
      %v2507 = vshrl.u32 %v2370, 16
      %v2509 = vrot.slane %v2507, 7
      %v2510 = vshll.u32 %v2370, 16
      %v2512 = vor.u32 %v2509, %v2510
      %v2513 = vsel %vm749, %v2505, %v2512
      %v2515 = vshrl.u32 %v2371, 16
      %v2517 = vrot.slane %v2515, 7
      %v2518 = vshll.u32 %v2371, 16
      %v2520 = vor.u32 %v2517, %v2518
      %v2521 = vrot.slane %v2517, 4
      %v2523 = vshrl.u32 %v2372, 16
      %v2525 = vrot.slane %v2523, 7
      %v2526 = vshll.u32 %v2372, 16
      %v2528 = vor.u32 %v2525, %v2526
      %v2529 = vsel %vm749, %v2521, %v2528
      %v2531 = vshrl.u32 %v2373, 16
      %v2533 = vrot.slane %v2531, 7
      %v2534 = vshll.u32 %v2373, 16
      %v2536 = vor.u32 %v2533, %v2534
      %v2537 = vrot.slane %v2533, 4
      %v2539 = vshrl.u32 %v2374, 16
      %v2541 = vrot.slane %v2539, 7
      %v2542 = vshll.u32 %v2374, 16
      %v2544 = vor.u32 %v2541, %v2542
      %v2545 = vsel %vm749, %v2537, %v2544
      %v2547 = vshrl.u32 %v2375, 16
      %v2549 = vrot.slane %v2547, 7
      %v2550 = vshll.u32 %v2375, 16
      %v2552 = vor.u32 %v2549, %v2550
      %v2553 = vrot.slane %v2549, 4
      %v2555 = vshrl.u32 %v2376, 16
      %v2557 = vrot.slane %v2555, 7
      %v2558 = vshll.u32 %v2376, 16
      %v2560 = vor.u32 %v2557, %v2558
      %v2561 = vsel %vm749, %v2553, %v2560
      %v2563 = vshrl.u32 %v2377, 16
      %v2565 = vrot.slane %v2563, 7
      %v2566 = vshll.u32 %v2377, 16
      %v2568 = vor.u32 %v2565, %v2566
      %v2569 = vrot.slane %v2565, 4
      %v2571 = vshrl.u32 %v2378, 16
      %v2573 = vrot.slane %v2571, 7
      %v2574 = vshll.u32 %v2378, 16
      %v2576 = vor.u32 %v2573, %v2574
      %v2577 = vsel %vm749, %v2569, %v2576
      %v2579 = vshrl.u32 %v2379, 16
      %v2581 = vrot.slane %v2579, 7
      %v2582 = vshll.u32 %v2379, 16
      %v2584 = vor.u32 %v2581, %v2582
      %v2585 = vrot.slane %v2581, 4
      %v2587 = vshrl.u32 %v2380, 16
      %v2589 = vrot.slane %v2587, 7
      %v2590 = vshll.u32 %v2380, 16
      %v2592 = vor.u32 %v2589, %v2590
      %v2593 = vsel %vm749, %v2585, %v2592
      %v2595 = vshrl.u32 %v2381, 16
      %v2597 = vrot.slane %v2595, 7
      %v2598 = vshll.u32 %v2381, 16
      %v2600 = vor.u32 %v2597, %v2598
      %v2601 = vrot.slane %v2597, 4
      %v2603 = vshrl.u32 %v2382, 16
      %v2605 = vrot.slane %v2603, 7
      %v2606 = vshll.u32 %v2382, 16
      %v2608 = vor.u32 %v2605, %v2606
      %v2609 = vsel %vm749, %v2601, %v2608
      %v2611 = vshrl.u32 %v2383, 16
      %v2613 = vrot.slane %v2611, 7
      %v2614 = vshll.u32 %v2383, 16
      %v2616 = vor.u32 %v2613, %v2614
      %v2617 = vrot.slane %v2613, 4
      %v2619 = vshrl.u32 %v2384, 16
      %v2621 = vrot.slane %v2619, 7
      %v2622 = vshll.u32 %v2384, 16
      %v2624 = vor.u32 %v2621, %v2622
      %v2625 = vsel %vm749, %v2617, %v2624
      %vm2646 = vcmask 60416
      %vm2647 = vmand %vm2646, %vm1015
      %v2648 = vld [vmem:[#allocation3] sm:$0xf]
      %v2649 = vsel %vm2647, %v2472, %v2648
      %2650 = vst [vmem:[#allocation3] sm:$0xf] %v2649
      %vm2651 = vcmask 60416
      %2652 = vst.msk [vmem:[#allocation3 + $0x4] sm:$0xf] %vm2651, %v2481
      %v2653 = vld [vmem:[#allocation3 + $0x8] sm:$0xf]
      %v2654 = vsel %vm2647, %v2488, %v2653
      %2655 = vst [vmem:[#allocation3 + $0x8] sm:$0xf] %v2654
      %2656 = vst.msk [vmem:[#allocation3 + $0xc] sm:$0xf] %vm2651, %v2497
      %v2657 = vld [vmem:[#allocation3 + $0x10] sm:$0xf]
      %v2658 = vsel %vm2647, %v2504, %v2657
      %2659 = vst [vmem:[#allocation3 + $0x10] sm:$0xf] %v2658
      %2660 = vst.msk [vmem:[#allocation3 + $0x14] sm:$0xf] %vm2651, %v2513
      %v2661 = vld [vmem:[#allocation3 + $0x18] sm:$0xf]
      %v2662 = vsel %vm2647, %v2520, %v2661
      %2663 = vst [vmem:[#allocation3 + $0x18] sm:$0xf] %v2662
      %2664 = vst.msk [vmem:[#allocation3 + $0x1c] sm:$0xf] %vm2651, %v2529
      %v2665 = vld [vmem:[#allocation3 + $0x20] sm:$0xf]
      %v2666 = vsel %vm2647, %v2536, %v2665
      %2667 = vst [vmem:[#allocation3 + $0x20] sm:$0xf] %v2666
      %2668 = vst.msk [vmem:[#allocation3 + $0x24] sm:$0xf] %vm2651, %v2545
      %v2669 = vld [vmem:[#allocation3 + $0x28] sm:$0xf]
      %v2670 = vsel %vm2647, %v2552, %v2669
      %2671 = vst [vmem:[#allocation3 + $0x28] sm:$0xf] %v2670
      %2672 = vst.msk [vmem:[#allocation3 + $0x2c] sm:$0xf] %vm2651, %v2561
      %v2673 = vld [vmem:[#allocation3 + $0x30] sm:$0xf]
      %v2674 = vsel %vm2647, %v2568, %v2673
      %2675 = vst [vmem:[#allocation3 + $0x30] sm:$0xf] %v2674
      %2676 = vst.msk [vmem:[#allocation3 + $0x34] sm:$0xf] %vm2651, %v2577
      %v2677 = vld [vmem:[#allocation3 + $0x38] sm:$0xf]
      %v2678 = vsel %vm2647, %v2584, %v2677
      %2679 = vst [vmem:[#allocation3 + $0x38] sm:$0xf] %v2678
      %2680 = vst.msk [vmem:[#allocation3 + $0x3c] sm:$0xf] %vm2651, %v2593
      %v2681 = vld [vmem:[#allocation3 + $0x40] sm:$0xf]
      %v2682 = vsel %vm2647, %v2600, %v2681
      %2683 = vst [vmem:[#allocation3 + $0x40] sm:$0xf] %v2682
      %2684 = vst.msk [vmem:[#allocation3 + $0x44] sm:$0xf] %vm2651, %v2609
      %v2685 = vld [vmem:[#allocation3 + $0x48] sm:$0xf]
      %v2686 = vsel %vm2647, %v2616, %v2685
      %2687 = vst [vmem:[#allocation3 + $0x48] sm:$0xf] %v2686
      %2688 = vst.msk [vmem:[#allocation3 + $0x4c] sm:$0xf] %vm2651, %v2625
      %vm2689 = vcmask 57344
      %vm2690 = vmand %vm2689, %vm747
      %v2691 = vld [vmem:[#allocation3] sm:$0x1]
      %v2692 = vsel %vm2690, 0, %v2691
      %2693 = vst [vmem:[#allocation3] sm:$0x1] %v2692
      %v2694 = vld [vmem:[#allocation3 + $0x8] sm:$0x1]
      %v2695 = vsel %vm2690, 0, %v2694
      %2696 = vst [vmem:[#allocation3 + $0x8] sm:$0x1] %v2695
      %v2697 = vld [vmem:[#allocation3 + $0x10] sm:$0x1]
      %v2698 = vsel %vm2690, 0, %v2697
      %2699 = vst [vmem:[#allocation3 + $0x10] sm:$0x1] %v2698
      %v2700 = vld [vmem:[#allocation3 + $0x18] sm:$0x1]
      %v2701 = vsel %vm2690, 0, %v2700
      %2702 = vst [vmem:[#allocation3 + $0x18] sm:$0x1] %v2701
      %v2703 = vld [vmem:[#allocation3 + $0x20] sm:$0x1]
      %v2704 = vsel %vm2690, 0, %v2703
      %2705 = vst [vmem:[#allocation3 + $0x20] sm:$0x1] %v2704
      %v2706 = vld [vmem:[#allocation3 + $0x28] sm:$0x1]
      %v2707 = vsel %vm2690, 0, %v2706
      %2708 = vst [vmem:[#allocation3 + $0x28] sm:$0x1] %v2707
      %v2709 = vld [vmem:[#allocation3 + $0x30] sm:$0x1]
      %v2710 = vsel %vm2690, 0, %v2709
      %2711 = vst [vmem:[#allocation3 + $0x30] sm:$0x1] %v2710
      %v2712 = vld [vmem:[#allocation3 + $0x38] sm:$0x1]
      %v2713 = vsel %vm2690, 0, %v2712
      %2714 = vst [vmem:[#allocation3 + $0x38] sm:$0x1] %v2713
      %v2715 = vld [vmem:[#allocation3 + $0x40] sm:$0x1]
      %v2716 = vsel %vm2690, 0, %v2715
      %2717 = vst [vmem:[#allocation3 + $0x40] sm:$0x1] %v2716
      %v2718 = vld [vmem:[#allocation3 + $0x48] sm:$0x1]
      %v2719 = vsel %vm2690, 0, %v2718
      %2720 = vst [vmem:[#allocation3 + $0x48] sm:$0x1] %v2719
      %v2721 = vrot.slane %v2467, 4
      %v2722 = vrot.slane %v2470, 5
      %v2723 = vor.u32 %v2721, %v2722
      %v2724 = vrot.slane %v2723, 4
      %v2725 = vrot.slane %v2478, 5
      %v2726 = vsel %vm1105, %v2724, %v2725
      %v2727 = vrot.slane %v2475, 4
      %v2728 = vor.u32 %v2727, %v2725
      %v2729 = vrot.slane %v2728, 4
      %v2730 = vrot.slane %v2483, 4
      %v2731 = vrot.slane %v2486, 5
      %v2732 = vor.u32 %v2730, %v2731
      %v2733 = vrot.slane %v2732, 4
      %v2734 = vrot.slane %v2494, 5
      %v2735 = vsel %vm1105, %v2733, %v2734
      %v2736 = vrot.slane %v2491, 4
      %v2737 = vor.u32 %v2736, %v2734
      %v2738 = vrot.slane %v2737, 4
      %v2739 = vrot.slane %v2499, 4
      %v2740 = vrot.slane %v2502, 5
      %v2741 = vor.u32 %v2739, %v2740
      %v2742 = vrot.slane %v2741, 4
      %v2743 = vrot.slane %v2510, 5
      %v2744 = vsel %vm1105, %v2742, %v2743
      %v2745 = vrot.slane %v2507, 4
      %v2746 = vor.u32 %v2745, %v2743
      %v2747 = vrot.slane %v2746, 4
      %v2748 = vrot.slane %v2515, 4
      %v2749 = vrot.slane %v2518, 5
      %v2750 = vor.u32 %v2748, %v2749
      %v2751 = vrot.slane %v2750, 4
      %v2752 = vrot.slane %v2526, 5
      %v2753 = vsel %vm1105, %v2751, %v2752
      %v2754 = vrot.slane %v2523, 4
      %v2755 = vor.u32 %v2754, %v2752
      %v2756 = vrot.slane %v2755, 4
      %v2757 = vrot.slane %v2531, 4
      %v2758 = vrot.slane %v2534, 5
      %v2759 = vor.u32 %v2757, %v2758
      %v2760 = vrot.slane %v2759, 4
      %v2761 = vrot.slane %v2542, 5
      %v2762 = vsel %vm1105, %v2760, %v2761
      %v2763 = vrot.slane %v2539, 4
      %v2764 = vor.u32 %v2763, %v2761
      %v2765 = vrot.slane %v2764, 4
      %v2766 = vrot.slane %v2547, 4
      %v2767 = vrot.slane %v2550, 5
      %v2768 = vor.u32 %v2766, %v2767
      %v2769 = vrot.slane %v2768, 4
      %v2770 = vrot.slane %v2558, 5
      %v2771 = vsel %vm1105, %v2769, %v2770
      %v2772 = vrot.slane %v2555, 4
      %v2773 = vor.u32 %v2772, %v2770
      %v2774 = vrot.slane %v2773, 4
      %v2775 = vrot.slane %v2563, 4
      %v2776 = vrot.slane %v2566, 5
      %v2777 = vor.u32 %v2775, %v2776
      %v2778 = vrot.slane %v2777, 4
      %v2779 = vrot.slane %v2574, 5
      %v2780 = vsel %vm1105, %v2778, %v2779
      %v2781 = vrot.slane %v2571, 4
      %v2782 = vor.u32 %v2781, %v2779
      %v2783 = vrot.slane %v2782, 4
      %v2784 = vrot.slane %v2579, 4
      %v2785 = vrot.slane %v2582, 5
      %v2786 = vor.u32 %v2784, %v2785
      %v2787 = vrot.slane %v2786, 4
      %v2788 = vrot.slane %v2590, 5
      %v2789 = vsel %vm1105, %v2787, %v2788
      %v2790 = vrot.slane %v2587, 4
      %v2791 = vor.u32 %v2790, %v2788
      %v2792 = vrot.slane %v2791, 4
      %v2793 = vrot.slane %v2595, 4
      %v2794 = vrot.slane %v2598, 5
      %v2795 = vor.u32 %v2793, %v2794
      %v2796 = vrot.slane %v2795, 4
      %v2797 = vrot.slane %v2606, 5
      %v2798 = vsel %vm1105, %v2796, %v2797
      %v2799 = vrot.slane %v2603, 4
      %v2800 = vor.u32 %v2799, %v2797
      %v2801 = vrot.slane %v2800, 4
      %v2802 = vrot.slane %v2611, 4
      %v2803 = vrot.slane %v2614, 5
      %v2804 = vor.u32 %v2802, %v2803
      %v2805 = vrot.slane %v2804, 4
      %v2806 = vrot.slane %v2622, 5
      %v2807 = vsel %vm1105, %v2805, %v2806
      %v2808 = vrot.slane %v2619, 4
      %v2809 = vor.u32 %v2808, %v2806
      %v2810 = vrot.slane %v2809, 4
      %2811 = vrot.lane.b32.xlu0 %v2726, 16
      %v2812 = vpop.permute.xlu0 %2811
      %2813 = vrot.lane.b32.xlu0 %v2729, 16
      %v2814 = vpop.permute.xlu0 %2813
      %2815 = vrot.lane.b32.xlu0 %v2735, 16
      %v2816 = vpop.permute.xlu0 %2815
      %2817 = vrot.lane.b32.xlu0 %v2738, 16
      %v2818 = vpop.permute.xlu0 %2817
      %2819 = vrot.lane.b32.xlu0 %v2744, 16
      %v2820 = vpop.permute.xlu0 %2819
      %2821 = vrot.lane.b32.xlu0 %v2747, 16
      %v2822 = vpop.permute.xlu0 %2821
      %2823 = vrot.lane.b32.xlu0 %v2753, 16
      %v2824 = vpop.permute.xlu0 %2823
      %2825 = vrot.lane.b32.xlu0 %v2756, 16
      %v2826 = vpop.permute.xlu0 %2825
      %2827 = vrot.lane.b32.xlu0 %v2762, 16
      %v2828 = vpop.permute.xlu0 %2827
      %2829 = vrot.lane.b32.xlu0 %v2765, 16
      %v2830 = vpop.permute.xlu0 %2829
      %2831 = vrot.lane.b32.xlu0 %v2771, 16
      %v2832 = vpop.permute.xlu0 %2831
      %2833 = vrot.lane.b32.xlu0 %v2774, 16
      %v2834 = vpop.permute.xlu0 %2833
      %2835 = vrot.lane.b32.xlu0 %v2780, 16
      %v2836 = vpop.permute.xlu0 %2835
      %2837 = vrot.lane.b32.xlu0 %v2783, 16
      %v2838 = vpop.permute.xlu0 %2837
      %2839 = vrot.lane.b32.xlu0 %v2789, 16
      %v2840 = vpop.permute.xlu0 %2839
      %2841 = vrot.lane.b32.xlu0 %v2792, 16
      %v2842 = vpop.permute.xlu0 %2841
      %2843 = vrot.lane.b32.xlu0 %v2798, 16
      %v2844 = vpop.permute.xlu0 %2843
      %2845 = vrot.lane.b32.xlu0 %v2801, 16
      %v2846 = vpop.permute.xlu0 %2845
      %2847 = vrot.lane.b32.xlu0 %v2807, 16
      %v2848 = vpop.permute.xlu0 %2847
      %2849 = vrot.lane.b32.xlu0 %v2810, 16
      %v2850 = vpop.permute.xlu0 %2849
      %vm2871 = vcmask 191616
      %2872 = vst.msk [vmem:[#allocation3] sm:$0xf] %vm2871, %v2812
      %vm2873 = vcmask 191616
      %vm2874 = vmand %vm2873, %vm1103
      %v2875 = vld [vmem:[#allocation3 + $0x4] sm:$0xf]
      %v2876 = vsel %vm2874, %v2814, %v2875
      %2877 = vst [vmem:[#allocation3 + $0x4] sm:$0xf] %v2876
      %2878 = vst.msk [vmem:[#allocation3 + $0x8] sm:$0xf] %vm2871, %v2816
      %v2879 = vld [vmem:[#allocation3 + $0xc] sm:$0xf]
      %v2880 = vsel %vm2874, %v2818, %v2879
      %2881 = vst [vmem:[#allocation3 + $0xc] sm:$0xf] %v2880
      %2882 = vst.msk [vmem:[#allocation3 + $0x10] sm:$0xf] %vm2871, %v2820
      %v2883 = vld [vmem:[#allocation3 + $0x14] sm:$0xf]
      %v2884 = vsel %vm2874, %v2822, %v2883
      %2885 = vst [vmem:[#allocation3 + $0x14] sm:$0xf] %v2884
      %2886 = vst.msk [vmem:[#allocation3 + $0x18] sm:$0xf] %vm2871, %v2824
      %v2887 = vld [vmem:[#allocation3 + $0x1c] sm:$0xf]
      %v2888 = vsel %vm2874, %v2826, %v2887
      %2889 = vst [vmem:[#allocation3 + $0x1c] sm:$0xf] %v2888
      %2890 = vst.msk [vmem:[#allocation3 + $0x20] sm:$0xf] %vm2871, %v2828
      %v2891 = vld [vmem:[#allocation3 + $0x24] sm:$0xf]
      %v2892 = vsel %vm2874, %v2830, %v2891
      %2893 = vst [vmem:[#allocation3 + $0x24] sm:$0xf] %v2892
      %2894 = vst.msk [vmem:[#allocation3 + $0x28] sm:$0xf] %vm2871, %v2832
      %v2895 = vld [vmem:[#allocation3 + $0x2c] sm:$0xf]
      %v2896 = vsel %vm2874, %v2834, %v2895
      %2897 = vst [vmem:[#allocation3 + $0x2c] sm:$0xf] %v2896
      %2898 = vst.msk [vmem:[#allocation3 + $0x30] sm:$0xf] %vm2871, %v2836
      %v2899 = vld [vmem:[#allocation3 + $0x34] sm:$0xf]
      %v2900 = vsel %vm2874, %v2838, %v2899
      %2901 = vst [vmem:[#allocation3 + $0x34] sm:$0xf] %v2900
      %2902 = vst.msk [vmem:[#allocation3 + $0x38] sm:$0xf] %vm2871, %v2840
      %v2903 = vld [vmem:[#allocation3 + $0x3c] sm:$0xf]
      %v2904 = vsel %vm2874, %v2842, %v2903
      %2905 = vst [vmem:[#allocation3 + $0x3c] sm:$0xf] %v2904
      %2906 = vst.msk [vmem:[#allocation3 + $0x40] sm:$0xf] %vm2871, %v2844
      %v2907 = vld [vmem:[#allocation3 + $0x44] sm:$0xf]
      %v2908 = vsel %vm2874, %v2846, %v2907
      %2909 = vst [vmem:[#allocation3 + $0x44] sm:$0xf] %v2908
      %2910 = vst.msk [vmem:[#allocation3 + $0x48] sm:$0xf] %vm2871, %v2848
      %v2911 = vld [vmem:[#allocation3 + $0x4c] sm:$0xf]
      %v2912 = vsel %vm2874, %v2850, %v2911
      %2913 = vst [vmem:[#allocation3 + $0x4c] sm:$0xf] %v2912
      %vm2914 = vcmask 191619
      %vm2915 = vmand %vm2914, %vm1338
      %v2916 = vld [vmem:[#allocation3 + $0x4] sm:$0x8]
      %v2917 = vsel %vm2915, 0, %v2916
      %2918 = vst [vmem:[#allocation3 + $0x4] sm:$0x8] %v2917
      %v2919 = vld [vmem:[#allocation3 + $0xc] sm:$0x8]
      %v2920 = vsel %vm2915, 0, %v2919
      %2921 = vst [vmem:[#allocation3 + $0xc] sm:$0x8] %v2920
      %v2922 = vld [vmem:[#allocation3 + $0x14] sm:$0x8]
      %v2923 = vsel %vm2915, 0, %v2922
      %2924 = vst [vmem:[#allocation3 + $0x14] sm:$0x8] %v2923
      %v2925 = vld [vmem:[#allocation3 + $0x1c] sm:$0x8]
      %v2926 = vsel %vm2915, 0, %v2925
      %2927 = vst [vmem:[#allocation3 + $0x1c] sm:$0x8] %v2926
      %v2928 = vld [vmem:[#allocation3 + $0x24] sm:$0x8]
      %v2929 = vsel %vm2915, 0, %v2928
      %2930 = vst [vmem:[#allocation3 + $0x24] sm:$0x8] %v2929
      %v2931 = vld [vmem:[#allocation3 + $0x2c] sm:$0x8]
      %v2932 = vsel %vm2915, 0, %v2931
      %2933 = vst [vmem:[#allocation3 + $0x2c] sm:$0x8] %v2932
      %v2934 = vld [vmem:[#allocation3 + $0x34] sm:$0x8]
      %v2935 = vsel %vm2915, 0, %v2934
      %2936 = vst [vmem:[#allocation3 + $0x34] sm:$0x8] %v2935
      %v2937 = vld [vmem:[#allocation3 + $0x3c] sm:$0x8]
      %v2938 = vsel %vm2915, 0, %v2937
      %2939 = vst [vmem:[#allocation3 + $0x3c] sm:$0x8] %v2938
      %v2940 = vld [vmem:[#allocation3 + $0x44] sm:$0x8]
      %v2941 = vsel %vm2915, 0, %v2940
      %2942 = vst [vmem:[#allocation3 + $0x44] sm:$0x8] %v2941
      %v2943 = vld [vmem:[#allocation3 + $0x4c] sm:$0x8]
      %v2944 = vsel %vm2915, 0, %v2943
      %2945 = vst [vmem:[#allocation3 + $0x4c] sm:$0x8] %v2944
      %v2946 = vld [vmem:[#allocation3] sm:$0xf]
      %v2947 = vld [vmem:[#allocation3 + $0x4] sm:$0xf]
      %v2948 = vld [vmem:[#allocation3 + $0x8] sm:$0xf]
      %v2949 = vld [vmem:[#allocation3 + $0xc] sm:$0xf]
      %v2950 = vld [vmem:[#allocation3 + $0x10] sm:$0xf]
      %v2951 = vld [vmem:[#allocation3 + $0x14] sm:$0xf]
      %v2952 = vld [vmem:[#allocation3 + $0x18] sm:$0xf]
      %v2953 = vld [vmem:[#allocation3 + $0x1c] sm:$0xf]
      %v2954 = vld [vmem:[#allocation3 + $0x20] sm:$0xf]
      %v2955 = vld [vmem:[#allocation3 + $0x24] sm:$0xf]
      %v2956 = vld [vmem:[#allocation3 + $0x28] sm:$0xf]
      %v2957 = vld [vmem:[#allocation3 + $0x2c] sm:$0xf]
      %v2958 = vld [vmem:[#allocation3 + $0x30] sm:$0xf]
      %v2959 = vld [vmem:[#allocation3 + $0x34] sm:$0xf]
      %v2960 = vld [vmem:[#allocation3 + $0x38] sm:$0xf]
      %v2961 = vld [vmem:[#allocation3 + $0x3c] sm:$0xf]
      %v2962 = vld [vmem:[%s6] sm:$0xf]
      %v2963 = vld [vmem:[%s6 + $0x4] sm:$0xf]
      %v2964 = vld [vmem:[%s6 + $0x8] sm:$0xf]
      %s2965 = scalar_lea.vmem [#allocation3], 8
      %v2966 = vld [vmem:[%s2965] sm:$0xf]
      %v2967 = vld [vmem:[%s2965 + $0x4] sm:$0xf]
      %v2968 = vld [vmem:[%s2965 + $0x8] sm:$0xf]
      %v2969 = vld [vmem:[%s2965 + $0xc] sm:$0xf]
      %v2970 = vld [vmem:[%s2965 + $0x10] sm:$0xf]
      %v2971 = vld [vmem:[%s2965 + $0x14] sm:$0xf]
      %v2972 = vld [vmem:[%s2965 + $0x18] sm:$0xf]
      %v2973 = vld [vmem:[%s2965 + $0x1c] sm:$0xf]
      %v2974 = vld [vmem:[%s2965 + $0x20] sm:$0xf]
      %v2975 = vld [vmem:[%s2965 + $0x24] sm:$0xf]
      %v2976 = vld [vmem:[%s2965 + $0x28] sm:$0xf]
      %v2977 = vld [vmem:[%s2965 + $0x2c] sm:$0xf]
      %v2978 = vld [vmem:[%s2965 + $0x30] sm:$0xf]
      %v2979 = vld [vmem:[%s2965 + $0x34] sm:$0xf]
      %v2980 = vld [vmem:[%s2965 + $0x38] sm:$0xf]
      %v2981 = vld [vmem:[%s2965 + $0x3c] sm:$0xf]
      %s2982 = scalar_lea.vmem %s6, 12
      %v2983 = vld [vmem:[%s2982] sm:$0xf]
      %v2984 = vld [vmem:[%s2982 + $0x4] sm:$0xf]
      %v2985 = vld [vmem:[%s2982 + $0x8] sm:$0xf]
      %v3002 = vunpack.c.l.b16 %v2966
      %v3003 = vunpack.c.l.b16 %v2967
      %v3004 = vunpack.c.l.b16 %v2968
      %v3005 = vunpack.c.l.b16 %v2969
      %v3006 = vunpack.c.l.b16 %v2970
      %v3007 = vunpack.c.l.b16 %v2971
      %v3008 = vunpack.c.l.b16 %v2972
      %v3009 = vunpack.c.l.b16 %v2973
      %v3010 = vunpack.c.l.b16 %v2974
      %v3011 = vunpack.c.l.b16 %v2975
      %v3012 = vunpack.c.l.b16 %v2976
      %v3013 = vunpack.c.l.b16 %v2977
      %v3014 = vunpack.c.l.b16 %v2978
      %v3015 = vunpack.c.l.b16 %v2979
      %v3016 = vunpack.c.l.b16 %v2980
      %v3017 = vunpack.c.l.b16 %v2981
      %v3018 = vpack.c.b16 %v3003, %v3002
      %v3019 = vpack.c.b16 %v3005, %v3004
      %v3020 = vpack.c.b16 %v3007, %v3006
      %v3021 = vpack.c.b16 %v3009, %v3008
      %v3022 = vpack.c.b16 %v3011, %v3010
      %v3023 = vpack.c.b16 %v3013, %v3012
      %v3024 = vpack.c.b16 %v3015, %v3014
      %v3025 = vpack.c.b16 %v3017, %v3016
      %v3029 = vunpack.c.l.b16 %v2983
      %v3030 = vunpack.c.l.b16 %v2984
      %v3031 = vunpack.c.l.b16 %v2985
      %v3032 = vpack.c.b16 %v3030, %v3029
      %v3033 = vpack.c.b16 %v3031, %v3031
      %vm3035 = vcmask 195584
      %v3037 = vsel %vm3035, %v3018, 0
      %v3040 = vsel %vm3035, %v3019, 0
      %v3043 = vsel %vm3035, %v3020, 0
      %v3046 = vsel %vm3035, %v3021, 0
      %v3049 = vsel %vm3035, %v3022, 0
      %v3052 = vsel %vm3035, %v3023, 0
      %v3055 = vsel %vm3035, %v3024, 0
      %v3058 = vsel %vm3035, %v3025, 0
      %vm3060 = vcmask 1043456
      %v3062 = vsel %vm3060, %v3033, 0
      %3064 = vmatprep.subr.bf16.mxu0 0
      %3065 = vmatpush1.bf16.msra.mxu0 0
      %3066 = vmatprep.subr.bf16.mxu0 0
      %3067 = vmatpush1.bf16.msra.mxu0 0
      %3068 = vmatprep.subr.bf16.mxu0 0
      %3069 = vmatpush1.bf16.msra.mxu0 0
      %3070 = vmatprep.subr.bf16.mxu0 0
      %3071 = vmatpush1.bf16.msra.mxu0 0
      %3072 = vmatprep.subr.bf16.mxu0 0
      %3073 = vmatpush1.bf16.msra.mxu0 0
      %3074 = vmatprep.subr.bf16.mxu0 0
      %3075 = vmatpush1.bf16.msra.mxu0 0
      %3076 = vmatprep.subr.bf16.mxu0 0
      %3077 = vmatpush1.bf16.msra.mxu0 %v3062
      %3078 = vmatprep.subr.bf16.mxu0 0
      %3079 = vmatpush1.bf16.msra.mxu0 %v3032
      %3080 = vmatprep.subr.bf16.mxu0 0
      %3081 = vmatpush2.bf16.msra.mxu0 0
      %3082 = vmatprep.subr.bf16.mxu0 0
      %3083 = vmatpush2.bf16.msra.mxu0 0
      %3084 = vmatprep.subr.bf16.mxu0 0
      %3085 = vmatpush2.bf16.msra.mxu0 0
      %3086 = vmatprep.subr.bf16.mxu0 0
      %3087 = vmatpush2.bf16.msra.mxu0 0
      %3088 = vmatprep.subr.bf16.mxu0 0
      %3089 = vmatpush2.bf16.msra.mxu0 0
      %3090 = vmatprep.subr.bf16.mxu0 0
      %3091 = vmatpush2.bf16.msra.mxu0 0
      %3092 = vmatprep.subr.bf16.mxu0 0
      %3093 = vmatpush2.bf16.msra.mxu0 0
      %3094 = vmatprep.subr.bf16.mxu0 0
      %3095 = vmatpush2.bf16.msra.mxu0 0
      %3096 = vmatprep.mubr.bf16.mxu0 0
      %3097 = vmatmul.mubr.bf16.gmra.mxu0 %v3037
      %v3098 = vpop.f32.mrf.mxu0
      %v3099 = vadd.f32 0.0, %v3098
      %v3100 = vpop.f32.mrf.mxu0
      %v3101 = vpop.f32.mrf.mxu0
      %v3102 = vadd.f32 0.0, %v3101
      %v3103 = vpop.f32.mrf.mxu0
      %3104 = vmatprep.mubr.bf16.mxu0 0
      %3105 = vmatmul.mubr.bf16.gmra.mxu0 %v3040
      %v3106 = vpop.f32.mrf.mxu0
      %v3107 = vadd.f32 0.0, %v3106
      %v3108 = vpop.f32.mrf.mxu0
      %v3109 = vpop.f32.mrf.mxu0
      %v3110 = vadd.f32 0.0, %v3109
      %v3111 = vpop.f32.mrf.mxu0
      %3112 = vmatprep.mubr.bf16.mxu0 0
      %3113 = vmatmul.mubr.bf16.gmra.mxu0 %v3043
      %v3114 = vpop.f32.mrf.mxu0
      %v3115 = vadd.f32 0.0, %v3114
      %v3116 = vpop.f32.mrf.mxu0
      %v3117 = vpop.f32.mrf.mxu0
      %v3118 = vadd.f32 0.0, %v3117
      %v3119 = vpop.f32.mrf.mxu0
      %3120 = vmatprep.mubr.bf16.mxu0 0
      %3121 = vmatmul.mubr.bf16.gmra.mxu0 %v3046
      %v3122 = vpop.f32.mrf.mxu0
      %v3123 = vadd.f32 0.0, %v3122
      %v3124 = vpop.f32.mrf.mxu0
      %v3125 = vpop.f32.mrf.mxu0
      %v3126 = vadd.f32 0.0, %v3125
      %v3127 = vpop.f32.mrf.mxu0
      %3128 = vmatprep.mubr.bf16.mxu0 0
      %3129 = vmatmul.mubr.bf16.gmra.mxu0 %v3049
      %v3130 = vpop.f32.mrf.mxu0
      %v3131 = vadd.f32 0.0, %v3130
      %v3132 = vpop.f32.mrf.mxu0
      %v3133 = vpop.f32.mrf.mxu0
      %v3134 = vadd.f32 0.0, %v3133
      %v3135 = vpop.f32.mrf.mxu0
      %3136 = vmatprep.mubr.bf16.mxu0 0
      %3137 = vmatmul.mubr.bf16.gmra.mxu0 %v3052
      %v3138 = vpop.f32.mrf.mxu0
      %v3139 = vadd.f32 0.0, %v3138
      %v3140 = vpop.f32.mrf.mxu0
      %v3141 = vpop.f32.mrf.mxu0
      %v3142 = vadd.f32 0.0, %v3141
      %v3143 = vpop.f32.mrf.mxu0
      %3144 = vmatprep.mubr.bf16.mxu0 0
      %3145 = vmatmul.mubr.bf16.gmra.mxu0 %v3055
      %v3146 = vpop.f32.mrf.mxu0
      %v3147 = vadd.f32 0.0, %v3146
      %v3148 = vpop.f32.mrf.mxu0
      %v3149 = vpop.f32.mrf.mxu0
      %v3150 = vadd.f32 0.0, %v3149
      %v3151 = vpop.f32.mrf.mxu0
      %3152 = vmatprep.mubr.bf16.mxu0 0
      %3153 = vmatmul.mubr.bf16.gmra.mxu0 %v3058
      %v3154 = vpop.f32.mrf.mxu0
      %v3155 = vadd.f32 0.0, %v3154
      %v3156 = vpop.f32.mrf.mxu0
      %v3157 = vpop.f32.mrf.mxu0
      %v3158 = vadd.f32 0.0, %v3157
      %v3159 = vpop.f32.mrf.mxu0
      %3160 = vdwg.mxu0
      %v3177 = vunpack.c.l.b16 %v2946
      %v3178 = vunpack.c.l.b16 %v2947
      %v3179 = vunpack.c.l.b16 %v2948
      %v3180 = vunpack.c.l.b16 %v2949
      %v3181 = vunpack.c.l.b16 %v2950
      %v3182 = vunpack.c.l.b16 %v2951
      %v3183 = vunpack.c.l.b16 %v2952
      %v3184 = vunpack.c.l.b16 %v2953
      %v3185 = vunpack.c.l.b16 %v2954
      %v3186 = vunpack.c.l.b16 %v2955
      %v3187 = vunpack.c.l.b16 %v2956
      %v3188 = vunpack.c.l.b16 %v2957
      %v3189 = vunpack.c.l.b16 %v2958
      %v3190 = vunpack.c.l.b16 %v2959
      %v3191 = vunpack.c.l.b16 %v2960
      %v3192 = vunpack.c.l.b16 %v2961
      %v3193 = vpack.c.b16 %v3178, %v3177
      %v3194 = vpack.c.b16 %v3180, %v3179
      %v3195 = vpack.c.b16 %v3182, %v3181
      %v3196 = vpack.c.b16 %v3184, %v3183
      %v3197 = vpack.c.b16 %v3186, %v3185
      %v3198 = vpack.c.b16 %v3188, %v3187
      %v3199 = vpack.c.b16 %v3190, %v3189
      %v3200 = vpack.c.b16 %v3192, %v3191
      %v3204 = vunpack.c.l.b16 %v2962
      %v3205 = vunpack.c.l.b16 %v2963
      %v3206 = vunpack.c.l.b16 %v2964
      %v3207 = vpack.c.b16 %v3205, %v3204
      %v3208 = vpack.c.b16 %v3206, %v3206
      %v3211 = vsel %vm3035, %v3193, 0
      %v3214 = vsel %vm3035, %v3194, 0
      %v3217 = vsel %vm3035, %v3195, 0
      %v3220 = vsel %vm3035, %v3196, 0
      %v3223 = vsel %vm3035, %v3197, 0
      %v3226 = vsel %vm3035, %v3198, 0
      %v3229 = vsel %vm3035, %v3199, 0
      %v3232 = vsel %vm3035, %v3200, 0
      %v3235 = vsel %vm3060, %v3208, 0
      %3237 = vmatprep.subr.bf16.mxu0 0
      %3238 = vmatpush1.bf16.msra.mxu0 0
      %3239 = vmatprep.subr.bf16.mxu0 0
      %3240 = vmatpush1.bf16.msra.mxu0 0
      %3241 = vmatprep.subr.bf16.mxu0 0
      %3242 = vmatpush1.bf16.msra.mxu0 0
      %3243 = vmatprep.subr.bf16.mxu0 0
      %3244 = vmatpush1.bf16.msra.mxu0 0
      %3245 = vmatprep.subr.bf16.mxu0 0
      %3246 = vmatpush1.bf16.msra.mxu0 0
      %3247 = vmatprep.subr.bf16.mxu0 0
      %3248 = vmatpush1.bf16.msra.mxu0 0
      %3249 = vmatprep.subr.bf16.mxu0 0
      %3250 = vmatpush1.bf16.msra.mxu0 %v3235
      %3251 = vmatprep.subr.bf16.mxu0 0
      %3252 = vmatpush1.bf16.msra.mxu0 %v3207
      %3253 = vmatprep.subr.bf16.mxu0 0
      %3254 = vmatpush2.bf16.msra.mxu0 0
      %3255 = vmatprep.subr.bf16.mxu0 0
      %3256 = vmatpush2.bf16.msra.mxu0 0
      %3257 = vmatprep.subr.bf16.mxu0 0
      %3258 = vmatpush2.bf16.msra.mxu0 0
      %3259 = vmatprep.subr.bf16.mxu0 0
      %3260 = vmatpush2.bf16.msra.mxu0 0
      %3261 = vmatprep.subr.bf16.mxu0 0
      %3262 = vmatpush2.bf16.msra.mxu0 0
      %3263 = vmatprep.subr.bf16.mxu0 0
      %3264 = vmatpush2.bf16.msra.mxu0 0
      %3265 = vmatprep.subr.bf16.mxu0 0
      %3266 = vmatpush2.bf16.msra.mxu0 0
      %3267 = vmatprep.subr.bf16.mxu0 0
      %3268 = vmatpush2.bf16.msra.mxu0 0
      %3269 = vmatprep.mubr.bf16.mxu0 0
      %3270 = vmatmul.mubr.bf16.gmra.mxu0 %v3211
      %v3271 = vpop.f32.mrf.mxu0
      %v3272 = vadd.f32 %v3099, %v3271
      %v3273 = vpop.f32.mrf.mxu0
      %v3274 = vpop.f32.mrf.mxu0
      %v3275 = vadd.f32 %v3102, %v3274
      %v3276 = vpop.f32.mrf.mxu0
      %3277 = vmatprep.mubr.bf16.mxu0 0
      %3278 = vmatmul.mubr.bf16.gmra.mxu0 %v3214
      %v3279 = vpop.f32.mrf.mxu0
      %v3280 = vadd.f32 %v3107, %v3279
      %v3281 = vpop.f32.mrf.mxu0
      %v3282 = vpop.f32.mrf.mxu0
      %v3283 = vadd.f32 %v3110, %v3282
      %v3284 = vpop.f32.mrf.mxu0
      %3285 = vmatprep.mubr.bf16.mxu0 0
      %3286 = vmatmul.mubr.bf16.gmra.mxu0 %v3217
      %v3287 = vpop.f32.mrf.mxu0
      %v3288 = vadd.f32 %v3115, %v3287
      %v3289 = vpop.f32.mrf.mxu0
      %v3290 = vpop.f32.mrf.mxu0
      %v3291 = vadd.f32 %v3118, %v3290
      %v3292 = vpop.f32.mrf.mxu0
      %3293 = vmatprep.mubr.bf16.mxu0 0
      %3294 = vmatmul.mubr.bf16.gmra.mxu0 %v3220
      %v3295 = vpop.f32.mrf.mxu0
      %v3296 = vadd.f32 %v3123, %v3295
      %v3297 = vpop.f32.mrf.mxu0
      %v3298 = vpop.f32.mrf.mxu0
      %v3299 = vadd.f32 %v3126, %v3298
      %v3300 = vpop.f32.mrf.mxu0
      %3301 = vmatprep.mubr.bf16.mxu0 0
      %3302 = vmatmul.mubr.bf16.gmra.mxu0 %v3223
      %v3303 = vpop.f32.mrf.mxu0
      %v3304 = vadd.f32 %v3131, %v3303
      %v3305 = vpop.f32.mrf.mxu0
      %v3306 = vpop.f32.mrf.mxu0
      %v3307 = vadd.f32 %v3134, %v3306
      %v3308 = vpop.f32.mrf.mxu0
      %3309 = vmatprep.mubr.bf16.mxu0 0
      %3310 = vmatmul.mubr.bf16.gmra.mxu0 %v3226
      %v3311 = vpop.f32.mrf.mxu0
      %v3312 = vadd.f32 %v3139, %v3311
      %v3313 = vpop.f32.mrf.mxu0
      %v3314 = vpop.f32.mrf.mxu0
      %v3315 = vadd.f32 %v3142, %v3314
      %v3316 = vpop.f32.mrf.mxu0
      %3317 = vmatprep.mubr.bf16.mxu0 0
      %3318 = vmatmul.mubr.bf16.gmra.mxu0 %v3229
      %v3319 = vpop.f32.mrf.mxu0
      %v3320 = vadd.f32 %v3147, %v3319
      %v3321 = vpop.f32.mrf.mxu0
      %v3322 = vpop.f32.mrf.mxu0
      %v3323 = vadd.f32 %v3150, %v3322
      %v3324 = vpop.f32.mrf.mxu0
      %3325 = vmatprep.mubr.bf16.mxu0 0
      %3326 = vmatmul.mubr.bf16.gmra.mxu0 %v3232
      %v3327 = vpop.f32.mrf.mxu0
      %v3328 = vadd.f32 %v3155, %v3327
      %v3329 = vpop.f32.mrf.mxu0
      %v3330 = vpop.f32.mrf.mxu0
      %v3331 = vadd.f32 %v3158, %v3330
      %v3332 = vpop.f32.mrf.mxu0
      %3333 = vdwg.mxu0
      %s3334 = scalar_lea.vmem [#allocation3], 16
      %v3335 = vld [vmem:[%s3334] sm:$0xf]
      %v3336 = vld [vmem:[%s3334 + $0x4] sm:$0xf]
      %v3337 = vld [vmem:[%s3334 + $0x8] sm:$0xf]
      %v3338 = vld [vmem:[%s3334 + $0xc] sm:$0xf]
      %v3339 = vld [vmem:[%s3334 + $0x10] sm:$0xf]
      %v3340 = vld [vmem:[%s3334 + $0x14] sm:$0xf]
      %v3341 = vld [vmem:[%s3334 + $0x18] sm:$0xf]
      %v3342 = vld [vmem:[%s3334 + $0x1c] sm:$0xf]
      %v3343 = vld [vmem:[%s3334 + $0x20] sm:$0xf]
      %v3344 = vld [vmem:[%s3334 + $0x24] sm:$0xf]
      %v3345 = vld [vmem:[%s3334 + $0x28] sm:$0xf]
      %v3346 = vld [vmem:[%s3334 + $0x2c] sm:$0xf]
      %v3347 = vld [vmem:[%s3334 + $0x30] sm:$0xf]
      %v3348 = vld [vmem:[%s3334 + $0x34] sm:$0xf]
      %v3349 = vld [vmem:[%s3334 + $0x38] sm:$0xf]
      %v3350 = vld [vmem:[%s3334 + $0x3c] sm:$0xf]
      %s3351 = scalar_lea.vmem %s6, 24
      %v3352 = vld [vmem:[%s3351] sm:$0xf]
      %v3353 = vld [vmem:[%s3351 + $0x4] sm:$0xf]
      %v3354 = vld [vmem:[%s3351 + $0x8] sm:$0xf]
      %v3371 = vunpack.c.l.b16 %v3335
      %v3372 = vunpack.c.l.b16 %v3336
      %v3373 = vunpack.c.l.b16 %v3337
      %v3374 = vunpack.c.l.b16 %v3338
      %v3375 = vunpack.c.l.b16 %v3339
      %v3376 = vunpack.c.l.b16 %v3340
      %v3377 = vunpack.c.l.b16 %v3341
      %v3378 = vunpack.c.l.b16 %v3342
      %v3379 = vunpack.c.l.b16 %v3343
      %v3380 = vunpack.c.l.b16 %v3344
      %v3381 = vunpack.c.l.b16 %v3345
      %v3382 = vunpack.c.l.b16 %v3346
      %v3383 = vunpack.c.l.b16 %v3347
      %v3384 = vunpack.c.l.b16 %v3348
      %v3385 = vunpack.c.l.b16 %v3349
      %v3386 = vunpack.c.l.b16 %v3350
      %v3387 = vpack.c.b16 %v3372, %v3371
      %v3388 = vpack.c.b16 %v3374, %v3373
      %v3389 = vpack.c.b16 %v3376, %v3375
      %v3390 = vpack.c.b16 %v3378, %v3377
      %v3391 = vpack.c.b16 %v3380, %v3379
      %v3392 = vpack.c.b16 %v3382, %v3381
      %v3393 = vpack.c.b16 %v3384, %v3383
      %v3394 = vpack.c.b16 %v3386, %v3385
      %v3398 = vunpack.c.l.b16 %v3352
      %v3399 = vunpack.c.l.b16 %v3353
      %v3400 = vunpack.c.l.b16 %v3354
      %v3401 = vpack.c.b16 %v3399, %v3398
      %v3402 = vpack.c.b16 %v3400, %v3400
      %v3405 = vsel %vm3035, %v3387, 0
      %v3408 = vsel %vm3035, %v3388, 0
      %v3411 = vsel %vm3035, %v3389, 0
      %v3414 = vsel %vm3035, %v3390, 0
      %v3417 = vsel %vm3035, %v3391, 0
      %v3420 = vsel %vm3035, %v3392, 0
      %v3423 = vsel %vm3035, %v3393, 0
      %v3426 = vsel %vm3035, %v3394, 0
      %v3429 = vsel %vm3060, %v3402, 0
      %3431 = vmatprep.subr.bf16.mxu0 0
      %3432 = vmatpush1.bf16.msra.mxu0 0
      %3433 = vmatprep.subr.bf16.mxu0 0
      %3434 = vmatpush1.bf16.msra.mxu0 0
      %3435 = vmatprep.subr.bf16.mxu0 0
      %3436 = vmatpush1.bf16.msra.mxu0 0
      %3437 = vmatprep.subr.bf16.mxu0 0
      %3438 = vmatpush1.bf16.msra.mxu0 0
      %3439 = vmatprep.subr.bf16.mxu0 0
      %3440 = vmatpush1.bf16.msra.mxu0 0
      %3441 = vmatprep.subr.bf16.mxu0 0
      %3442 = vmatpush1.bf16.msra.mxu0 0
      %3443 = vmatprep.subr.bf16.mxu0 0
      %3444 = vmatpush1.bf16.msra.mxu0 %v3429
      %3445 = vmatprep.subr.bf16.mxu0 0
      %3446 = vmatpush1.bf16.msra.mxu0 %v3401
      %3447 = vmatprep.subr.bf16.mxu0 0
      %3448 = vmatpush2.bf16.msra.mxu0 0
      %3449 = vmatprep.subr.bf16.mxu0 0
      %3450 = vmatpush2.bf16.msra.mxu0 0
      %3451 = vmatprep.subr.bf16.mxu0 0
      %3452 = vmatpush2.bf16.msra.mxu0 0
      %3453 = vmatprep.subr.bf16.mxu0 0
      %3454 = vmatpush2.bf16.msra.mxu0 0
      %3455 = vmatprep.subr.bf16.mxu0 0
      %3456 = vmatpush2.bf16.msra.mxu0 0
      %3457 = vmatprep.subr.bf16.mxu0 0
      %3458 = vmatpush2.bf16.msra.mxu0 0
      %3459 = vmatprep.subr.bf16.mxu0 0
      %3460 = vmatpush2.bf16.msra.mxu0 0
      %3461 = vmatprep.subr.bf16.mxu0 0
      %3462 = vmatpush2.bf16.msra.mxu0 0
      %3463 = vmatprep.mubr.bf16.mxu0 0
      %3464 = vmatmul.mubr.bf16.gmra.mxu0 %v3405
      %v3465 = vpop.f32.mrf.mxu0
      %v3466 = vadd.f32 0.0, %v3465
      %v3467 = vpop.f32.mrf.mxu0
      %v3468 = vpop.f32.mrf.mxu0
      %v3469 = vadd.f32 0.0, %v3468
      %v3470 = vpop.f32.mrf.mxu0
      %3471 = vmatprep.mubr.bf16.mxu0 0
      %3472 = vmatmul.mubr.bf16.gmra.mxu0 %v3408
      %v3473 = vpop.f32.mrf.mxu0
      %v3474 = vadd.f32 0.0, %v3473
      %v3475 = vpop.f32.mrf.mxu0
      %v3476 = vpop.f32.mrf.mxu0
      %v3477 = vadd.f32 0.0, %v3476
      %v3478 = vpop.f32.mrf.mxu0
      %3479 = vmatprep.mubr.bf16.mxu0 0
      %3480 = vmatmul.mubr.bf16.gmra.mxu0 %v3411
      %v3481 = vpop.f32.mrf.mxu0
      %v3482 = vadd.f32 0.0, %v3481
      %v3483 = vpop.f32.mrf.mxu0
      %v3484 = vpop.f32.mrf.mxu0
      %v3485 = vadd.f32 0.0, %v3484
      %v3486 = vpop.f32.mrf.mxu0
      %3487 = vmatprep.mubr.bf16.mxu0 0
      %3488 = vmatmul.mubr.bf16.gmra.mxu0 %v3414
      %v3489 = vpop.f32.mrf.mxu0
      %v3490 = vadd.f32 0.0, %v3489
      %v3491 = vpop.f32.mrf.mxu0
      %v3492 = vpop.f32.mrf.mxu0
      %v3493 = vadd.f32 0.0, %v3492
      %v3494 = vpop.f32.mrf.mxu0
      %3495 = vmatprep.mubr.bf16.mxu0 0
      %3496 = vmatmul.mubr.bf16.gmra.mxu0 %v3417
      %v3497 = vpop.f32.mrf.mxu0
      %v3498 = vadd.f32 0.0, %v3497
      %v3499 = vpop.f32.mrf.mxu0
      %v3500 = vpop.f32.mrf.mxu0
      %v3501 = vadd.f32 0.0, %v3500
      %v3502 = vpop.f32.mrf.mxu0
      %3503 = vmatprep.mubr.bf16.mxu0 0
      %3504 = vmatmul.mubr.bf16.gmra.mxu0 %v3420
      %v3505 = vpop.f32.mrf.mxu0
      %v3506 = vadd.f32 0.0, %v3505
      %v3507 = vpop.f32.mrf.mxu0
      %v3508 = vpop.f32.mrf.mxu0
      %v3509 = vadd.f32 0.0, %v3508
      %v3510 = vpop.f32.mrf.mxu0
      %3511 = vmatprep.mubr.bf16.mxu0 0
      %3512 = vmatmul.mubr.bf16.gmra.mxu0 %v3423
      %v3513 = vpop.f32.mrf.mxu0
      %v3514 = vadd.f32 0.0, %v3513
      %v3515 = vpop.f32.mrf.mxu0
      %v3516 = vpop.f32.mrf.mxu0
      %v3517 = vadd.f32 0.0, %v3516
      %v3518 = vpop.f32.mrf.mxu0
      %3519 = vmatprep.mubr.bf16.mxu0 0
      %3520 = vmatmul.mubr.bf16.gmra.mxu0 %v3426
      %v3521 = vpop.f32.mrf.mxu0
      %v3522 = vadd.f32 0.0, %v3521
      %v3523 = vpop.f32.mrf.mxu0
      %v3524 = vpop.f32.mrf.mxu0
      %v3525 = vadd.f32 0.0, %v3524
      %v3526 = vpop.f32.mrf.mxu0
      %3527 = vdwg.mxu0
      %v3528 = vadd.f32 %v3272, %v3466
      %v3529 = vadd.f32 %v3275, %v3469
      %v3530 = vadd.f32 %v3280, %v3474
      %v3531 = vadd.f32 %v3283, %v3477
      %v3532 = vadd.f32 %v3288, %v3482
      %v3533 = vadd.f32 %v3291, %v3485
      %v3534 = vadd.f32 %v3296, %v3490
      %v3535 = vadd.f32 %v3299, %v3493
      %v3536 = vadd.f32 %v3304, %v3498
      %v3537 = vadd.f32 %v3307, %v3501
      %v3538 = vadd.f32 %v3312, %v3506
      %v3539 = vadd.f32 %v3315, %v3509
      %v3540 = vadd.f32 %v3320, %v3514
      %v3541 = vadd.f32 %v3323, %v3517
      %v3542 = vadd.f32 %v3328, %v3522
      %v3543 = vadd.f32 %v3331, %v3525
      %v3544 = vld [vmem:[%s7] sm:$0x1]
      %v3546 = vlaneseq
      %v3547 = vshrl.u32 %v3546, 7
      %v3548 = vsub.s32 0, %v3547
      %v3549 = vrot.slane %v3544, %v3548
      %v3551 = vmul.f32 %v3528, %v3549
      %v3552 = vmul.f32 %v3529, %v3549
      %v3553 = vmul.f32 %v3530, %v3549
      %v3554 = vmul.f32 %v3531, %v3549
      %v3555 = vmul.f32 %v3532, %v3549
      %v3556 = vmul.f32 %v3533, %v3549
      %v3557 = vmul.f32 %v3534, %v3549
      %v3558 = vmul.f32 %v3535, %v3549
      %v3559 = vmul.f32 %v3536, %v3549
      %v3560 = vmul.f32 %v3537, %v3549
      %v3561 = vmul.f32 %v3538, %v3549
      %v3562 = vmul.f32 %v3539, %v3549
      %v3563 = vmul.f32 %v3540, %v3549
      %v3564 = vmul.f32 %v3541, %v3549
      %v3565 = vmul.f32 %v3542, %v3549
      %v3566 = vmul.f32 %v3543, %v3549
      %v3567 = vld [vmem:[%s8] sm:$0x1]
      %v3569 = vlaneseq
      %v3570 = vshrl.u32 %v3569, 7
      %v3571 = vsub.s32 0, %v3570
      %v3572 = vrot.slane %v3567, %v3571
      %v3574 = vadd.f32 %v3551, %v3572
      %v3575 = vadd.f32 %v3552, %v3572
      %v3576 = vadd.f32 %v3553, %v3572
      %v3577 = vadd.f32 %v3554, %v3572
      %v3578 = vadd.f32 %v3555, %v3572
      %v3579 = vadd.f32 %v3556, %v3572
      %v3580 = vadd.f32 %v3557, %v3572
      %v3581 = vadd.f32 %v3558, %v3572
      %v3582 = vadd.f32 %v3559, %v3572
      %v3583 = vadd.f32 %v3560, %v3572
      %v3584 = vadd.f32 %v3561, %v3572
      %v3585 = vadd.f32 %v3562, %v3572
      %v3586 = vadd.f32 %v3563, %v3572
      %v3587 = vadd.f32 %v3564, %v3572
      %v3588 = vadd.f32 %v3565, %v3572
      %v3589 = vadd.f32 %v3566, %v3572
      %v3590 = vmax.f32 %v3574, 0.0
      %v3591 = vmax.f32 %v3575, 0.0
      %v3592 = vmax.f32 %v3576, 0.0
      %v3593 = vmax.f32 %v3577, 0.0
      %v3594 = vmax.f32 %v3578, 0.0
      %v3595 = vmax.f32 %v3579, 0.0
      %v3596 = vmax.f32 %v3580, 0.0
      %v3597 = vmax.f32 %v3581, 0.0
      %v3598 = vmax.f32 %v3582, 0.0
      %v3599 = vmax.f32 %v3583, 0.0
      %v3600 = vmax.f32 %v3584, 0.0
      %v3601 = vmax.f32 %v3585, 0.0
      %v3602 = vmax.f32 %v3586, 0.0
      %v3603 = vmax.f32 %v3587, 0.0
      %v3604 = vmax.f32 %v3588, 0.0
      %v3605 = vmax.f32 %v3589, 0.0
      %vm3606 = vcmask 64512
      %3607 = vst.msk [vmem:[%s509] sm:$0xff] %vm3606, %v3590
      %3608 = vst.msk [vmem:[%s509 + $0x8] sm:$0xff] %vm3606, %v3591
      %3609 = vst.msk [vmem:[%s509 + $0x10] sm:$0xff] %vm3606, %v3592
      %3610 = vst.msk [vmem:[%s509 + $0x18] sm:$0xff] %vm3606, %v3593
      %3611 = vst.msk [vmem:[%s509 + $0x20] sm:$0xff] %vm3606, %v3594
      %3612 = vst.msk [vmem:[%s509 + $0x28] sm:$0xff] %vm3606, %v3595
      %3613 = vst.msk [vmem:[%s509 + $0x30] sm:$0xff] %vm3606, %v3596
      %3614 = vst.msk [vmem:[%s509 + $0x38] sm:$0xff] %vm3606, %v3597
      %3615 = vst.msk [vmem:[%s509 + $0x40] sm:$0xff] %vm3606, %v3598
      %3616 = vst.msk [vmem:[%s509 + $0x48] sm:$0xff] %vm3606, %v3599
      %3617 = vst.msk [vmem:[%s509 + $0x50] sm:$0xff] %vm3606, %v3600
      %3618 = vst.msk [vmem:[%s509 + $0x58] sm:$0xff] %vm3606, %v3601
      %3619 = vst.msk [vmem:[%s509 + $0x60] sm:$0xff] %vm3606, %v3602
      %3620 = vst.msk [vmem:[%s509 + $0x68] sm:$0xff] %vm3606, %v3603
      %3621 = vst.msk [vmem:[%s509 + $0x70] sm:$0xff] %vm3606, %v3604
      %3622 = vst.msk [vmem:[%s509 + $0x78] sm:$0xff] %vm3606, %v3605
      %s3623 = smul.u32 8, %s25
      %p3624 = scmp.lt.s32.totalorder %s24, 1
      %s3625 = scalar_select %p3624, %s24, 1
      %p3626 = scmp.lt.s32.totalorder %s3623, 15
      %s3627 = scalar_select %p3626, %s3623, 15
      %s3628 = smul.addr %s3627, 2
      %s3629 = smul.addr %s3625, 32
      %s3630 = sadd.s32 %s3628, %s3629
      %s3631 = smul.addr %s3630, 8
      %s3632 = scalar_lea.vmem %s9, %s3631
      // Predicated region
      $region57: #{double_conv_forward.1} parent=55 // pred_check
        %p3633 = pneg %p278
      $region58: #{double_conv_forward.1} parent=55 // pred_check_branch
        %3635 = sbr.rel (%p3633) target = $region60
      $region59: #{double_conv_forward.1} parent=55 // pred_region
        %s3636 = smul.u32 8, %s25
      $region60: #{double_conv_forward.1} parent=55 // pred_fallthru
        _
    $region56: #{double_conv_forward.1} parent=5 // pred_fallthru
      _
    %p3637 = scmp.le.s32.totalorder 2, %s15
    // Predicated region
    $region61: #{double_conv_forward.1} parent=5 // pred_check
      %p3638 = pneg %p3637
    $region62: #{double_conv_forward.1} parent=5 // pred_check_branch
      %3640 = sbr.rel (%p3638) target = $region64
    $region63: #{double_conv_forward.1} parent=5 // pred_region
      %s3641 = ssub.s32 %s15, 2
      // Predicated region
      $region65: #{double_conv_forward.1} parent=63 // pred_check
        %p3642 = pneg %p284
      $region66: #{double_conv_forward.1} parent=63 // pred_check_branch
        %3644 = sbr.rel (%p3642) target = $region68
      $region67: #{double_conv_forward.1} parent=63 // pred_region
        %s3645 = smul.u32 8, %s27
        %p3646 = scmp.lt.s32.totalorder %s26, 1
        %s3647 = scalar_select %p3646, %s26, 1
        %p3648 = scmp.lt.s32.totalorder %s3645, 15
        %s3649 = scalar_select %p3648, %s3645, 15
        %s3650 = smul.addr %s3649, 2
        %s3651 = smul.addr %s3647, 32
        %s3652 = sadd.s32 %s3650, %s3651
        %s3653 = smul.addr %s3652, 8
        %s3654 = scalar_lea.vmem %s9, %s3653
      $region68: #{double_conv_forward.1} parent=63 // pred_fallthru
        _
    $region64: #{double_conv_forward.1} parent=5 // pred_fallthru
      _
  $region6: #{double_conv_forward.1} parent=0 // loop_footer
    %s19 = sadd.s32 1, %s15
  $region7: #{double_conv_forward.1} parent=0 // loop_footer_branch
    %14 = sbr.rel target = $region3
  $region8: #{double_conv_forward.1} parent=0 // loop_exit
    _

</llo_original>
